<compile_context>
chip_gen: v6e
topology: v6e:2x2x1
jax: 0.10.0
libtpu: 0.0.40
codegen_flags: <defaults>
</compile_context>

<pallas_src>
import jax
import jax.numpy as jnp
from jax import lax
from jax.experimental import pallas as pl
from jax.experimental.pallas import tpu as pltpu

HIDDEN = 256
ALPHABET = 'abcdefghijklmnopqrstuvwxyz'
SYMBOLS = ALPHABET + ' .'
INPUT_SIZE = len(SYMBOLS)     # 28
OUTPUT_SIZE = len(SYMBOLS)    # 28

INPUT_PAD = 32     # pad input/one-hot axis to a sublane-friendly width
OUTPUT_PAD = 128   # lane-dense logits slab (unmasked stores, clean lane reduce)
NEG_INF = -1e30    # bias for padded output lanes -> exp() underflows to 0


def _sigmoid(x):
    # 1/(1+exp(-x)) with the divide on the EUP slot (approx reciprocal).
    return pl.reciprocal(1.0 + jnp.exp(-x), approx=True)


def char_gen_seq_kernel(x_ref, h0_ref, c0_ref,
                        wih_ref, whh_ref, b_ref,
                        wfc_ref, bfc_ref,
                        logp_ref, h_out_ref, c_out_ref,
                        xw_ref):
    """T LSTM steps with all weights resident in VMEM.

    x:     (T, INPUT_PAD)        f32  (zero-padded past INPUT_SIZE)
    h0/c0: (1, HIDDEN)           f32
    wih:   (INPUT_PAD, 4H)       bf16
    whh:   (HIDDEN, 4H)          bf16
    b:     (1, 4H)               f32  (= b_ih + b_hh)
    wfc:   (HIDDEN, OUTPUT_PAD)  bf16 (zero columns past OUTPUT_SIZE)
    bfc:   (1, OUTPUT_PAD)       f32  (NEG_INF past OUTPUT_SIZE)
    logp:  (T, OUTPUT_PAD)       f32
    h/c out: (1, HIDDEN)         f32
    xw_ref:  (T, 4H)             f32 scratch -- input projections for all steps
    """
    T = x_ref.shape[0]

    # All T input projections in a single MXU call (M=T instead of M=1 per step).
    xw_ref[...] = (jnp.dot(x_ref[...].astype(jnp.bfloat16), wih_ref[...],
                           preferred_element_type=jnp.float32)
                   + b_ref[...])

    whh = whh_ref[...]   # (H, 4H) bf16, VMEM-resident across steps
    wfc = wfc_ref[...]   # (H, OUTPUT_PAD) bf16
    bfc = bfc_ref[...]   # (1, OUTPUT_PAD) f32

    def step(t, carry):
        h, c = carry                                     # (1, H) f32 each
        gates = xw_ref[pl.ds(t, 1), :] + jnp.dot(
            h.astype(jnp.bfloat16), whh, preferred_element_type=jnp.float32)

        # PyTorch gate order: i, f, g, o  (all elementwise math in f32)
        i_g = _sigmoid(gates[:, 0 * HIDDEN:1 * HIDDEN])
        f_g = _sigmoid(gates[:, 1 * HIDDEN:2 * HIDDEN])
        g_g = jnp.tanh(gates[:, 2 * HIDDEN:3 * HIDDEN])
        o_g = _sigmoid(gates[:, 3 * HIDDEN:4 * HIDDEN])

        c_new = f_g * c + i_g * g_g
        h_new = o_g * jnp.tanh(c_new)

        # fc + log-softmax over the (padded) feature axis.
        logits = (jnp.dot(h_new.astype(jnp.bfloat16), wfc,
                          preferred_element_type=jnp.float32) + bfc)
        m = jnp.max(logits, axis=-1, keepdims=True)
        z = logits - m
        lse = jnp.log(jnp.sum(jnp.exp(z), axis=-1, keepdims=True))
        logp_ref[pl.ds(t, 1), :] = z - lse
        return (h_new, c_new)

    h_fin, c_fin = lax.fori_loop(0, T, step, (h0_ref[...], c0_ref[...]),
                                 unroll=min(T, 8))
    h_out_ref[...] = h_fin
    c_out_ref[...] = c_fin


def make_params(key):
    """Parameter init matching the PyTorch module's shapes, packed for the kernel.

    nn.LSTM(input_size, hidden): W_ih (4H, I), W_hh (4H, H), b_ih (4H,), b_hh (4H,)
    nn.Linear(hidden, output):   W_fc (O, H),  b_fc (O,)
    Weights are pre-transposed to (in, out), padded, and stored as bf16.
    """
    k = 1.0 / jnp.sqrt(jnp.float32(HIDDEN))
    ks = jax.random.split(key, 6)
    w_ih = jax.random.uniform(ks[0], (4 * HIDDEN, INPUT_SIZE), jnp.float32, -k, k)
    w_hh = jax.random.uniform(ks[1], (4 * HIDDEN, HIDDEN), jnp.float32, -k, k)
    b_ih = jax.random.uniform(ks[2], (4 * HIDDEN,), jnp.float32, -k, k)
    b_hh = jax.random.uniform(ks[3], (4 * HIDDEN,), jnp.float32, -k, k)
    w_fc = jax.random.uniform(ks[4], (OUTPUT_SIZE, HIDDEN), jnp.float32, -k, k)
    b_fc = jax.random.uniform(ks[5], (OUTPUT_SIZE,), jnp.float32, -k, k)

    wih_t = jnp.zeros((INPUT_PAD, 4 * HIDDEN), jnp.float32).at[:INPUT_SIZE].set(w_ih.T)
    wfc_t = jnp.zeros((HIDDEN, OUTPUT_PAD), jnp.float32).at[:, :OUTPUT_SIZE].set(w_fc.T)
    bfc = jnp.full((1, OUTPUT_PAD), NEG_INF, jnp.float32).at[0, :OUTPUT_SIZE].set(b_fc)

    return dict(
        wih_t=wih_t.astype(jnp.bfloat16),               # (I_PAD, 4H)
        whh_t=w_hh.T.astype(jnp.bfloat16),              # (H, 4H)
        b=(b_ih + b_hh).reshape(1, 4 * HIDDEN),         # (1, 4H) f32
        wfc_t=wfc_t.astype(jnp.bfloat16),               # (H, O_PAD)
        bfc=bfc,                                        # (1, O_PAD) f32
    )


def _run_sequence(params, x2d, h2d, c2d):
    T = x2d.shape[0]
    vmem = pl.BlockSpec(memory_space=pltpu.MemorySpace.VMEM)
    out_shapes = (
        jax.ShapeDtypeStruct((T, OUTPUT_PAD), jnp.float32),
        jax.ShapeDtypeStruct((1, HIDDEN), jnp.float32),
        jax.ShapeDtypeStruct((1, HIDDEN), jnp.float32),
    )
    return pl.pallas_call(
        char_gen_seq_kernel,
        out_shape=out_shapes,
        in_specs=[vmem] * 8,
        out_specs=(vmem, vmem, vmem),
        scratch_shapes=[pltpu.VMEM((T, 4 * HIDDEN), jnp.float32)],
    )(x2d, h2d, c2d,
      params["wih_t"], params["whh_t"], params["b"],
      params["wfc_t"], params["bfc"])


def character_generator_sequence(params, x_seq, hidden):
    """Run T characters in ONE pallas_call (weights stay VMEM-resident).

    x_seq:  anything reshapeable to (T, input_size)
    hidden: (h0, c0), each reshapeable to (1, hidden)
    returns (log_probs (T, 1, output_size), (h (1,1,H), c (1,1,H)))
    """
    h0, c0 = hidden
    x2d = jnp.reshape(x_seq, (-1, INPUT_SIZE)).astype(jnp.float32)
    T = x2d.shape[0]
    x2d = jnp.pad(x2d, ((0, 0), (0, INPUT_PAD - INPUT_SIZE)))
    h2d = jnp.reshape(h0, (1, HIDDEN)).astype(jnp.float32)
    c2d = jnp.reshape(c0, (1, HIDDEN)).astype(jnp.float32)

    logp, h1, c1 = _run_sequence(params, x2d, h2d, c2d)
    logp = logp[:, :OUTPUT_SIZE].reshape(T, 1, OUTPUT_SIZE)
    return logp, (h1.reshape(1, 1, HIDDEN), c1.reshape(1, 1, HIDDEN))


def character_generator_forward(params, inp, hidden):
    """Mirrors CharacterGenerator.forward: one character step (T=1)."""
    logp, hidden = character_generator_sequence(
        params, jnp.reshape(inp, (1, INPUT_SIZE)), hidden)
    return logp.reshape(1, 1, OUTPUT_SIZE), hidden


def init_hidden():
    return (jnp.zeros((1, 1, HIDDEN), jnp.float32),
            jnp.zeros((1, 1, HIDDEN), jnp.float32))


def _reference_sequence(params, x_seq, hidden):
    """Plain-JAX reference (same bf16-stored weights, f32 math)."""
    wih = params["wih_t"].astype(jnp.float32)[:INPUT_SIZE]       # (28, 4H)
    whh = params["whh_t"].astype(jnp.float32)                    # (H, 4H)
    b = params["b"][0]
    wfc = params["wfc_t"].astype(jnp.float32)[:, :OUTPUT_SIZE]   # (H, 28)
    bfc = params["bfc"][0, :OUTPUT_SIZE]
    h = jnp.reshape(hidden[0], (HIDDEN,))
    c = jnp.reshape(hidden[1], (HIDDEN,))
    outs = []
    for t in range(x_seq.shape[0]):
        g = x_seq[t] @ wih + h @ whh + b
        i_g = jax.nn.sigmoid(g[0 * HIDDEN:1 * HIDDEN])
        f_g = jax.nn.sigmoid(g[1 * HIDDEN:2 * HIDDEN])
        g_g = jnp.tanh(g[2 * HIDDEN:3 * HIDDEN])
        o_g = jax.nn.sigmoid(g[3 * HIDDEN:4 * HIDDEN])
        c = f_g * c + i_g * g_g
        h = o_g * jnp.tanh(c)
        outs.append(jax.nn.log_softmax(h @ wfc + bfc))
    return jnp.stack(outs), (h, c)


if __name__ == "__main__":
    key = jax.random.PRNGKey(0)
    pkey, xkey = jax.random.split(key)
    params = make_params(pkey)

    T = 8
    char_ids = jax.random.randint(xkey, (T,), 0, INPUT_SIZE)
    x_seq = jax.nn.one_hot(char_ids, INPUT_SIZE, dtype=jnp.float32)   # (T, 28)
    hidden = init_hidden()

    # (a) Whole sequence in ONE pallas_call (weights resident, h/c carried in-kernel).
    logp_seq, (h1, c1) = character_generator_sequence(params, x_seq, hidden)
    jax.block_until_ready((logp_seq, h1, c1))
    assert logp_seq.shape == (T, 1, OUTPUT_SIZE)
    assert h1.shape == (1, 1, HIDDEN) and c1.shape == (1, 1, HIDDEN)

    # log-softmax sanity: each step's probabilities sum to 1.
    assert jnp.allclose(jnp.sum(jnp.exp(logp_seq), axis=-1), 1.0, atol=1e-4)

    # (b) Per-step API (PyTorch-style forward) chained over the same sequence
    #     must agree with the fused-sequence kernel.
    hid = hidden
    step_logps = []
    for t in range(T):
        lp, hid = character_generator_forward(params, x_seq[t], hid)
        step_logps.append(lp[0])
    logp_step = jnp.stack(step_logps)                   # (T, 1, 28)
    jax.block_until_ready(logp_step)
    assert jnp.allclose(logp_seq, logp_step, atol=1e-4)
    assert jnp.allclose(h1, hid[0], atol=1e-4) and jnp.allclose(c1, hid[1], atol=1e-4)

    # (c) Plain-JAX reference (loose tolerance: activations fed to MXU as bf16).
    logp_ref, (h_ref, c_ref) = _reference_sequence(params, x_seq, hidden)
    assert jnp.allclose(logp_seq[:, 0, :], logp_ref, atol=5e-2, rtol=5e-2)
    assert jnp.allclose(h1.reshape(-1), h_ref, atol=5e-2)

    print("KERNEL_OK")
</pallas_src>

<mosaic_0001>
module attributes {stable_mosaic.version = 11 : i64} {
  func.func @char_gen_seq_kernel(%arg0: memref<8x32xf32, #tpu.memory_space<vmem>>, %arg1: memref<1x256xf32, #tpu.memory_space<vmem>>, %arg2: memref<1x256xf32, #tpu.memory_space<vmem>>, %arg3: memref<32x1024xbf16, #tpu.memory_space<vmem>>, %arg4: memref<256x1024xbf16, #tpu.memory_space<vmem>>, %arg5: memref<1x1024xf32, #tpu.memory_space<vmem>>, %arg6: memref<256x128xbf16, #tpu.memory_space<vmem>>, %arg7: memref<1x128xf32, #tpu.memory_space<vmem>>, %arg8: memref<8x128xf32, #tpu.memory_space<vmem>>, %arg9: memref<1x256xf32, #tpu.memory_space<vmem>>, %arg10: memref<1x256xf32, #tpu.memory_space<vmem>>, %arg11: memref<8x1024xf32, #tpu.memory_space<vmem>>) attributes {dimension_semantics = [], scalar_prefetch = 0 : i64, scratch_operands = 1 : i64, tpu.core_type = #tpu.core_type<tc>} {
    %c0 = arith.constant 0 : index
    %c0_0 = arith.constant 0 : index
    %0 = vector.load %arg0[%c0, %c0_0] : memref<8x32xf32, #tpu.memory_space<vmem>>, vector<8x32xf32>
    %1 = arith.truncf %0 : vector<8x32xf32> to vector<8x32xbf16>
    %c0_1 = arith.constant 0 : index
    %c0_2 = arith.constant 0 : index
    %2 = vector.load %arg3[%c0_1, %c0_2] : memref<32x1024xbf16, #tpu.memory_space<vmem>>, vector<32x1024xbf16>
    %cst = arith.constant dense<0.000000e+00> : vector<8x1024xf32>
    %3 = tpu.matmul %1, %2, %cst {dimension_numbers = #tpu.dot_dimension_numbers<[1], [0], [0], [1], [0, 0, 1, 1], [], []>} : vector<8x32xbf16>, vector<32x1024xbf16>, vector<8x1024xf32> -> vector<8x1024xf32>
    %c0_3 = arith.constant 0 : index
    %c0_4 = arith.constant 0 : index
    %4 = vector.load %arg5[%c0_3, %c0_4] : memref<1x1024xf32, #tpu.memory_space<vmem>>, vector<1x1024xf32>
    %5 = vector.broadcast %4 : vector<1x1024xf32> to vector<8x1024xf32>
    %6 = arith.addf %3, %5 : vector<8x1024xf32>
    %c0_5 = arith.constant 0 : index
    %c0_6 = arith.constant 0 : index
    %7 = vector.load %arg11[%c0_5, %c0_6] : memref<8x1024xf32, #tpu.memory_space<vmem>>, vector<8x1024xf32>
    tpu.vector_store %arg11[%c0_5, %c0_6], %6 {strides = array<i32>} : memref<8x1024xf32, #tpu.memory_space<vmem>>, vector<8x1024xf32>,
    %c0_7 = arith.constant 0 : index
    %c0_8 = arith.constant 0 : index
    %8 = vector.load %arg4[%c0_7, %c0_8] : memref<256x1024xbf16, #tpu.memory_space<vmem>>, vector<256x1024xbf16>
    %c0_9 = arith.constant 0 : index
    %c0_10 = arith.constant 0 : index
    %9 = vector.load %arg6[%c0_9, %c0_10] : memref<256x128xbf16, #tpu.memory_space<vmem>>, vector<256x128xbf16>
    %c0_11 = arith.constant 0 : index
    %c0_12 = arith.constant 0 : index
    %10 = vector.load %arg7[%c0_11, %c0_12] : memref<1x128xf32, #tpu.memory_space<vmem>>, vector<1x128xf32>
    %c0_13 = arith.constant 0 : index
    %c0_14 = arith.constant 0 : index
    %11 = vector.load %arg1[%c0_13, %c0_14] : memref<1x256xf32, #tpu.memory_space<vmem>>, vector<1x256xf32>
    %c0_15 = arith.constant 0 : index
    %c0_16 = arith.constant 0 : index
    %12 = vector.load %arg2[%c0_15, %c0_16] : memref<1x256xf32, #tpu.memory_space<vmem>>, vector<1x256xf32>
    %c0_i32 = arith.constant 0 : i32
    %13 = arith.index_cast %c0_i32 : i32 to index
    %c0_17 = arith.constant 0 : index
    %14 = vector.load %arg11[%13, %c0_17] : memref<8x1024xf32, #tpu.memory_space<vmem>>, vector<1x1024xf32>
    %15 = arith.truncf %11 : vector<1x256xf32> to vector<1x256xbf16>
    %cst_18 = arith.constant dense<0.000000e+00> : vector<1x1024xf32>
    %16 = tpu.matmul %15, %8, %cst_18 {dimension_numbers = #tpu.dot_dimension_numbers<[1], [0], [0], [1], [0, 0, 1, 1], [], []>} : vector<1x256xbf16>, vector<256x1024xbf16>, vector<1x1024xf32> -> vector<1x1024xf32>
    %17 = arith.addf %14, %16 : vector<1x1024xf32>
    %18 = vector.extract_strided_slice %17 {offsets = [0, 0], sizes = [1, 256], strides = [1, 1]} : vector<1x1024xf32> to vector<1x256xf32>
    %cst_19 = arith.constant 0.000000e+00 : f32
    %19 = vector.broadcast %cst_19 : f32 to vector<1x256xf32>
    %20 = arith.subf %19, %18 : vector<1x256xf32>
    %21 = math.exp %20 : vector<1x256xf32>
    %cst_20 = arith.constant 1.000000e+00 : f32
    %22 = vector.broadcast %cst_20 : f32 to vector<1x256xf32>
    %23 = arith.addf %22, %21 : vector<1x256xf32>
    %24 = tpu.reciprocal %23 {approx = true} : vector<1x256xf32> -> vector<1x256xf32>
    %25 = vector.extract_strided_slice %17 {offsets = [0, 256], sizes = [1, 256], strides = [1, 1]} : vector<1x1024xf32> to vector<1x256xf32>
    %cst_21 = arith.constant 0.000000e+00 : f32
    %26 = vector.broadcast %cst_21 : f32 to vector<1x256xf32>
    %27 = arith.subf %26, %25 : vector<1x256xf32>
    %28 = math.exp %27 : vector<1x256xf32>
    %cst_22 = arith.constant 1.000000e+00 : f32
    %29 = vector.broadcast %cst_22 : f32 to vector<1x256xf32>
    %30 = arith.addf %29, %28 : vector<1x256xf32>
    %31 = tpu.reciprocal %30 {approx = true} : vector<1x256xf32> -> vector<1x256xf32>
    %32 = vector.extract_strided_slice %17 {offsets = [0, 512], sizes = [1, 256], strides = [1, 1]} : vector<1x1024xf32> to vector<1x256xf32>
    %33 = math.tanh %32 : vector<1x256xf32>
    %34 = vector.extract_strided_slice %17 {offsets = [0, 768], sizes = [1, 256], strides = [1, 1]} : vector<1x1024xf32> to vector<1x256xf32>
    %cst_23 = arith.constant 0.000000e+00 : f32
    %35 = vector.broadcast %cst_23 : f32 to vector<1x256xf32>
    %36 = arith.subf %35, %34 : vector<1x256xf32>
    %37 = math.exp %36 : vector<1x256xf32>
    %cst_24 = arith.constant 1.000000e+00 : f32
    %38 = vector.broadcast %cst_24 : f32 to vector<1x256xf32>
    %39 = arith.addf %38, %37 : vector<1x256xf32>
    %40 = tpu.reciprocal %39 {approx = true} : vector<1x256xf32> -> vector<1x256xf32>
    %41 = arith.mulf %31, %12 : vector<1x256xf32>
    %42 = arith.mulf %24, %33 : vector<1x256xf32>
    %43 = arith.addf %41, %42 : vector<1x256xf32>
    %44 = math.tanh %43 : vector<1x256xf32>
    %45 = arith.mulf %40, %44 : vector<1x256xf32>
    %46 = arith.truncf %45 : vector<1x256xf32> to vector<1x256xbf16>
    %cst_25 = arith.constant dense<0.000000e+00> : vector<1x128xf32>
    %47 = tpu.matmul %46, %9, %cst_25 {dimension_numbers = #tpu.dot_dimension_numbers<[1], [0], [0], [1], [0, 0, 1, 1], [], []>} : vector<1x256xbf16>, vector<256x128xbf16>, vector<1x128xf32> -> vector<1x128xf32>
    %48 = arith.addf %47, %10 : vector<1x128xf32>
    %cst_26 = arith.constant dense<0xFF800000> : vector<1xf32>
    %49 = vector.multi_reduction <maximumf>, %48, %cst_26 [1] : vector<1x128xf32> to vector<1xf32>
    %50 = vector.shape_cast %49 : vector<1xf32> to vector<1x1xf32>
    %51 = vector.broadcast %50 : vector<1x1xf32> to vector<1x128xf32>
    %52 = arith.subf %48, %51 : vector<1x128xf32>
    %53 = math.exp %52 : vector<1x128xf32>
    %cst_27 = arith.constant dense<0.000000e+00> : vector<1xf32>
    %54 = vector.multi_reduction <add>, %53, %cst_27 [1] : vector<1x128xf32> to vector<1xf32>
    %55 = vector.shape_cast %54 : vector<1xf32> to vector<1x1xf32>
    %56 = math.log %55 : vector<1x1xf32>
    %57 = vector.broadcast %56 : vector<1x1xf32> to vector<1x128xf32>
    %58 = arith.subf %52, %57 : vector<1x128xf32>
    %59 = arith.index_cast %c0_i32 : i32 to index
    %c0_28 = arith.constant 0 : index
    %60 = vector.load %arg8[%59, %c0_28] : memref<8x128xf32, #tpu.memory_space<vmem>>, vector<1x128xf32>
    tpu.vector_store %arg8[%59, %c0_28], %58 {strides = array<i32>} : memref<8x128xf32, #tpu.memory_space<vmem>>, vector<1x128xf32>,
    %c1_i32 = arith.constant 1 : i32
    %61 = arith.index_cast %c1_i32 : i32 to index
    %c0_29 = arith.constant 0 : index
    %62 = vector.load %arg11[%61, %c0_29] : memref<8x1024xf32, #tpu.memory_space<vmem>>, vector<1x1024xf32>
    %63 = arith.truncf %45 : vector<1x256xf32> to vector<1x256xbf16>
    %cst_30 = arith.constant dense<0.000000e+00> : vector<1x1024xf32>
    %64 = tpu.matmul %63, %8, %cst_30 {dimension_numbers = #tpu.dot_dimension_numbers<[1], [0], [0], [1], [0, 0, 1, 1], [], []>} : vector<1x256xbf16>, vector<256x1024xbf16>, vector<1x1024xf32> -> vector<1x1024xf32>
    %65 = arith.addf %62, %64 : vector<1x1024xf32>
    %66 = vector.extract_strided_slice %65 {offsets = [0, 0], sizes = [1, 256], strides = [1, 1]} : vector<1x1024xf32> to vector<1x256xf32>
    %cst_31 = arith.constant 0.000000e+00 : f32
    %67 = vector.broadcast %cst_31 : f32 to vector<1x256xf32>
    %68 = arith.subf %67, %66 : vector<1x256xf32>
    %69 = math.exp %68 : vector<1x256xf32>
    %cst_32 = arith.constant 1.000000e+00 : f32
    %70 = vector.broadcast %cst_32 : f32 to vector<1x256xf32>
    %71 = arith.addf %70, %69 : vector<1x256xf32>
    %72 = tpu.reciprocal %71 {approx = true} : vector<1x256xf32> -> vector<1x256xf32>
    %73 = vector.extract_strided_slice %65 {offsets = [0, 256], sizes = [1, 256], strides = [1, 1]} : vector<1x1024xf32> to vector<1x256xf32>
    %cst_33 = arith.constant 0.000000e+00 : f32
    %74 = vector.broadcast %cst_33 : f32 to vector<1x256xf32>
    %75 = arith.subf %74, %73 : vector<1x256xf32>
    %76 = math.exp %75 : vector<1x256xf32>
    %cst_34 = arith.constant 1.000000e+00 : f32
    %77 = vector.broadcast %cst_34 : f32 to vector<1x256xf32>
    %78 = arith.addf %77, %76 : vector<1x256xf32>
    %79 = tpu.reciprocal %78 {approx = true} : vector<1x256xf32> -> vector<1x256xf32>
    %80 = vector.extract_strided_slice %65 {offsets = [0, 512], sizes = [1, 256], strides = [1, 1]} : vector<1x1024xf32> to vector<1x256xf32>
    %81 = math.tanh %80 : vector<1x256xf32>
    %82 = vector.extract_strided_slice %65 {offsets = [0, 768], sizes = [1, 256], strides = [1, 1]} : vector<1x1024xf32> to vector<1x256xf32>
    %cst_35 = arith.constant 0.000000e+00 : f32
    %83 = vector.broadcast %cst_35 : f32 to vector<1x256xf32>
    %84 = arith.subf %83, %82 : vector<1x256xf32>
    %85 = math.exp %84 : vector<1x256xf32>
    %cst_36 = arith.constant 1.000000e+00 : f32
    %86 = vector.broadcast %cst_36 : f32 to vector<1x256xf32>
    %87 = arith.addf %86, %85 : vector<1x256xf32>
    %88 = tpu.reciprocal %87 {approx = true} : vector<1x256xf32> -> vector<1x256xf32>
    %89 = arith.mulf %79, %43 : vector<1x256xf32>
    %90 = arith.mulf %72, %81 : vector<1x256xf32>
    %91 = arith.addf %89, %90 : vector<1x256xf32>
    %92 = math.tanh %91 : vector<1x256xf32>
    %93 = arith.mulf %88, %92 : vector<1x256xf32>
    %94 = arith.truncf %93 : vector<1x256xf32> to vector<1x256xbf16>
    %cst_37 = arith.constant dense<0.000000e+00> : vector<1x128xf32>
    %95 = tpu.matmul %94, %9, %cst_37 {dimension_numbers = #tpu.dot_dimension_numbers<[1], [0], [0], [1], [0, 0, 1, 1], [], []>} : vector<1x256xbf16>, vector<256x128xbf16>, vector<1x128xf32> -> vector<1x128xf32>
    %96 = arith.addf %95, %10 : vector<1x128xf32>
    %cst_38 = arith.constant dense<0xFF800000> : vector<1xf32>
    %97 = vector.multi_reduction <maximumf>, %96, %cst_38 [1] : vector<1x128xf32> to vector<1xf32>
    %98 = vector.shape_cast %97 : vector<1xf32> to vector<1x1xf32>
    %99 = vector.broadcast %98 : vector<1x1xf32> to vector<1x128xf32>
    %100 = arith.subf %96, %99 : vector<1x128xf32>
    %101 = math.exp %100 : vector<1x128xf32>
    %cst_39 = arith.constant dense<0.000000e+00> : vector<1xf32>
    %102 = vector.multi_reduction <add>, %101, %cst_39 [1] : vector<1x128xf32> to vector<1xf32>
    %103 = vector.shape_cast %102 : vector<1xf32> to vector<1x1xf32>
    %104 = math.log %103 : vector<1x1xf32>
    %105 = vector.broadcast %104 : vector<1x1xf32> to vector<1x128xf32>
    %106 = arith.subf %100, %105 : vector<1x128xf32>
    %107 = arith.index_cast %c1_i32 : i32 to index
    %c0_40 = arith.constant 0 : index
    %108 = vector.load %arg8[%107, %c0_40] : memref<8x128xf32, #tpu.memory_space<vmem>>, vector<1x128xf32>
    tpu.vector_store %arg8[%107, %c0_40], %106 {strides = array<i32>} : memref<8x128xf32, #tpu.memory_space<vmem>>, vector<1x128xf32>,
    %c2_i32 = arith.constant 2 : i32
    %109 = arith.index_cast %c2_i32 : i32 to index
    %c0_41 = arith.constant 0 : index
    %110 = vector.load %arg11[%109, %c0_41] : memref<8x1024xf32, #tpu.memory_space<vmem>>, vector<1x1024xf32>
    %111 = arith.truncf %93 : vector<1x256xf32> to vector<1x256xbf16>
    %cst_42 = arith.constant dense<0.000000e+00> : vector<1x1024xf32>
    %112 = tpu.matmul %111, %8, %cst_42 {dimension_numbers = #tpu.dot_dimension_numbers<[1], [0], [0], [1], [0, 0, 1, 1], [], []>} : vector<1x256xbf16>, vector<256x1024xbf16>, vector<1x1024xf32> -> vector<1x1024xf32>
    %113 = arith.addf %110, %112 : vector<1x1024xf32>
    %114 = vector.extract_strided_slice %113 {offsets = [0, 0], sizes = [1, 256], strides = [1, 1]} : vector<1x1024xf32> to vector<1x256xf32>
    %cst_43 = arith.constant 0.000000e+00 : f32
    %115 = vector.broadcast %cst_43 : f32 to vector<1x256xf32>
    %116 = arith.subf %115, %114 : vector<1x256xf32>
    %117 = math.exp %116 : vector<1x256xf32>
    %cst_44 = arith.constant 1.000000e+00 : f32
    %118 = vector.broadcast %cst_44 : f32 to vector<1x256xf32>
    %119 = arith.addf %118, %117 : vector<1x256xf32>
    %120 = tpu.reciprocal %119 {approx = true} : vector<1x256xf32> -> vector<1x256xf32>
    %121 = vector.extract_strided_slice %113 {offsets = [0, 256], sizes = [1, 256], strides = [1, 1]} : vector<1x1024xf32> to vector<1x256xf32>
    %cst_45 = arith.constant 0.000000e+00 : f32
    %122 = vector.broadcast %cst_45 : f32 to vector<1x256xf32>
    %123 = arith.subf %122, %121 : vector<1x256xf32>
    %124 = math.exp %123 : vector<1x256xf32>
    %cst_46 = arith.constant 1.000000e+00 : f32
    %125 = vector.broadcast %cst_46 : f32 to vector<1x256xf32>
    %126 = arith.addf %125, %124 : vector<1x256xf32>
    %127 = tpu.reciprocal %126 {approx = true} : vector<1x256xf32> -> vector<1x256xf32>
    %128 = vector.extract_strided_slice %113 {offsets = [0, 512], sizes = [1, 256], strides = [1, 1]} : vector<1x1024xf32> to vector<1x256xf32>
    %129 = math.tanh %128 : vector<1x256xf32>
    %130 = vector.extract_strided_slice %113 {offsets = [0, 768], sizes = [1, 256], strides = [1, 1]} : vector<1x1024xf32> to vector<1x256xf32>
    %cst_47 = arith.constant 0.000000e+00 : f32
    %131 = vector.broadcast %cst_47 : f32 to vector<1x256xf32>
    %132 = arith.subf %131, %130 : vector<1x256xf32>
    %133 = math.exp %132 : vector<1x256xf32>
    %cst_48 = arith.constant 1.000000e+00 : f32
    %134 = vector.broadcast %cst_48 : f32 to vector<1x256xf32>
    %135 = arith.addf %134, %133 : vector<1x256xf32>
    %136 = tpu.reciprocal %135 {approx = true} : vector<1x256xf32> -> vector<1x256xf32>
    %137 = arith.mulf %127, %91 : vector<1x256xf32>
    %138 = arith.mulf %120, %129 : vector<1x256xf32>
    %139 = arith.addf %137, %138 : vector<1x256xf32>
    %140 = math.tanh %139 : vector<1x256xf32>
    %141 = arith.mulf %136, %140 : vector<1x256xf32>
    %142 = arith.truncf %141 : vector<1x256xf32> to vector<1x256xbf16>
    %cst_49 = arith.constant dense<0.000000e+00> : vector<1x128xf32>
    %143 = tpu.matmul %142, %9, %cst_49 {dimension_numbers = #tpu.dot_dimension_numbers<[1], [0], [0], [1], [0, 0, 1, 1], [], []>} : vector<1x256xbf16>, vector<256x128xbf16>, vector<1x128xf32> -> vector<1x128xf32>
    %144 = arith.addf %143, %10 : vector<1x128xf32>
    %cst_50 = arith.constant dense<0xFF800000> : vector<1xf32>
    %145 = vector.multi_reduction <maximumf>, %144, %cst_50 [1] : vector<1x128xf32> to vector<1xf32>
    %146 = vector.shape_cast %145 : vector<1xf32> to vector<1x1xf32>
    %147 = vector.broadcast %146 : vector<1x1xf32> to vector<1x128xf32>
    %148 = arith.subf %144, %147 : vector<1x128xf32>
    %149 = math.exp %148 : vector<1x128xf32>
    %cst_51 = arith.constant dense<0.000000e+00> : vector<1xf32>
    %150 = vector.multi_reduction <add>, %149, %cst_51 [1] : vector<1x128xf32> to vector<1xf32>
    %151 = vector.shape_cast %150 : vector<1xf32> to vector<1x1xf32>
    %152 = math.log %151 : vector<1x1xf32>
    %153 = vector.broadcast %152 : vector<1x1xf32> to vector<1x128xf32>
    %154 = arith.subf %148, %153 : vector<1x128xf32>
    %155 = arith.index_cast %c2_i32 : i32 to index
    %c0_52 = arith.constant 0 : index
    %156 = vector.load %arg8[%155, %c0_52] : memref<8x128xf32, #tpu.memory_space<vmem>>, vector<1x128xf32>
    tpu.vector_store %arg8[%155, %c0_52], %154 {strides = array<i32>} : memref<8x128xf32, #tpu.memory_space<vmem>>, vector<1x128xf32>,
    %c3_i32 = arith.constant 3 : i32
    %157 = arith.index_cast %c3_i32 : i32 to index
    %c0_53 = arith.constant 0 : index
    %158 = vector.load %arg11[%157, %c0_53] : memref<8x1024xf32, #tpu.memory_space<vmem>>, vector<1x1024xf32>
    %159 = arith.truncf %141 : vector<1x256xf32> to vector<1x256xbf16>
    %cst_54 = arith.constant dense<0.000000e+00> : vector<1x1024xf32>
    %160 = tpu.matmul %159, %8, %cst_54 {dimension_numbers = #tpu.dot_dimension_numbers<[1], [0], [0], [1], [0, 0, 1, 1], [], []>} : vector<1x256xbf16>, vector<256x1024xbf16>, vector<1x1024xf32> -> vector<1x1024xf32>
    %161 = arith.addf %158, %160 : vector<1x1024xf32>
    %162 = vector.extract_strided_slice %161 {offsets = [0, 0], sizes = [1, 256], strides = [1, 1]} : vector<1x1024xf32> to vector<1x256xf32>
    %cst_55 = arith.constant 0.000000e+00 : f32
    %163 = vector.broadcast %cst_55 : f32 to vector<1x256xf32>
    %164 = arith.subf %163, %162 : vector<1x256xf32>
    %165 = math.exp %164 : vector<1x256xf32>
    %cst_56 = arith.constant 1.000000e+00 : f32
    %166 = vector.broadcast %cst_56 : f32 to vector<1x256xf32>
    %167 = arith.addf %166, %165 : vector<1x256xf32>
    %168 = tpu.reciprocal %167 {approx = true} : vector<1x256xf32> -> vector<1x256xf32>
    %169 = vector.extract_strided_slice %161 {offsets = [0, 256], sizes = [1, 256], strides = [1, 1]} : vector<1x1024xf32> to vector<1x256xf32>
    %cst_57 = arith.constant 0.000000e+00 : f32
    %170 = vector.broadcast %cst_57 : f32 to vector<1x256xf32>
    %171 = arith.subf %170, %169 : vector<1x256xf32>
    %172 = math.exp %171 : vector<1x256xf32>
    %cst_58 = arith.constant 1.000000e+00 : f32
    %173 = vector.broadcast %cst_58 : f32 to vector<1x256xf32>
    %174 = arith.addf %173, %172 : vector<1x256xf32>
    %175 = tpu.reciprocal %174 {approx = true} : vector<1x256xf32> -> vector<1x256xf32>
    %176 = vector.extract_strided_slice %161 {offsets = [0, 512], sizes = [1, 256], strides = [1, 1]} : vector<1x1024xf32> to vector<1x256xf32>
    %177 = math.tanh %176 : vector<1x256xf32>
    %178 = vector.extract_strided_slice %161 {offsets = [0, 768], sizes = [1, 256], strides = [1, 1]} : vector<1x1024xf32> to vector<1x256xf32>
    %cst_59 = arith.constant 0.000000e+00 : f32
    %179 = vector.broadcast %cst_59 : f32 to vector<1x256xf32>
    %180 = arith.subf %179, %178 : vector<1x256xf32>
    %181 = math.exp %180 : vector<1x256xf32>
    %cst_60 = arith.constant 1.000000e+00 : f32
    %182 = vector.broadcast %cst_60 : f32 to vector<1x256xf32>
    %183 = arith.addf %182, %181 : vector<1x256xf32>
    %184 = tpu.reciprocal %183 {approx = true} : vector<1x256xf32> -> vector<1x256xf32>
    %185 = arith.mulf %175, %139 : vector<1x256xf32>
    %186 = arith.mulf %168, %177 : vector<1x256xf32>
    %187 = arith.addf %185, %186 : vector<1x256xf32>
    %188 = math.tanh %187 : vector<1x256xf32>
    %189 = arith.mulf %184, %188 : vector<1x256xf32>
    %190 = arith.truncf %189 : vector<1x256xf32> to vector<1x256xbf16>
    %cst_61 = arith.constant dense<0.000000e+00> : vector<1x128xf32>
    %191 = tpu.matmul %190, %9, %cst_61 {dimension_numbers = #tpu.dot_dimension_numbers<[1], [0], [0], [1], [0, 0, 1, 1], [], []>} : vector<1x256xbf16>, vector<256x128xbf16>, vector<1x128xf32> -> vector<1x128xf32>
    %192 = arith.addf %191, %10 : vector<1x128xf32>
    %cst_62 = arith.constant dense<0xFF800000> : vector<1xf32>
    %193 = vector.multi_reduction <maximumf>, %192, %cst_62 [1] : vector<1x128xf32> to vector<1xf32>
    %194 = vector.shape_cast %193 : vector<1xf32> to vector<1x1xf32>
    %195 = vector.broadcast %194 : vector<1x1xf32> to vector<1x128xf32>
    %196 = arith.subf %192, %195 : vector<1x128xf32>
    %197 = math.exp %196 : vector<1x128xf32>
    %cst_63 = arith.constant dense<0.000000e+00> : vector<1xf32>
    %198 = vector.multi_reduction <add>, %197, %cst_63 [1] : vector<1x128xf32> to vector<1xf32>
    %199 = vector.shape_cast %198 : vector<1xf32> to vector<1x1xf32>
    %200 = math.log %199 : vector<1x1xf32>
    %201 = vector.broadcast %200 : vector<1x1xf32> to vector<1x128xf32>
    %202 = arith.subf %196, %201 : vector<1x128xf32>
    %203 = arith.index_cast %c3_i32 : i32 to index
    %c0_64 = arith.constant 0 : index
    %204 = vector.load %arg8[%203, %c0_64] : memref<8x128xf32, #tpu.memory_space<vmem>>, vector<1x128xf32>
    tpu.vector_store %arg8[%203, %c0_64], %202 {strides = array<i32>} : memref<8x128xf32, #tpu.memory_space<vmem>>, vector<1x128xf32>,
    %c4_i32 = arith.constant 4 : i32
    %205 = arith.index_cast %c4_i32 : i32 to index
    %c0_65 = arith.constant 0 : index
    %206 = vector.load %arg11[%205, %c0_65] : memref<8x1024xf32, #tpu.memory_space<vmem>>, vector<1x1024xf32>
    %207 = arith.truncf %189 : vector<1x256xf32> to vector<1x256xbf16>
    %cst_66 = arith.constant dense<0.000000e+00> : vector<1x1024xf32>
    %208 = tpu.matmul %207, %8, %cst_66 {dimension_numbers = #tpu.dot_dimension_numbers<[1], [0], [0], [1], [0, 0, 1, 1], [], []>} : vector<1x256xbf16>, vector<256x1024xbf16>, vector<1x1024xf32> -> vector<1x1024xf32>
    %209 = arith.addf %206, %208 : vector<1x1024xf32>
    %210 = vector.extract_strided_slice %209 {offsets = [0, 0], sizes = [1, 256], strides = [1, 1]} : vector<1x1024xf32> to vector<1x256xf32>
    %cst_67 = arith.constant 0.000000e+00 : f32
    %211 = vector.broadcast %cst_67 : f32 to vector<1x256xf32>
    %212 = arith.subf %211, %210 : vector<1x256xf32>
    %213 = math.exp %212 : vector<1x256xf32>
    %cst_68 = arith.constant 1.000000e+00 : f32
    %214 = vector.broadcast %cst_68 : f32 to vector<1x256xf32>
    %215 = arith.addf %214, %213 : vector<1x256xf32>
    %216 = tpu.reciprocal %215 {approx = true} : vector<1x256xf32> -> vector<1x256xf32>
    %217 = vector.extract_strided_slice %209 {offsets = [0, 256], sizes = [1, 256], strides = [1, 1]} : vector<1x1024xf32> to vector<1x256xf32>
    %cst_69 = arith.constant 0.000000e+00 : f32
    %218 = vector.broadcast %cst_69 : f32 to vector<1x256xf32>
    %219 = arith.subf %218, %217 : vector<1x256xf32>
    %220 = math.exp %219 : vector<1x256xf32>
    %cst_70 = arith.constant 1.000000e+00 : f32
    %221 = vector.broadcast %cst_70 : f32 to vector<1x256xf32>
    %222 = arith.addf %221, %220 : vector<1x256xf32>
    %223 = tpu.reciprocal %222 {approx = true} : vector<1x256xf32> -> vector<1x256xf32>
    %224 = vector.extract_strided_slice %209 {offsets = [0, 512], sizes = [1, 256], strides = [1, 1]} : vector<1x1024xf32> to vector<1x256xf32>
    %225 = math.tanh %224 : vector<1x256xf32>
    %226 = vector.extract_strided_slice %209 {offsets = [0, 768], sizes = [1, 256], strides = [1, 1]} : vector<1x1024xf32> to vector<1x256xf32>
    %cst_71 = arith.constant 0.000000e+00 : f32
    %227 = vector.broadcast %cst_71 : f32 to vector<1x256xf32>
    %228 = arith.subf %227, %226 : vector<1x256xf32>
    %229 = math.exp %228 : vector<1x256xf32>
    %cst_72 = arith.constant 1.000000e+00 : f32
    %230 = vector.broadcast %cst_72 : f32 to vector<1x256xf32>
    %231 = arith.addf %230, %229 : vector<1x256xf32>
    %232 = tpu.reciprocal %231 {approx = true} : vector<1x256xf32> -> vector<1x256xf32>
    %233 = arith.mulf %223, %187 : vector<1x256xf32>
    %234 = arith.mulf %216, %225 : vector<1x256xf32>
    %235 = arith.addf %233, %234 : vector<1x256xf32>
    %236 = math.tanh %235 : vector<1x256xf32>
    %237 = arith.mulf %232, %236 : vector<1x256xf32>
    %238 = arith.truncf %237 : vector<1x256xf32> to vector<1x256xbf16>
    %cst_73 = arith.constant dense<0.000000e+00> : vector<1x128xf32>
    %239 = tpu.matmul %238, %9, %cst_73 {dimension_numbers = #tpu.dot_dimension_numbers<[1], [0], [0], [1], [0, 0, 1, 1], [], []>} : vector<1x256xbf16>, vector<256x128xbf16>, vector<1x128xf32> -> vector<1x128xf32>
    %240 = arith.addf %239, %10 : vector<1x128xf32>
    %cst_74 = arith.constant dense<0xFF800000> : vector<1xf32>
    %241 = vector.multi_reduction <maximumf>, %240, %cst_74 [1] : vector<1x128xf32> to vector<1xf32>
    %242 = vector.shape_cast %241 : vector<1xf32> to vector<1x1xf32>
    %243 = vector.broadcast %242 : vector<1x1xf32> to vector<1x128xf32>
    %244 = arith.subf %240, %243 : vector<1x128xf32>
    %245 = math.exp %244 : vector<1x128xf32>
    %cst_75 = arith.constant dense<0.000000e+00> : vector<1xf32>
    %246 = vector.multi_reduction <add>, %245, %cst_75 [1] : vector<1x128xf32> to vector<1xf32>
    %247 = vector.shape_cast %246 : vector<1xf32> to vector<1x1xf32>
    %248 = math.log %247 : vector<1x1xf32>
    %249 = vector.broadcast %248 : vector<1x1xf32> to vector<1x128xf32>
    %250 = arith.subf %244, %249 : vector<1x128xf32>
    %251 = arith.index_cast %c4_i32 : i32 to index
    %c0_76 = arith.constant 0 : index
    %252 = vector.load %arg8[%251, %c0_76] : memref<8x128xf32, #tpu.memory_space<vmem>>, vector<1x128xf32>
    tpu.vector_store %arg8[%251, %c0_76], %250 {strides = array<i32>} : memref<8x128xf32, #tpu.memory_space<vmem>>, vector<1x128xf32>,
    %c5_i32 = arith.constant 5 : i32
    %253 = arith.index_cast %c5_i32 : i32 to index
    %c0_77 = arith.constant 0 : index
    %254 = vector.load %arg11[%253, %c0_77] : memref<8x1024xf32, #tpu.memory_space<vmem>>, vector<1x1024xf32>
    %255 = arith.truncf %237 : vector<1x256xf32> to vector<1x256xbf16>
    %cst_78 = arith.constant dense<0.000000e+00> : vector<1x1024xf32>
    %256 = tpu.matmul %255, %8, %cst_78 {dimension_numbers = #tpu.dot_dimension_numbers<[1], [0], [0], [1], [0, 0, 1, 1], [], []>} : vector<1x256xbf16>, vector<256x1024xbf16>, vector<1x1024xf32> -> vector<1x1024xf32>
    %257 = arith.addf %254, %256 : vector<1x1024xf32>
    %258 = vector.extract_strided_slice %257 {offsets = [0, 0], sizes = [1, 256], strides = [1, 1]} : vector<1x1024xf32> to vector<1x256xf32>
    %cst_79 = arith.constant 0.000000e+00 : f32
    %259 = vector.broadcast %cst_79 : f32 to vector<1x256xf32>
    %260 = arith.subf %259, %258 : vector<1x256xf32>
    %261 = math.exp %260 : vector<1x256xf32>
    %cst_80 = arith.constant 1.000000e+00 : f32
    %262 = vector.broadcast %cst_80 : f32 to vector<1x256xf32>
    %263 = arith.addf %262, %261 : vector<1x256xf32>
    %264 = tpu.reciprocal %263 {approx = true} : vector<1x256xf32> -> vector<1x256xf32>
    %265 = vector.extract_strided_slice %257 {offsets = [0, 256], sizes = [1, 256], strides = [1, 1]} : vector<1x1024xf32> to vector<1x256xf32>
    %cst_81 = arith.constant 0.000000e+00 : f32
    %266 = vector.broadcast %cst_81 : f32 to vector<1x256xf32>
    %267 = arith.subf %266, %265 : vector<1x256xf32>
    %268 = math.exp %267 : vector<1x256xf32>
    %cst_82 = arith.constant 1.000000e+00 : f32
    %269 = vector.broadcast %cst_82 : f32 to vector<1x256xf32>
    %270 = arith.addf %269, %268 : vector<1x256xf32>
    %271 = tpu.reciprocal %270 {approx = true} : vector<1x256xf32> -> vector<1x256xf32>
    %272 = vector.extract_strided_slice %257 {offsets = [0, 512], sizes = [1, 256], strides = [1, 1]} : vector<1x1024xf32> to vector<1x256xf32>
    %273 = math.tanh %272 : vector<1x256xf32>
    %274 = vector.extract_strided_slice %257 {offsets = [0, 768], sizes = [1, 256], strides = [1, 1]} : vector<1x1024xf32> to vector<1x256xf32>
    %cst_83 = arith.constant 0.000000e+00 : f32
    %275 = vector.broadcast %cst_83 : f32 to vector<1x256xf32>
    %276 = arith.subf %275, %274 : vector<1x256xf32>
    %277 = math.exp %276 : vector<1x256xf32>
    %cst_84 = arith.constant 1.000000e+00 : f32
    %278 = vector.broadcast %cst_84 : f32 to vector<1x256xf32>
    %279 = arith.addf %278, %277 : vector<1x256xf32>
    %280 = tpu.reciprocal %279 {approx = true} : vector<1x256xf32> -> vector<1x256xf32>
    %281 = arith.mulf %271, %235 : vector<1x256xf32>
    %282 = arith.mulf %264, %273 : vector<1x256xf32>
    %283 = arith.addf %281, %282 : vector<1x256xf32>
    %284 = math.tanh %283 : vector<1x256xf32>
    %285 = arith.mulf %280, %284 : vector<1x256xf32>
    %286 = arith.truncf %285 : vector<1x256xf32> to vector<1x256xbf16>
    %cst_85 = arith.constant dense<0.000000e+00> : vector<1x128xf32>
    %287 = tpu.matmul %286, %9, %cst_85 {dimension_numbers = #tpu.dot_dimension_numbers<[1], [0], [0], [1], [0, 0, 1, 1], [], []>} : vector<1x256xbf16>, vector<256x128xbf16>, vector<1x128xf32> -> vector<1x128xf32>
    %288 = arith.addf %287, %10 : vector<1x128xf32>
    %cst_86 = arith.constant dense<0xFF800000> : vector<1xf32>
    %289 = vector.multi_reduction <maximumf>, %288, %cst_86 [1] : vector<1x128xf32> to vector<1xf32>
    %290 = vector.shape_cast %289 : vector<1xf32> to vector<1x1xf32>
    %291 = vector.broadcast %290 : vector<1x1xf32> to vector<1x128xf32>
    %292 = arith.subf %288, %291 : vector<1x128xf32>
    %293 = math.exp %292 : vector<1x128xf32>
    %cst_87 = arith.constant dense<0.000000e+00> : vector<1xf32>
    %294 = vector.multi_reduction <add>, %293, %cst_87 [1] : vector<1x128xf32> to vector<1xf32>
    %295 = vector.shape_cast %294 : vector<1xf32> to vector<1x1xf32>
    %296 = math.log %295 : vector<1x1xf32>
    %297 = vector.broadcast %296 : vector<1x1xf32> to vector<1x128xf32>
    %298 = arith.subf %292, %297 : vector<1x128xf32>
    %299 = arith.index_cast %c5_i32 : i32 to index
    %c0_88 = arith.constant 0 : index
    %300 = vector.load %arg8[%299, %c0_88] : memref<8x128xf32, #tpu.memory_space<vmem>>, vector<1x128xf32>
    tpu.vector_store %arg8[%299, %c0_88], %298 {strides = array<i32>} : memref<8x128xf32, #tpu.memory_space<vmem>>, vector<1x128xf32>,
    %c6_i32 = arith.constant 6 : i32
    %301 = arith.index_cast %c6_i32 : i32 to index
    %c0_89 = arith.constant 0 : index
    %302 = vector.load %arg11[%301, %c0_89] : memref<8x1024xf32, #tpu.memory_space<vmem>>, vector<1x1024xf32>
    %303 = arith.truncf %285 : vector<1x256xf32> to vector<1x256xbf16>
    %cst_90 = arith.constant dense<0.000000e+00> : vector<1x1024xf32>
    %304 = tpu.matmul %303, %8, %cst_90 {dimension_numbers = #tpu.dot_dimension_numbers<[1], [0], [0], [1], [0, 0, 1, 1], [], []>} : vector<1x256xbf16>, vector<256x1024xbf16>, vector<1x1024xf32> -> vector<1x1024xf32>
    %305 = arith.addf %302, %304 : vector<1x1024xf32>
    %306 = vector.extract_strided_slice %305 {offsets = [0, 0], sizes = [1, 256], strides = [1, 1]} : vector<1x1024xf32> to vector<1x256xf32>
    %cst_91 = arith.constant 0.000000e+00 : f32
    %307 = vector.broadcast %cst_91 : f32 to vector<1x256xf32>
    %308 = arith.subf %307, %306 : vector<1x256xf32>
    %309 = math.exp %308 : vector<1x256xf32>
    %cst_92 = arith.constant 1.000000e+00 : f32
    %310 = vector.broadcast %cst_92 : f32 to vector<1x256xf32>
    %311 = arith.addf %310, %309 : vector<1x256xf32>
    %312 = tpu.reciprocal %311 {approx = true} : vector<1x256xf32> -> vector<1x256xf32>
    %313 = vector.extract_strided_slice %305 {offsets = [0, 256], sizes = [1, 256], strides = [1, 1]} : vector<1x1024xf32> to vector<1x256xf32>
    %cst_93 = arith.constant 0.000000e+00 : f32
    %314 = vector.broadcast %cst_93 : f32 to vector<1x256xf32>
    %315 = arith.subf %314, %313 : vector<1x256xf32>
    %316 = math.exp %315 : vector<1x256xf32>
    %cst_94 = arith.constant 1.000000e+00 : f32
    %317 = vector.broadcast %cst_94 : f32 to vector<1x256xf32>
    %318 = arith.addf %317, %316 : vector<1x256xf32>
    %319 = tpu.reciprocal %318 {approx = true} : vector<1x256xf32> -> vector<1x256xf32>
    %320 = vector.extract_strided_slice %305 {offsets = [0, 512], sizes = [1, 256], strides = [1, 1]} : vector<1x1024xf32> to vector<1x256xf32>
    %321 = math.tanh %320 : vector<1x256xf32>
    %322 = vector.extract_strided_slice %305 {offsets = [0, 768], sizes = [1, 256], strides = [1, 1]} : vector<1x1024xf32> to vector<1x256xf32>
    %cst_95 = arith.constant 0.000000e+00 : f32
    %323 = vector.broadcast %cst_95 : f32 to vector<1x256xf32>
    %324 = arith.subf %323, %322 : vector<1x256xf32>
    %325 = math.exp %324 : vector<1x256xf32>
    %cst_96 = arith.constant 1.000000e+00 : f32
    %326 = vector.broadcast %cst_96 : f32 to vector<1x256xf32>
    %327 = arith.addf %326, %325 : vector<1x256xf32>
    %328 = tpu.reciprocal %327 {approx = true} : vector<1x256xf32> -> vector<1x256xf32>
    %329 = arith.mulf %319, %283 : vector<1x256xf32>
    %330 = arith.mulf %312, %321 : vector<1x256xf32>
    %331 = arith.addf %329, %330 : vector<1x256xf32>
    %332 = math.tanh %331 : vector<1x256xf32>
    %333 = arith.mulf %328, %332 : vector<1x256xf32>
    %334 = arith.truncf %333 : vector<1x256xf32> to vector<1x256xbf16>
    %cst_97 = arith.constant dense<0.000000e+00> : vector<1x128xf32>
    %335 = tpu.matmul %334, %9, %cst_97 {dimension_numbers = #tpu.dot_dimension_numbers<[1], [0], [0], [1], [0, 0, 1, 1], [], []>} : vector<1x256xbf16>, vector<256x128xbf16>, vector<1x128xf32> -> vector<1x128xf32>
    %336 = arith.addf %335, %10 : vector<1x128xf32>
    %cst_98 = arith.constant dense<0xFF800000> : vector<1xf32>
    %337 = vector.multi_reduction <maximumf>, %336, %cst_98 [1] : vector<1x128xf32> to vector<1xf32>
    %338 = vector.shape_cast %337 : vector<1xf32> to vector<1x1xf32>
    %339 = vector.broadcast %338 : vector<1x1xf32> to vector<1x128xf32>
    %340 = arith.subf %336, %339 : vector<1x128xf32>
    %341 = math.exp %340 : vector<1x128xf32>
    %cst_99 = arith.constant dense<0.000000e+00> : vector<1xf32>
    %342 = vector.multi_reduction <add>, %341, %cst_99 [1] : vector<1x128xf32> to vector<1xf32>
    %343 = vector.shape_cast %342 : vector<1xf32> to vector<1x1xf32>
    %344 = math.log %343 : vector<1x1xf32>
    %345 = vector.broadcast %344 : vector<1x1xf32> to vector<1x128xf32>
    %346 = arith.subf %340, %345 : vector<1x128xf32>
    %347 = arith.index_cast %c6_i32 : i32 to index
    %c0_100 = arith.constant 0 : index
    %348 = vector.load %arg8[%347, %c0_100] : memref<8x128xf32, #tpu.memory_space<vmem>>, vector<1x128xf32>
    tpu.vector_store %arg8[%347, %c0_100], %346 {strides = array<i32>} : memref<8x128xf32, #tpu.memory_space<vmem>>, vector<1x128xf32>,
    %c7_i32 = arith.constant 7 : i32
    %349 = arith.index_cast %c7_i32 : i32 to index
    %c0_101 = arith.constant 0 : index
    %350 = vector.load %arg11[%349, %c0_101] : memref<8x1024xf32, #tpu.memory_space<vmem>>, vector<1x1024xf32>
    %351 = arith.truncf %333 : vector<1x256xf32> to vector<1x256xbf16>
    %cst_102 = arith.constant dense<0.000000e+00> : vector<1x1024xf32>
    %352 = tpu.matmul %351, %8, %cst_102 {dimension_numbers = #tpu.dot_dimension_numbers<[1], [0], [0], [1], [0, 0, 1, 1], [], []>} : vector<1x256xbf16>, vector<256x1024xbf16>, vector<1x1024xf32> -> vector<1x1024xf32>
    %353 = arith.addf %350, %352 : vector<1x1024xf32>
    %354 = vector.extract_strided_slice %353 {offsets = [0, 0], sizes = [1, 256], strides = [1, 1]} : vector<1x1024xf32> to vector<1x256xf32>
    %cst_103 = arith.constant 0.000000e+00 : f32
    %355 = vector.broadcast %cst_103 : f32 to vector<1x256xf32>
    %356 = arith.subf %355, %354 : vector<1x256xf32>
    %357 = math.exp %356 : vector<1x256xf32>
    %cst_104 = arith.constant 1.000000e+00 : f32
    %358 = vector.broadcast %cst_104 : f32 to vector<1x256xf32>
    %359 = arith.addf %358, %357 : vector<1x256xf32>
    %360 = tpu.reciprocal %359 {approx = true} : vector<1x256xf32> -> vector<1x256xf32>
    %361 = vector.extract_strided_slice %353 {offsets = [0, 256], sizes = [1, 256], strides = [1, 1]} : vector<1x1024xf32> to vector<1x256xf32>
    %cst_105 = arith.constant 0.000000e+00 : f32
    %362 = vector.broadcast %cst_105 : f32 to vector<1x256xf32>
    %363 = arith.subf %362, %361 : vector<1x256xf32>
    %364 = math.exp %363 : vector<1x256xf32>
    %cst_106 = arith.constant 1.000000e+00 : f32
    %365 = vector.broadcast %cst_106 : f32 to vector<1x256xf32>
    %366 = arith.addf %365, %364 : vector<1x256xf32>
    %367 = tpu.reciprocal %366 {approx = true} : vector<1x256xf32> -> vector<1x256xf32>
    %368 = vector.extract_strided_slice %353 {offsets = [0, 512], sizes = [1, 256], strides = [1, 1]} : vector<1x1024xf32> to vector<1x256xf32>
    %369 = math.tanh %368 : vector<1x256xf32>
    %370 = vector.extract_strided_slice %353 {offsets = [0, 768], sizes = [1, 256], strides = [1, 1]} : vector<1x1024xf32> to vector<1x256xf32>
    %cst_107 = arith.constant 0.000000e+00 : f32
    %371 = vector.broadcast %cst_107 : f32 to vector<1x256xf32>
    %372 = arith.subf %371, %370 : vector<1x256xf32>
    %373 = math.exp %372 : vector<1x256xf32>
    %cst_108 = arith.constant 1.000000e+00 : f32
    %374 = vector.broadcast %cst_108 : f32 to vector<1x256xf32>
    %375 = arith.addf %374, %373 : vector<1x256xf32>
    %376 = tpu.reciprocal %375 {approx = true} : vector<1x256xf32> -> vector<1x256xf32>
    %377 = arith.mulf %367, %331 : vector<1x256xf32>
    %378 = arith.mulf %360, %369 : vector<1x256xf32>
    %379 = arith.addf %377, %378 : vector<1x256xf32>
    %380 = math.tanh %379 : vector<1x256xf32>
    %381 = arith.mulf %376, %380 : vector<1x256xf32>
    %382 = arith.truncf %381 : vector<1x256xf32> to vector<1x256xbf16>
    %cst_109 = arith.constant dense<0.000000e+00> : vector<1x128xf32>
    %383 = tpu.matmul %382, %9, %cst_109 {dimension_numbers = #tpu.dot_dimension_numbers<[1], [0], [0], [1], [0, 0, 1, 1], [], []>} : vector<1x256xbf16>, vector<256x128xbf16>, vector<1x128xf32> -> vector<1x128xf32>
    %384 = arith.addf %383, %10 : vector<1x128xf32>
    %cst_110 = arith.constant dense<0xFF800000> : vector<1xf32>
    %385 = vector.multi_reduction <maximumf>, %384, %cst_110 [1] : vector<1x128xf32> to vector<1xf32>
    %386 = vector.shape_cast %385 : vector<1xf32> to vector<1x1xf32>
    %387 = vector.broadcast %386 : vector<1x1xf32> to vector<1x128xf32>
    %388 = arith.subf %384, %387 : vector<1x128xf32>
    %389 = math.exp %388 : vector<1x128xf32>
    %cst_111 = arith.constant dense<0.000000e+00> : vector<1xf32>
    %390 = vector.multi_reduction <add>, %389, %cst_111 [1] : vector<1x128xf32> to vector<1xf32>
    %391 = vector.shape_cast %390 : vector<1xf32> to vector<1x1xf32>
    %392 = math.log %391 : vector<1x1xf32>
    %393 = vector.broadcast %392 : vector<1x1xf32> to vector<1x128xf32>
    %394 = arith.subf %388, %393 : vector<1x128xf32>
    %395 = arith.index_cast %c7_i32 : i32 to index
    %c0_112 = arith.constant 0 : index
    %396 = vector.load %arg8[%395, %c0_112] : memref<8x128xf32, #tpu.memory_space<vmem>>, vector<1x128xf32>
    tpu.vector_store %arg8[%395, %c0_112], %394 {strides = array<i32>} : memref<8x128xf32, #tpu.memory_space<vmem>>, vector<1x128xf32>,
    %c8_i32 = arith.constant 8 : i32
    %c0_113 = arith.constant 0 : index
    %c0_114 = arith.constant 0 : index
    %397 = vector.load %arg9[%c0_113, %c0_114] : memref<1x256xf32, #tpu.memory_space<vmem>>, vector<1x256xf32>
    tpu.vector_store %arg9[%c0_113, %c0_114], %381 {strides = array<i32>} : memref<1x256xf32, #tpu.memory_space<vmem>>, vector<1x256xf32>,
    %c0_115 = arith.constant 0 : index
    %c0_116 = arith.constant 0 : index
    %398 = vector.load %arg10[%c0_115, %c0_116] : memref<1x256xf32, #tpu.memory_space<vmem>>, vector<1x256xf32>
    tpu.vector_store %arg10[%c0_115, %c0_116], %379 {strides = array<i32>} : memref<1x256xf32, #tpu.memory_space<vmem>>, vector<1x256xf32>,
    return
  }
}

</mosaic_0001>

<llo_original>
// kernel: tpu_custom_call.1
$region0: #{tpu_custom_call.1}
  #allocation0 [shape = 'u32[]', space=smem, size = 0x4, offset = 0x4, fixed_abs, tag = 'smem constant byte address 0x4 - core index']
  #allocation1 [shape = 'u32[144,128]{1,0:T(1,128)}', space=vmem, size = 0x12000, scoped, tag = 'internal scratch']
  #allocation2 [shape = 'f32[8,1024]{1,0:T(8,128)}', space=vmem, size = 0x8000, scoped, tag = 'scratch operand']
  %s0 = inlined_call_operand.hbm [shape: f32[8,32], index: 0, kind: input, shape index: {}]
  %s1 = inlined_call_operand.hbm [shape: f32[1,256], index: 1, kind: input, shape index: {}]
  %s2 = inlined_call_operand.hbm [shape: f32[1,256], index: 2, kind: input, shape index: {}]
  %s3 = inlined_call_operand.hbm [shape: bf16[32,1024], index: 3, kind: input, shape index: {}]
  %s4 = inlined_call_operand.hbm [shape: bf16[256,1024], index: 4, kind: input, shape index: {}]
  %s5 = inlined_call_operand.vmem [shape: f32[1,1024], index: 5, kind: input, shape index: {}]
  %s6 = inlined_call_operand.hbm [shape: bf16[256,128], index: 6, kind: input, shape index: {}]
  %s7 = inlined_call_operand.vmem [shape: f32[1,128], index: 7, kind: input, shape index: {}]
  %s8 = inlined_call_operand.hbm [shape: f32[8,128], index: 8, kind: output, shape index: {0}]
  %s9 = inlined_call_operand.hbm [shape: f32[1,256], index: 9, kind: output, shape index: {1}]
  %s10 = inlined_call_operand.hbm [shape: f32[1,256], index: 10, kind: output, shape index: {2}]
  %11 = xla_tuple %s8, %s9, %s10
  %s12 = sld [smem:[#allocation0]]
  $region82: #{tpu_custom_call.1} parent=0
    _
  %s14 = ssub.s32 1, %s12
  %s15 = scalar_select 0, %s14, %s12
  $region1: #{tpu_custom_call.1} parent=0
    #allocation3 [shape = 'u8[4096]{0}', space=vmem, size = 0x1000, scoped, tag = 'input window, operand 0, single buffered']
    #allocation4 [shape = 's32[1]{0}', space=sflag, size = 0x4, scoped, tag = 'scoped memory for tpu_custom_call.1']
    #allocation5 [shape = 's32[1]{0}', space=sflag, size = 0x4, scoped, tag = 'scoped memory for tpu_custom_call.1']
    #allocation6 [shape = 'u8[1024]{0}', space=vmem, size = 0x400, scoped, tag = 'input window, operand 1, single buffered']
    #allocation7 [shape = 's32[1]{0}', space=sflag, size = 0x4, scoped, tag = 'scoped memory for tpu_custom_call.1']
    #allocation8 [shape = 'u8[1024]{0}', space=vmem, size = 0x400, scoped, tag = 'input window, operand 2, single buffered']
    #allocation9 [shape = 'u8[65536]{0}', space=vmem, size = 0x10000, scoped, tag = 'input window, operand 3, single buffered']
    #allocation10 [shape = 's32[1]{0}', space=sflag, size = 0x4, scoped, tag = 'scoped memory for tpu_custom_call.1']
    #allocation11 [shape = 'u8[524288]{0}', space=vmem, size = 0x80000, scoped, tag = 'input window, operand 4, single buffered']
    #allocation12 [shape = 'u8[65536]{0}', space=vmem, size = 0x10000, scoped, tag = 'input window, operand 6, single buffered']
    #allocation13 [shape = 's32[1]{0}', space=sflag, size = 0x4, scoped, tag = 'scoped memory for tpu_custom_call.1']
    #allocation14 [shape = 'u8[4096]{0}', space=vmem, size = 0x1000, scoped, tag = 'output window, operand 0, single buffered']
    #allocation15 [shape = 'u8[1024]{0}', space=vmem, size = 0x400, scoped, tag = 'output window, operand 1, single buffered']
    #allocation16 [shape = 's32[1]{0}', space=sflag, size = 0x4, scoped, tag = 'scoped memory for tpu_custom_call.1']
    #allocation17 [shape = 'u8[1024]{0}', space=vmem, size = 0x400, scoped, tag = 'output window, operand 2, single buffered']
    %16 = vsyncpa [#allocation4], 0
    %17 = vsyncpa [#allocation7], 0
    %18 = vsyncpa [#allocation10], 0
    %19 = vsyncpa [#allocation13], 0
    %20 = vsyncpa [#allocation5], 0
    %21 = vsyncpa [#allocation16], 0
    // Predicated region
    $region2: #{tpu_custom_call.1} parent=1 // pred_check
      _
    $region3: #{tpu_custom_call.1} parent=1 // pred_check_branch
      %23 = sbr.rel (0) target = $region5
    $region4: #{tpu_custom_call.1} parent=1 // pred_region
      %s25 = ssub.s32 128, 128
      %26 = vsyncadd [#allocation4], %s25
      %s28 = sshll.u32 [#allocation3], 4
      %s29 = int_to_ptr.vmem [resolvable:$true] %s28
      %31 = dma.hbm_to_vmem [thread:$0]  %s0, 128, %s29, [#allocation4]
    $region5: #{tpu_custom_call.1} parent=1 // pred_fallthru
      _
    // Predicated region
    $region6: #{tpu_custom_call.1} parent=1 // pred_check
      _
    $region7: #{tpu_custom_call.1} parent=1 // pred_check_branch
      %33 = sbr.rel (0) target = $region9
    $region8: #{tpu_custom_call.1} parent=1 // pred_region
      %s35 = ssub.s32 32, 32
      %36 = vsyncadd [#allocation7], %s35
      %s38 = sshll.u32 [#allocation6], 4
      %s39 = int_to_ptr.vmem [resolvable:$true] %s38
      %41 = dma.hbm_to_vmem [thread:$0]  %s1, 32, %s39, [#allocation7]
    $region9: #{tpu_custom_call.1} parent=1 // pred_fallthru
      _
    // Predicated region
    $region10: #{tpu_custom_call.1} parent=1 // pred_check
      _
    $region11: #{tpu_custom_call.1} parent=1 // pred_check_branch
      %43 = sbr.rel (0) target = $region13
    $region12: #{tpu_custom_call.1} parent=1 // pred_region
      %s45 = ssub.s32 32, 32
      %46 = vsyncadd [#allocation7], %s45
      %s48 = sshll.u32 [#allocation8], 4
      %s49 = int_to_ptr.vmem [resolvable:$true] %s48
      %51 = dma.hbm_to_vmem [thread:$0]  %s2, 32, %s49, [#allocation7]
    $region13: #{tpu_custom_call.1} parent=1 // pred_fallthru
      _
    // Predicated region
    $region14: #{tpu_custom_call.1} parent=1 // pred_check
      _
    $region15: #{tpu_custom_call.1} parent=1 // pred_check_branch
      %53 = sbr.rel (0) target = $region17
    $region16: #{tpu_custom_call.1} parent=1 // pred_region
      %s55 = ssub.s32 2048, 2048
      %56 = vsyncadd [#allocation10], %s55
      %s57 = sshll.u32 [#allocation9], 4
      %s58 = int_to_ptr.vmem [resolvable:$true] %s57
      %63 = dma.hbm_to_vmem [thread:$0]  %s3, 2048, %s58, [#allocation10], 512, 512, 32
    $region17: #{tpu_custom_call.1} parent=1 // pred_fallthru
      _
    // Predicated region
    $region18: #{tpu_custom_call.1} parent=1 // pred_check
      _
    $region19: #{tpu_custom_call.1} parent=1 // pred_check_branch
      %65 = sbr.rel (0) target = $region21
    $region20: #{tpu_custom_call.1} parent=1 // pred_region
      %s67 = ssub.s32 16384, 16384
      %68 = vsyncadd [#allocation10], %s67
      %s69 = sshll.u32 [#allocation11], 4
      %s70 = int_to_ptr.vmem [resolvable:$true] %s69
      %75 = dma.hbm_to_vmem [thread:$0]  %s4, 16384, %s70, [#allocation10], 512, 512, 32
    $region21: #{tpu_custom_call.1} parent=1 // pred_fallthru
      _
    // Predicated region
    $region22: #{tpu_custom_call.1} parent=1 // pred_check
      _
    $region23: #{tpu_custom_call.1} parent=1 // pred_check_branch
      %77 = sbr.rel (0) target = $region25
    $region24: #{tpu_custom_call.1} parent=1 // pred_region
      _
    $region25: #{tpu_custom_call.1} parent=1 // pred_fallthru
      _
    // Predicated region
    $region26: #{tpu_custom_call.1} parent=1 // pred_check
      _
    $region27: #{tpu_custom_call.1} parent=1 // pred_check_branch
      %79 = sbr.rel (0) target = $region29
    $region28: #{tpu_custom_call.1} parent=1 // pred_region
      %s81 = ssub.s32 2048, 2048
      %82 = vsyncadd [#allocation13], %s81
      %s83 = sshll.u32 [#allocation12], 4
      %s84 = int_to_ptr.vmem [resolvable:$true] %s83
      %89 = dma.hbm_to_vmem [thread:$0]  %s6, 2048, %s84, [#allocation13], 64, 64, 4
    $region29: #{tpu_custom_call.1} parent=1 // pred_fallthru
      _
    // Predicated region
    $region30: #{tpu_custom_call.1} parent=1 // pred_check
      _
    $region31: #{tpu_custom_call.1} parent=1 // pred_check_branch
      %91 = sbr.rel (0) target = $region33
    $region32: #{tpu_custom_call.1} parent=1 // pred_region
      _
    $region33: #{tpu_custom_call.1} parent=1 // pred_fallthru
      _
    // Predicated region
    $region34: #{tpu_custom_call.1} parent=1 // pred_check
      _
    $region35: #{tpu_custom_call.1} parent=1 // pred_check_branch
      %93 = sbr.rel (0) target = $region37
    $region36: #{tpu_custom_call.1} parent=1 // pred_region
      %94 = dma.done [#allocation4], 128
    $region37: #{tpu_custom_call.1} parent=1 // pred_fallthru
      _
    // Predicated region
    $region38: #{tpu_custom_call.1} parent=1 // pred_check
      _
    $region39: #{tpu_custom_call.1} parent=1 // pred_check_branch
      %96 = sbr.rel (0) target = $region41
    $region40: #{tpu_custom_call.1} parent=1 // pred_region
      %97 = dma.done [#allocation7], 32
    $region41: #{tpu_custom_call.1} parent=1 // pred_fallthru
      _
    // Predicated region
    $region42: #{tpu_custom_call.1} parent=1 // pred_check
      _
    $region43: #{tpu_custom_call.1} parent=1 // pred_check_branch
      %99 = sbr.rel (0) target = $region45
    $region44: #{tpu_custom_call.1} parent=1 // pred_region
      %100 = dma.done [#allocation7], 32
    $region45: #{tpu_custom_call.1} parent=1 // pred_fallthru
      _
    // Predicated region
    $region46: #{tpu_custom_call.1} parent=1 // pred_check
      _
    $region47: #{tpu_custom_call.1} parent=1 // pred_check_branch
      %102 = sbr.rel (0) target = $region49
    $region48: #{tpu_custom_call.1} parent=1 // pred_region
      %103 = dma.done [#allocation10], 2048
    $region49: #{tpu_custom_call.1} parent=1 // pred_fallthru
      _
    // Predicated region
    $region50: #{tpu_custom_call.1} parent=1 // pred_check
      _
    $region51: #{tpu_custom_call.1} parent=1 // pred_check_branch
      %105 = sbr.rel (0) target = $region53
    $region52: #{tpu_custom_call.1} parent=1 // pred_region
      %106 = dma.done [#allocation10], 16384
    $region53: #{tpu_custom_call.1} parent=1 // pred_fallthru
      _
    // Predicated region
    $region54: #{tpu_custom_call.1} parent=1 // pred_check
      _
    $region55: #{tpu_custom_call.1} parent=1 // pred_check_branch
      %108 = sbr.rel (0) target = $region57
    $region56: #{tpu_custom_call.1} parent=1 // pred_region
      %109 = dma.done [#allocation13], 2048
    $region57: #{tpu_custom_call.1} parent=1 // pred_fallthru
      _
    %v111 = vld [vmem:[#allocation3] sm:$0xff]
    %v112 = vpack.c.bf16 %v111, %v111
    %v113 = vld [vmem:[#allocation9] sm:$0xff]
    %v114 = vld [vmem:[#allocation9 + $0x8] sm:$0xff]
    %v115 = vld [vmem:[#allocation9 + $0x10] sm:$0xff]
    %v116 = vld [vmem:[#allocation9 + $0x18] sm:$0xff]
    %v117 = vld [vmem:[#allocation9 + $0x20] sm:$0xff]
    %v118 = vld [vmem:[#allocation9 + $0x28] sm:$0xff]
    %v119 = vld [vmem:[#allocation9 + $0x30] sm:$0xff]
    %v120 = vld [vmem:[#allocation9 + $0x38] sm:$0xff]
    %v121 = vld [vmem:[#allocation9 + $0x40] sm:$0xff]
    %v122 = vld [vmem:[#allocation9 + $0x48] sm:$0xff]
    %v123 = vld [vmem:[#allocation9 + $0x50] sm:$0xff]
    %v124 = vld [vmem:[#allocation9 + $0x58] sm:$0xff]
    %v125 = vld [vmem:[#allocation9 + $0x60] sm:$0xff]
    %v126 = vld [vmem:[#allocation9 + $0x68] sm:$0xff]
    %v127 = vld [vmem:[#allocation9 + $0x70] sm:$0xff]
    %v128 = vld [vmem:[#allocation9 + $0x78] sm:$0xff]
    %v129 = vld [vmem:[%s5] sm:$0xff]
    %v131 = vlaneseq
    %v132 = vshrl.u32 %v131, 7
    %v133 = vsub.s32 0, %v132
    %v134 = vrot.slane %v129, %v133
    %v135 = vlaneseq
    %v136 = vshrl.u32 %v135, 7
    %v137 = vsub.s32 1, %v136
    %v138 = vrot.slane %v129, %v137
    %v139 = vlaneseq
    %v140 = vshrl.u32 %v139, 7
    %v141 = vsub.s32 2, %v140
    %v142 = vrot.slane %v129, %v141
    %v143 = vlaneseq
    %v144 = vshrl.u32 %v143, 7
    %v145 = vsub.s32 3, %v144
    %v146 = vrot.slane %v129, %v145
    %v147 = vlaneseq
    %v148 = vshrl.u32 %v147, 7
    %v149 = vsub.s32 4, %v148
    %v150 = vrot.slane %v129, %v149
    %v151 = vlaneseq
    %v152 = vshrl.u32 %v151, 7
    %v153 = vsub.s32 5, %v152
    %v154 = vrot.slane %v129, %v153
    %v155 = vlaneseq
    %v156 = vshrl.u32 %v155, 7
    %v157 = vsub.s32 6, %v156
    %v158 = vrot.slane %v129, %v157
    %v159 = vlaneseq
    %v160 = vshrl.u32 %v159, 7
    %v161 = vsub.s32 7, %v160
    %v162 = vrot.slane %v129, %v161
    %v187 = vunpack.c.l.b16 %v113
    %v188 = vunpack.c.h.b16 %v113
    %v189 = vunpack.c.l.b16 %v114
    %v190 = vunpack.c.h.b16 %v114
    %v191 = vunpack.c.l.b16 %v115
    %v192 = vunpack.c.h.b16 %v115
    %v193 = vunpack.c.l.b16 %v116
    %v194 = vunpack.c.h.b16 %v116
    %v195 = vunpack.c.l.b16 %v117
    %v196 = vunpack.c.h.b16 %v117
    %v197 = vunpack.c.l.b16 %v118
    %v198 = vunpack.c.h.b16 %v118
    %v199 = vunpack.c.l.b16 %v119
    %v200 = vunpack.c.h.b16 %v119
    %v201 = vunpack.c.l.b16 %v120
    %v202 = vunpack.c.h.b16 %v120
    %v203 = vunpack.c.l.b16 %v121
    %v204 = vunpack.c.h.b16 %v121
    %v205 = vunpack.c.l.b16 %v122
    %v206 = vunpack.c.h.b16 %v122
    %v207 = vunpack.c.l.b16 %v123
    %v208 = vunpack.c.h.b16 %v123
    %v209 = vunpack.c.l.b16 %v124
    %v210 = vunpack.c.h.b16 %v124
    %v211 = vunpack.c.l.b16 %v125
    %v212 = vunpack.c.h.b16 %v125
    %v213 = vunpack.c.l.b16 %v126
    %v214 = vunpack.c.h.b16 %v126
    %v215 = vunpack.c.l.b16 %v127
    %v216 = vunpack.c.h.b16 %v127
    %v217 = vunpack.c.l.b16 %v128
    %v218 = vunpack.c.h.b16 %v128
    %v219 = vpack.c.b16 %v195, %v187
    %v220 = vpack.c.b16 %v196, %v188
    %v221 = vpack.c.b16 %v197, %v189
    %v222 = vpack.c.b16 %v198, %v190
    %v223 = vpack.c.b16 %v199, %v191
    %v224 = vpack.c.b16 %v200, %v192
    %v225 = vpack.c.b16 %v201, %v193
    %v226 = vpack.c.b16 %v202, %v194
    %v227 = vpack.c.b16 %v211, %v203
    %v228 = vpack.c.b16 %v212, %v204
    %v229 = vpack.c.b16 %v213, %v205
    %v230 = vpack.c.b16 %v214, %v206
    %v231 = vpack.c.b16 %v215, %v207
    %v232 = vpack.c.b16 %v216, %v208
    %v233 = vpack.c.b16 %v217, %v209
    %v234 = vpack.c.b16 %v218, %v210
    %vm251 = vcmask 261120
    %v253 = vsel %vm251, %v112, 0
    %255 = vmatprep.subr.bf16.mxu0 0
    %256 = vmatpush1.bf16.msra.mxu0 0
    %257 = vmatprep.subr.bf16.mxu0 0
    %258 = vmatpush1.bf16.msra.mxu0 0
    %259 = vmatprep.subr.bf16.mxu0 0
    %260 = vmatpush1.bf16.msra.mxu0 0
    %261 = vmatprep.subr.bf16.mxu0 0
    %262 = vmatpush1.bf16.msra.mxu0 0
    %263 = vmatprep.subr.bf16.mxu0 0
    %264 = vmatpush1.bf16.msra.mxu0 0
    %265 = vmatprep.subr.bf16.mxu0 0
    %266 = vmatpush1.bf16.msra.mxu0 0
    %267 = vmatprep.subr.bf16.mxu0 %v228
    %268 = vmatpush1.bf16.msra.mxu0 %v227
    %269 = vmatprep.subr.bf16.mxu0 %v220
    %270 = vmatpush1.bf16.msra.mxu0 %v219
    %271 = vmatprep.subr.bf16.mxu0 0
    %272 = vmatpush2.bf16.msra.mxu0 0
    %273 = vmatprep.subr.bf16.mxu0 0
    %274 = vmatpush2.bf16.msra.mxu0 0
    %275 = vmatprep.subr.bf16.mxu0 0
    %276 = vmatpush2.bf16.msra.mxu0 0
    %277 = vmatprep.subr.bf16.mxu0 0
    %278 = vmatpush2.bf16.msra.mxu0 0
    %279 = vmatprep.subr.bf16.mxu0 0
    %280 = vmatpush2.bf16.msra.mxu0 0
    %281 = vmatprep.subr.bf16.mxu0 0
    %282 = vmatpush2.bf16.msra.mxu0 0
    %283 = vmatprep.subr.bf16.mxu0 0
    %284 = vmatpush2.bf16.msra.mxu0 0
    %285 = vmatprep.subr.bf16.mxu0 0
    %286 = vmatpush2.bf16.msra.mxu0 0
    %287 = vmatprep.mubr.bf16.mxu0 0
    %288 = vmatmul.mubr.bf16.gmra.mxu0 %v253
    %v289 = vpop.f32.mrf.mxu0
    %v290 = vadd.f32 %v134, %v289
    %v291 = vpop.f32.mrf.mxu0
    %v292 = vadd.f32 %v138, %v291
    %v293 = vpop.f32.mrf.mxu0
    %v294 = vpop.f32.mrf.mxu0
    %295 = vdwg.mxu0
    %296 = vmatprep.subr.bf16.mxu0 0
    %297 = vmatpush1.bf16.msra.mxu0 0
    %298 = vmatprep.subr.bf16.mxu0 0
    %299 = vmatpush1.bf16.msra.mxu0 0
    %300 = vmatprep.subr.bf16.mxu0 0
    %301 = vmatpush1.bf16.msra.mxu0 0
    %302 = vmatprep.subr.bf16.mxu0 0
    %303 = vmatpush1.bf16.msra.mxu0 0
    %304 = vmatprep.subr.bf16.mxu0 0
    %305 = vmatpush1.bf16.msra.mxu0 0
    %306 = vmatprep.subr.bf16.mxu0 0
    %307 = vmatpush1.bf16.msra.mxu0 0
    %308 = vmatprep.subr.bf16.mxu0 %v230
    %309 = vmatpush1.bf16.msra.mxu0 %v229
    %310 = vmatprep.subr.bf16.mxu0 %v222
    %311 = vmatpush1.bf16.msra.mxu0 %v221
    %312 = vmatprep.subr.bf16.mxu0 0
    %313 = vmatpush2.bf16.msra.mxu0 0
    %314 = vmatprep.subr.bf16.mxu0 0
    %315 = vmatpush2.bf16.msra.mxu0 0
    %316 = vmatprep.subr.bf16.mxu0 0
    %317 = vmatpush2.bf16.msra.mxu0 0
    %318 = vmatprep.subr.bf16.mxu0 0
    %319 = vmatpush2.bf16.msra.mxu0 0
    %320 = vmatprep.subr.bf16.mxu0 0
    %321 = vmatpush2.bf16.msra.mxu0 0
    %322 = vmatprep.subr.bf16.mxu0 0
    %323 = vmatpush2.bf16.msra.mxu0 0
    %324 = vmatprep.subr.bf16.mxu0 0
    %325 = vmatpush2.bf16.msra.mxu0 0
    %326 = vmatprep.subr.bf16.mxu0 0
    %327 = vmatpush2.bf16.msra.mxu0 0
    %328 = vmatprep.mubr.bf16.mxu0 0
    %329 = vmatmul.mubr.bf16.gmra.mxu0 %v253
    %v330 = vpop.f32.mrf.mxu0
    %v331 = vadd.f32 %v142, %v330
    %v332 = vpop.f32.mrf.mxu0
    %v333 = vadd.f32 %v146, %v332
    %v334 = vpop.f32.mrf.mxu0
    %v335 = vpop.f32.mrf.mxu0
    %336 = vdwg.mxu0
    %337 = vmatprep.subr.bf16.mxu0 0
    %338 = vmatpush1.bf16.msra.mxu0 0
    %339 = vmatprep.subr.bf16.mxu0 0
    %340 = vmatpush1.bf16.msra.mxu0 0
    %341 = vmatprep.subr.bf16.mxu0 0
    %342 = vmatpush1.bf16.msra.mxu0 0
    %343 = vmatprep.subr.bf16.mxu0 0
    %344 = vmatpush1.bf16.msra.mxu0 0
    %345 = vmatprep.subr.bf16.mxu0 0
    %346 = vmatpush1.bf16.msra.mxu0 0
    %347 = vmatprep.subr.bf16.mxu0 0
    %348 = vmatpush1.bf16.msra.mxu0 0
    %349 = vmatprep.subr.bf16.mxu0 %v232
    %350 = vmatpush1.bf16.msra.mxu0 %v231
    %351 = vmatprep.subr.bf16.mxu0 %v224
    %352 = vmatpush1.bf16.msra.mxu0 %v223
    %353 = vmatprep.subr.bf16.mxu0 0
    %354 = vmatpush2.bf16.msra.mxu0 0
    %355 = vmatprep.subr.bf16.mxu0 0
    %356 = vmatpush2.bf16.msra.mxu0 0
    %357 = vmatprep.subr.bf16.mxu0 0
    %358 = vmatpush2.bf16.msra.mxu0 0
    %359 = vmatprep.subr.bf16.mxu0 0
    %360 = vmatpush2.bf16.msra.mxu0 0
    %361 = vmatprep.subr.bf16.mxu0 0
    %362 = vmatpush2.bf16.msra.mxu0 0
    %363 = vmatprep.subr.bf16.mxu0 0
    %364 = vmatpush2.bf16.msra.mxu0 0
    %365 = vmatprep.subr.bf16.mxu0 0
    %366 = vmatpush2.bf16.msra.mxu0 0
    %367 = vmatprep.subr.bf16.mxu0 0
    %368 = vmatpush2.bf16.msra.mxu0 0
    %369 = vmatprep.mubr.bf16.mxu0 0
    %370 = vmatmul.mubr.bf16.gmra.mxu0 %v253
    %v371 = vpop.f32.mrf.mxu0
    %v372 = vadd.f32 %v150, %v371
    %v373 = vpop.f32.mrf.mxu0
    %v374 = vadd.f32 %v154, %v373
    %v375 = vpop.f32.mrf.mxu0
    %v376 = vpop.f32.mrf.mxu0
    %377 = vdwg.mxu0
    %378 = vmatprep.subr.bf16.mxu0 0
    %379 = vmatpush1.bf16.msra.mxu0 0
    %380 = vmatprep.subr.bf16.mxu0 0
    %381 = vmatpush1.bf16.msra.mxu0 0
    %382 = vmatprep.subr.bf16.mxu0 0
    %383 = vmatpush1.bf16.msra.mxu0 0
    %384 = vmatprep.subr.bf16.mxu0 0
    %385 = vmatpush1.bf16.msra.mxu0 0
    %386 = vmatprep.subr.bf16.mxu0 0
    %387 = vmatpush1.bf16.msra.mxu0 0
    %388 = vmatprep.subr.bf16.mxu0 0
    %389 = vmatpush1.bf16.msra.mxu0 0
    %390 = vmatprep.subr.bf16.mxu0 %v234
    %391 = vmatpush1.bf16.msra.mxu0 %v233
    %392 = vmatprep.subr.bf16.mxu0 %v226
    %393 = vmatpush1.bf16.msra.mxu0 %v225
    %394 = vmatprep.subr.bf16.mxu0 0
    %395 = vmatpush2.bf16.msra.mxu0 0
    %396 = vmatprep.subr.bf16.mxu0 0
    %397 = vmatpush2.bf16.msra.mxu0 0
    %398 = vmatprep.subr.bf16.mxu0 0
    %399 = vmatpush2.bf16.msra.mxu0 0
    %400 = vmatprep.subr.bf16.mxu0 0
    %401 = vmatpush2.bf16.msra.mxu0 0
    %402 = vmatprep.subr.bf16.mxu0 0
    %403 = vmatpush2.bf16.msra.mxu0 0
    %404 = vmatprep.subr.bf16.mxu0 0
    %405 = vmatpush2.bf16.msra.mxu0 0
    %406 = vmatprep.subr.bf16.mxu0 0
    %407 = vmatpush2.bf16.msra.mxu0 0
    %408 = vmatprep.subr.bf16.mxu0 0
    %409 = vmatpush2.bf16.msra.mxu0 0
    %410 = vmatprep.mubr.bf16.mxu0 0
    %411 = vmatmul.mubr.bf16.gmra.mxu0 %v253
    %v412 = vpop.f32.mrf.mxu0
    %v413 = vadd.f32 %v158, %v412
    %v414 = vpop.f32.mrf.mxu0
    %v415 = vadd.f32 %v162, %v414
    %v416 = vpop.f32.mrf.mxu0
    %v417 = vpop.f32.mrf.mxu0
    %418 = vdwg.mxu0
    %419 = vst [vmem:[#allocation2] sm:$0xff] %v290
    %420 = vst [vmem:[#allocation2 + $0x8] sm:$0xff] %v292
    %421 = vst [vmem:[#allocation2 + $0x10] sm:$0xff] %v331
    %422 = vst [vmem:[#allocation2 + $0x18] sm:$0xff] %v333
    %423 = vst [vmem:[#allocation2 + $0x20] sm:$0xff] %v372
    %424 = vst [vmem:[#allocation2 + $0x28] sm:$0xff] %v374
    %425 = vst [vmem:[#allocation2 + $0x30] sm:$0xff] %v413
    %426 = vst [vmem:[#allocation2 + $0x38] sm:$0xff] %v415
    %v427 = vld [vmem:[#allocation11] sm:$0xff]
    %v428 = vld [vmem:[#allocation11 + $0x8] sm:$0xff]
    %v429 = vld [vmem:[#allocation11 + $0x10] sm:$0xff]
    %v430 = vld [vmem:[#allocation11 + $0x18] sm:$0xff]
    %v431 = vld [vmem:[#allocation11 + $0x20] sm:$0xff]
    %v432 = vld [vmem:[#allocation11 + $0x28] sm:$0xff]
    %v433 = vld [vmem:[#allocation11 + $0x30] sm:$0xff]
    %v434 = vld [vmem:[#allocation11 + $0x38] sm:$0xff]
    %v435 = vld [vmem:[#allocation11 + $0x40] sm:$0xff]
    %v436 = vld [vmem:[#allocation11 + $0x48] sm:$0xff]
    %v437 = vld [vmem:[#allocation11 + $0x50] sm:$0xff]
    %v438 = vld [vmem:[#allocation11 + $0x58] sm:$0xff]
    %v439 = vld [vmem:[#allocation11 + $0x60] sm:$0xff]
    %v440 = vld [vmem:[#allocation11 + $0x68] sm:$0xff]
    %v441 = vld [vmem:[#allocation11 + $0x70] sm:$0xff]
    %v442 = vld [vmem:[#allocation11 + $0x78] sm:$0xff]
    %v443 = vld [vmem:[#allocation11 + $0x80] sm:$0xff]
    %v444 = vld [vmem:[#allocation11 + $0x88] sm:$0xff]
    %v445 = vld [vmem:[#allocation11 + $0x90] sm:$0xff]
    %v446 = vld [vmem:[#allocation11 + $0x98] sm:$0xff]
    %v447 = vld [vmem:[#allocation11 + $0xa0] sm:$0xff]
    %v448 = vld [vmem:[#allocation11 + $0xa8] sm:$0xff]
    %v449 = vld [vmem:[#allocation11 + $0xb0] sm:$0xff]
    %v450 = vld [vmem:[#allocation11 + $0xb8] sm:$0xff]
    %v451 = vld [vmem:[#allocation11 + $0xc0] sm:$0xff]
    %v452 = vld [vmem:[#allocation11 + $0xc8] sm:$0xff]
    %v453 = vld [vmem:[#allocation11 + $0xd0] sm:$0xff]
    %v454 = vld [vmem:[#allocation11 + $0xd8] sm:$0xff]
    %v455 = vld [vmem:[#allocation11 + $0xe0] sm:$0xff]
    %v456 = vld [vmem:[#allocation11 + $0xe8] sm:$0xff]
    %v457 = vld [vmem:[#allocation11 + $0xf0] sm:$0xff]
    %v458 = vld [vmem:[#allocation11 + $0xf8] sm:$0xff]
    %v459 = vld [vmem:[#allocation11 + $0x100] sm:$0xff]
    %v460 = vld [vmem:[#allocation11 + $0x108] sm:$0xff]
    %v461 = vld [vmem:[#allocation11 + $0x110] sm:$0xff]
    %v462 = vld [vmem:[#allocation11 + $0x118] sm:$0xff]
    %v463 = vld [vmem:[#allocation11 + $0x120] sm:$0xff]
    %v464 = vld [vmem:[#allocation11 + $0x128] sm:$0xff]
    %v465 = vld [vmem:[#allocation11 + $0x130] sm:$0xff]
    %v466 = vld [vmem:[#allocation11 + $0x138] sm:$0xff]
    %v467 = vld [vmem:[#allocation11 + $0x140] sm:$0xff]
    %v468 = vld [vmem:[#allocation11 + $0x148] sm:$0xff]
    %v469 = vld [vmem:[#allocation11 + $0x150] sm:$0xff]
    %v470 = vld [vmem:[#allocation11 + $0x158] sm:$0xff]
    %v471 = vld [vmem:[#allocation11 + $0x160] sm:$0xff]
    %v472 = vld [vmem:[#allocation11 + $0x168] sm:$0xff]
    %v473 = vld [vmem:[#allocation11 + $0x170] sm:$0xff]
    %v474 = vld [vmem:[#allocation11 + $0x178] sm:$0xff]
    %v475 = vld [vmem:[#allocation11 + $0x180] sm:$0xff]
    %v476 = vld [vmem:[#allocation11 + $0x188] sm:$0xff]
    %v477 = vld [vmem:[#allocation11 + $0x190] sm:$0xff]
    %v478 = vld [vmem:[#allocation11 + $0x198] sm:$0xff]
    %v479 = vld [vmem:[#allocation11 + $0x1a0] sm:$0xff]
    %v480 = vld [vmem:[#allocation11 + $0x1a8] sm:$0xff]
    %v481 = vld [vmem:[#allocation11 + $0x1b0] sm:$0xff]
    %v482 = vld [vmem:[#allocation11 + $0x1b8] sm:$0xff]
    %v483 = vld [vmem:[#allocation11 + $0x1c0] sm:$0xff]
    %v484 = vld [vmem:[#allocation11 + $0x1c8] sm:$0xff]
    %v485 = vld [vmem:[#allocation11 + $0x1d0] sm:$0xff]
    %v486 = vld [vmem:[#allocation11 + $0x1d8] sm:$0xff]
    %v487 = vld [vmem:[#allocation11 + $0x1e0] sm:$0xff]
    %v488 = vld [vmem:[#allocation11 + $0x1e8] sm:$0xff]
    %v489 = vld [vmem:[#allocation11 + $0x1f0] sm:$0xff]
    %v490 = vld [vmem:[#allocation11 + $0x1f8] sm:$0xff]
    %v491 = vld [vmem:[#allocation11 + $0x200] sm:$0xff]
    %v492 = vld [vmem:[#allocation11 + $0x208] sm:$0xff]
    %v493 = vld [vmem:[#allocation11 + $0x210] sm:$0xff]
    %v494 = vld [vmem:[#allocation11 + $0x218] sm:$0xff]
    %v495 = vld [vmem:[#allocation11 + $0x220] sm:$0xff]
    %v496 = vld [vmem:[#allocation11 + $0x228] sm:$0xff]
    %v497 = vld [vmem:[#allocation11 + $0x230] sm:$0xff]
    %v498 = vld [vmem:[#allocation11 + $0x238] sm:$0xff]
    %v499 = vld [vmem:[#allocation11 + $0x240] sm:$0xff]
    %v500 = vld [vmem:[#allocation11 + $0x248] sm:$0xff]
    %v501 = vld [vmem:[#allocation11 + $0x250] sm:$0xff]
    %v502 = vld [vmem:[#allocation11 + $0x258] sm:$0xff]
    %v503 = vld [vmem:[#allocation11 + $0x260] sm:$0xff]
    %v504 = vld [vmem:[#allocation11 + $0x268] sm:$0xff]
    %v505 = vld [vmem:[#allocation11 + $0x270] sm:$0xff]
    %v506 = vld [vmem:[#allocation11 + $0x278] sm:$0xff]
    %v507 = vld [vmem:[#allocation11 + $0x280] sm:$0xff]
    %v508 = vld [vmem:[#allocation11 + $0x288] sm:$0xff]
    %v509 = vld [vmem:[#allocation11 + $0x290] sm:$0xff]
    %v510 = vld [vmem:[#allocation11 + $0x298] sm:$0xff]
    %v511 = vld [vmem:[#allocation11 + $0x2a0] sm:$0xff]
    %v512 = vld [vmem:[#allocation11 + $0x2a8] sm:$0xff]
    %v513 = vld [vmem:[#allocation11 + $0x2b0] sm:$0xff]
    %v514 = vld [vmem:[#allocation11 + $0x2b8] sm:$0xff]
    %v515 = vld [vmem:[#allocation11 + $0x2c0] sm:$0xff]
    %v516 = vld [vmem:[#allocation11 + $0x2c8] sm:$0xff]
    %v517 = vld [vmem:[#allocation11 + $0x2d0] sm:$0xff]
    %v518 = vld [vmem:[#allocation11 + $0x2d8] sm:$0xff]
    %v519 = vld [vmem:[#allocation11 + $0x2e0] sm:$0xff]
    %v520 = vld [vmem:[#allocation11 + $0x2e8] sm:$0xff]
    %v521 = vld [vmem:[#allocation11 + $0x2f0] sm:$0xff]
    %v522 = vld [vmem:[#allocation11 + $0x2f8] sm:$0xff]
    %v523 = vld [vmem:[#allocation11 + $0x300] sm:$0xff]
    %v524 = vld [vmem:[#allocation11 + $0x308] sm:$0xff]
    %v525 = vld [vmem:[#allocation11 + $0x310] sm:$0xff]
    %v526 = vld [vmem:[#allocation11 + $0x318] sm:$0xff]
    %v527 = vld [vmem:[#allocation11 + $0x320] sm:$0xff]
    %v528 = vld [vmem:[#allocation11 + $0x328] sm:$0xff]
    %v529 = vld [vmem:[#allocation11 + $0x330] sm:$0xff]
    %v530 = vld [vmem:[#allocation11 + $0x338] sm:$0xff]
    %v531 = vld [vmem:[#allocation11 + $0x340] sm:$0xff]
    %v532 = vld [vmem:[#allocation11 + $0x348] sm:$0xff]
    %v533 = vld [vmem:[#allocation11 + $0x350] sm:$0xff]
    %v534 = vld [vmem:[#allocation11 + $0x358] sm:$0xff]
    %v535 = vld [vmem:[#allocation11 + $0x360] sm:$0xff]
    %v536 = vld [vmem:[#allocation11 + $0x368] sm:$0xff]
    %v537 = vld [vmem:[#allocation11 + $0x370] sm:$0xff]
    %v538 = vld [vmem:[#allocation11 + $0x378] sm:$0xff]
    %v539 = vld [vmem:[#allocation11 + $0x380] sm:$0xff]
    %v540 = vld [vmem:[#allocation11 + $0x388] sm:$0xff]
    %v541 = vld [vmem:[#allocation11 + $0x390] sm:$0xff]
    %v542 = vld [vmem:[#allocation11 + $0x398] sm:$0xff]
    %v543 = vld [vmem:[#allocation11 + $0x3a0] sm:$0xff]
    %v544 = vld [vmem:[#allocation11 + $0x3a8] sm:$0xff]
    %v545 = vld [vmem:[#allocation11 + $0x3b0] sm:$0xff]
    %v546 = vld [vmem:[#allocation11 + $0x3b8] sm:$0xff]
    %v547 = vld [vmem:[#allocation11 + $0x3c0] sm:$0xff]
    %v548 = vld [vmem:[#allocation11 + $0x3c8] sm:$0xff]
    %v549 = vld [vmem:[#allocation11 + $0x3d0] sm:$0xff]
    %v550 = vld [vmem:[#allocation11 + $0x3d8] sm:$0xff]
    %v551 = vld [vmem:[#allocation11 + $0x3e0] sm:$0xff]
    %v552 = vld [vmem:[#allocation11 + $0x3e8] sm:$0xff]
    %v553 = vld [vmem:[#allocation11 + $0x3f0] sm:$0xff]
    %v554 = vld [vmem:[#allocation11 + $0x3f8] sm:$0xff]
    %v555 = vld [vmem:[#allocation12] sm:$0xf]
    %v556 = vld [vmem:[#allocation12 + $0x4] sm:$0xf]
    %v557 = vld [vmem:[#allocation12 + $0x8] sm:$0xf]
    %v558 = vld [vmem:[#allocation12 + $0xc] sm:$0xf]
    %v559 = vld [vmem:[#allocation12 + $0x10] sm:$0xf]
    %v560 = vld [vmem:[#allocation12 + $0x14] sm:$0xf]
    %v561 = vld [vmem:[#allocation12 + $0x18] sm:$0xf]
    %v562 = vld [vmem:[#allocation12 + $0x1c] sm:$0xf]
    %v563 = vld [vmem:[#allocation12 + $0x20] sm:$0xf]
    %v564 = vld [vmem:[#allocation12 + $0x24] sm:$0xf]
    %v565 = vld [vmem:[#allocation12 + $0x28] sm:$0xf]
    %v566 = vld [vmem:[#allocation12 + $0x2c] sm:$0xf]
    %v567 = vld [vmem:[#allocation12 + $0x30] sm:$0xf]
    %v568 = vld [vmem:[#allocation12 + $0x34] sm:$0xf]
    %v569 = vld [vmem:[#allocation12 + $0x38] sm:$0xf]
    %v570 = vld [vmem:[#allocation12 + $0x3c] sm:$0xf]
    %v571 = vld [vmem:[#allocation12 + $0x40] sm:$0xf]
    %v572 = vld [vmem:[#allocation12 + $0x44] sm:$0xf]
    %v573 = vld [vmem:[#allocation12 + $0x48] sm:$0xf]
    %v574 = vld [vmem:[#allocation12 + $0x4c] sm:$0xf]
    %v575 = vld [vmem:[#allocation12 + $0x50] sm:$0xf]
    %v576 = vld [vmem:[#allocation12 + $0x54] sm:$0xf]
    %v577 = vld [vmem:[#allocation12 + $0x58] sm:$0xf]
    %v578 = vld [vmem:[#allocation12 + $0x5c] sm:$0xf]
    %v579 = vld [vmem:[#allocation12 + $0x60] sm:$0xf]
    %v580 = vld [vmem:[#allocation12 + $0x64] sm:$0xf]
    %v581 = vld [vmem:[#allocation12 + $0x68] sm:$0xf]
    %v582 = vld [vmem:[#allocation12 + $0x6c] sm:$0xf]
    %v583 = vld [vmem:[#allocation12 + $0x70] sm:$0xf]
    %v584 = vld [vmem:[#allocation12 + $0x74] sm:$0xf]
    %v585 = vld [vmem:[#allocation12 + $0x78] sm:$0xf]
    %v586 = vld [vmem:[#allocation12 + $0x7c] sm:$0xf]
    %v587 = vld [vmem:[%s7] sm:$0x1]
    %v588 = vld [vmem:[#allocation6] sm:$0x3]
    %v589 = vld [vmem:[#allocation8] sm:$0x3]
    %v590 = vld [vmem:[#allocation2] ss:$8 sm:$0xf]
    %v591 = vld [vmem:[#allocation2] ss:$8 sm:$0xf0]
    %v592 = vor.u32 %v590, %v591
    %v594 = vlaneseq
    %v595 = vshrl.u32 %v594, 7
    %v596 = vsub.s32 0, %v595
    %v597 = vrot.slane %v588, %v596
    %v598 = vlaneseq
    %v599 = vshrl.u32 %v598, 7
    %v600 = vsub.s32 1, %v599
    %v601 = vrot.slane %v588, %v600
    %v604 = vpack.c.bf16 %v597, %v597
    %v605 = vpack.c.bf16 %v601, %v601
    %v734 = vunpack.c.l.b16 %v427
    %v735 = vunpack.c.h.b16 %v427
    %v736 = vunpack.c.l.b16 %v428
    %v737 = vunpack.c.h.b16 %v428
    %v738 = vunpack.c.l.b16 %v429
    %v739 = vunpack.c.h.b16 %v429
    %v740 = vunpack.c.l.b16 %v430
    %v741 = vunpack.c.h.b16 %v430
    %v742 = vunpack.c.l.b16 %v431
    %v743 = vunpack.c.h.b16 %v431
    %v744 = vunpack.c.l.b16 %v432
    %v745 = vunpack.c.h.b16 %v432
    %v746 = vunpack.c.l.b16 %v433
    %v747 = vunpack.c.h.b16 %v433
    %v748 = vunpack.c.l.b16 %v434
    %v749 = vunpack.c.h.b16 %v434
    %v750 = vunpack.c.l.b16 %v435
    %v751 = vunpack.c.h.b16 %v435
    %v752 = vunpack.c.l.b16 %v436
    %v753 = vunpack.c.h.b16 %v436
    %v754 = vunpack.c.l.b16 %v437
    %v755 = vunpack.c.h.b16 %v437
    %v756 = vunpack.c.l.b16 %v438
    %v757 = vunpack.c.h.b16 %v438
    %v758 = vunpack.c.l.b16 %v439
    %v759 = vunpack.c.h.b16 %v439
    %v760 = vunpack.c.l.b16 %v440
    %v761 = vunpack.c.h.b16 %v440
    %v762 = vunpack.c.l.b16 %v441
    %v763 = vunpack.c.h.b16 %v441
    %v764 = vunpack.c.l.b16 %v442
    %v765 = vunpack.c.h.b16 %v442
    %v766 = vunpack.c.l.b16 %v443
    %v767 = vunpack.c.h.b16 %v443
    %v768 = vunpack.c.l.b16 %v444
    %v769 = vunpack.c.h.b16 %v444
    %v770 = vunpack.c.l.b16 %v445
    %v771 = vunpack.c.h.b16 %v445
    %v772 = vunpack.c.l.b16 %v446
    %v773 = vunpack.c.h.b16 %v446
    %v774 = vunpack.c.l.b16 %v447
    %v775 = vunpack.c.h.b16 %v447
    %v776 = vunpack.c.l.b16 %v448
    %v777 = vunpack.c.h.b16 %v448
    %v778 = vunpack.c.l.b16 %v449
    %v779 = vunpack.c.h.b16 %v449
    %v780 = vunpack.c.l.b16 %v450
    %v781 = vunpack.c.h.b16 %v450
    %v782 = vunpack.c.l.b16 %v451
    %v783 = vunpack.c.h.b16 %v451
    %v784 = vunpack.c.l.b16 %v452
    %v785 = vunpack.c.h.b16 %v452
    %v786 = vunpack.c.l.b16 %v453
    %v787 = vunpack.c.h.b16 %v453
    %v788 = vunpack.c.l.b16 %v454
    %v789 = vunpack.c.h.b16 %v454
    %v790 = vunpack.c.l.b16 %v455
    %v791 = vunpack.c.h.b16 %v455
    %v792 = vunpack.c.l.b16 %v456
    %v793 = vunpack.c.h.b16 %v456
    %v794 = vunpack.c.l.b16 %v457
    %v795 = vunpack.c.h.b16 %v457
    %v796 = vunpack.c.l.b16 %v458
    %v797 = vunpack.c.h.b16 %v458
    %v798 = vunpack.c.l.b16 %v459
    %v799 = vunpack.c.h.b16 %v459
    %v800 = vunpack.c.l.b16 %v460
    %v801 = vunpack.c.h.b16 %v460
    %v802 = vunpack.c.l.b16 %v461
    %v803 = vunpack.c.h.b16 %v461
    %v804 = vunpack.c.l.b16 %v462
    %v805 = vunpack.c.h.b16 %v462
    %v806 = vunpack.c.l.b16 %v463
    %v807 = vunpack.c.h.b16 %v463
    %v808 = vunpack.c.l.b16 %v464
    %v809 = vunpack.c.h.b16 %v464
    %v810 = vunpack.c.l.b16 %v465
    %v811 = vunpack.c.h.b16 %v465
    %v812 = vunpack.c.l.b16 %v466
    %v813 = vunpack.c.h.b16 %v466
    %v814 = vunpack.c.l.b16 %v467
    %v815 = vunpack.c.h.b16 %v467
    %v816 = vunpack.c.l.b16 %v468
    %v817 = vunpack.c.h.b16 %v468
    %v818 = vunpack.c.l.b16 %v469
    %v819 = vunpack.c.h.b16 %v469
    %v820 = vunpack.c.l.b16 %v470
    %v821 = vunpack.c.h.b16 %v470
    %v822 = vunpack.c.l.b16 %v471
    %v823 = vunpack.c.h.b16 %v471
    %v824 = vunpack.c.l.b16 %v472
    %v825 = vunpack.c.h.b16 %v472
    %v826 = vunpack.c.l.b16 %v473
    %v827 = vunpack.c.h.b16 %v473
    %v828 = vunpack.c.l.b16 %v474
    %v829 = vunpack.c.h.b16 %v474
    %v830 = vunpack.c.l.b16 %v475
    %v831 = vunpack.c.h.b16 %v475
    %v832 = vunpack.c.l.b16 %v476
    %v833 = vunpack.c.h.b16 %v476
    %v834 = vunpack.c.l.b16 %v477
    %v835 = vunpack.c.h.b16 %v477
    %v836 = vunpack.c.l.b16 %v478
    %v837 = vunpack.c.h.b16 %v478
    %v838 = vunpack.c.l.b16 %v479
    %v839 = vunpack.c.h.b16 %v479
    %v840 = vunpack.c.l.b16 %v480
    %v841 = vunpack.c.h.b16 %v480
    %v842 = vunpack.c.l.b16 %v481
    %v843 = vunpack.c.h.b16 %v481
    %v844 = vunpack.c.l.b16 %v482
    %v845 = vunpack.c.h.b16 %v482
    %v846 = vunpack.c.l.b16 %v483
    %v847 = vunpack.c.h.b16 %v483
    %v848 = vunpack.c.l.b16 %v484
    %v849 = vunpack.c.h.b16 %v484
    %v850 = vunpack.c.l.b16 %v485
    %v851 = vunpack.c.h.b16 %v485
    %v852 = vunpack.c.l.b16 %v486
    %v853 = vunpack.c.h.b16 %v486
    %v854 = vunpack.c.l.b16 %v487
    %v855 = vunpack.c.h.b16 %v487
    %v856 = vunpack.c.l.b16 %v488
    %v857 = vunpack.c.h.b16 %v488
    %v858 = vunpack.c.l.b16 %v489
    %v859 = vunpack.c.h.b16 %v489
    %v860 = vunpack.c.l.b16 %v490
    %v861 = vunpack.c.h.b16 %v490
    %v862 = vunpack.c.l.b16 %v491
    %v863 = vunpack.c.h.b16 %v491
    %v864 = vunpack.c.l.b16 %v492
    %v865 = vunpack.c.h.b16 %v492
    %v866 = vunpack.c.l.b16 %v493
    %v867 = vunpack.c.h.b16 %v493
    %v868 = vunpack.c.l.b16 %v494
    %v869 = vunpack.c.h.b16 %v494
    %v870 = vunpack.c.l.b16 %v495
    %v871 = vunpack.c.h.b16 %v495
    %v872 = vunpack.c.l.b16 %v496
    %v873 = vunpack.c.h.b16 %v496
    %v874 = vunpack.c.l.b16 %v497
    %v875 = vunpack.c.h.b16 %v497
    %v876 = vunpack.c.l.b16 %v498
    %v877 = vunpack.c.h.b16 %v498
    %v878 = vunpack.c.l.b16 %v499
    %v879 = vunpack.c.h.b16 %v499
    %v880 = vunpack.c.l.b16 %v500
    %v881 = vunpack.c.h.b16 %v500
    %v882 = vunpack.c.l.b16 %v501
    %v883 = vunpack.c.h.b16 %v501
    %v884 = vunpack.c.l.b16 %v502
    %v885 = vunpack.c.h.b16 %v502
    %v886 = vunpack.c.l.b16 %v503
    %v887 = vunpack.c.h.b16 %v503
    %v888 = vunpack.c.l.b16 %v504
    %v889 = vunpack.c.h.b16 %v504
    %v890 = vunpack.c.l.b16 %v505
    %v891 = vunpack.c.h.b16 %v505
    %v892 = vunpack.c.l.b16 %v506
    %v893 = vunpack.c.h.b16 %v506
    %v894 = vunpack.c.l.b16 %v507
    %v895 = vunpack.c.h.b16 %v507
    %v896 = vunpack.c.l.b16 %v508
    %v897 = vunpack.c.h.b16 %v508
    %v898 = vunpack.c.l.b16 %v509
    %v899 = vunpack.c.h.b16 %v509
    %v900 = vunpack.c.l.b16 %v510
    %v901 = vunpack.c.h.b16 %v510
    %v902 = vunpack.c.l.b16 %v511
    %v903 = vunpack.c.h.b16 %v511
    %v904 = vunpack.c.l.b16 %v512
    %v905 = vunpack.c.h.b16 %v512
    %v906 = vunpack.c.l.b16 %v513
    %v907 = vunpack.c.h.b16 %v513
    %v908 = vunpack.c.l.b16 %v514
    %v909 = vunpack.c.h.b16 %v514
    %v910 = vunpack.c.l.b16 %v515
    %v911 = vunpack.c.h.b16 %v515
    %v912 = vunpack.c.l.b16 %v516
    %v913 = vunpack.c.h.b16 %v516
    %v914 = vunpack.c.l.b16 %v517
    %v915 = vunpack.c.h.b16 %v517
    %v916 = vunpack.c.l.b16 %v518
    %v917 = vunpack.c.h.b16 %v518
    %v918 = vunpack.c.l.b16 %v519
    %v919 = vunpack.c.h.b16 %v519
    %v920 = vunpack.c.l.b16 %v520
    %v921 = vunpack.c.h.b16 %v520
    %v922 = vunpack.c.l.b16 %v521
    %v923 = vunpack.c.h.b16 %v521
    %v924 = vunpack.c.l.b16 %v522
    %v925 = vunpack.c.h.b16 %v522
    %v926 = vunpack.c.l.b16 %v523
    %v927 = vunpack.c.h.b16 %v523
    %v928 = vunpack.c.l.b16 %v524
    %v929 = vunpack.c.h.b16 %v524
    %v930 = vunpack.c.l.b16 %v525
    %v931 = vunpack.c.h.b16 %v525
    %v932 = vunpack.c.l.b16 %v526
    %v933 = vunpack.c.h.b16 %v526
    %v934 = vunpack.c.l.b16 %v527
    %v935 = vunpack.c.h.b16 %v527
    %v936 = vunpack.c.l.b16 %v528
    %v937 = vunpack.c.h.b16 %v528
    %v938 = vunpack.c.l.b16 %v529
    %v939 = vunpack.c.h.b16 %v529
    %v940 = vunpack.c.l.b16 %v530
    %v941 = vunpack.c.h.b16 %v530
    %v942 = vunpack.c.l.b16 %v531
    %v943 = vunpack.c.h.b16 %v531
    %v944 = vunpack.c.l.b16 %v532
    %v945 = vunpack.c.h.b16 %v532
    %v946 = vunpack.c.l.b16 %v533
    %v947 = vunpack.c.h.b16 %v533
    %v948 = vunpack.c.l.b16 %v534
    %v949 = vunpack.c.h.b16 %v534
    %v950 = vunpack.c.l.b16 %v535
    %v951 = vunpack.c.h.b16 %v535
    %v952 = vunpack.c.l.b16 %v536
    %v953 = vunpack.c.h.b16 %v536
    %v954 = vunpack.c.l.b16 %v537
    %v955 = vunpack.c.h.b16 %v537
    %v956 = vunpack.c.l.b16 %v538
    %v957 = vunpack.c.h.b16 %v538
    %v958 = vunpack.c.l.b16 %v539
    %v959 = vunpack.c.h.b16 %v539
    %v960 = vunpack.c.l.b16 %v540
    %v961 = vunpack.c.h.b16 %v540
    %v962 = vunpack.c.l.b16 %v541
    %v963 = vunpack.c.h.b16 %v541
    %v964 = vunpack.c.l.b16 %v542
    %v965 = vunpack.c.h.b16 %v542
    %v966 = vunpack.c.l.b16 %v543
    %v967 = vunpack.c.h.b16 %v543
    %v968 = vunpack.c.l.b16 %v544
    %v969 = vunpack.c.h.b16 %v544
    %v970 = vunpack.c.l.b16 %v545
    %v971 = vunpack.c.h.b16 %v545
    %v972 = vunpack.c.l.b16 %v546
    %v973 = vunpack.c.h.b16 %v546
    %v974 = vunpack.c.l.b16 %v547
    %v975 = vunpack.c.h.b16 %v547
    %v976 = vunpack.c.l.b16 %v548
    %v977 = vunpack.c.h.b16 %v548
    %v978 = vunpack.c.l.b16 %v549
    %v979 = vunpack.c.h.b16 %v549
    %v980 = vunpack.c.l.b16 %v550
    %v981 = vunpack.c.h.b16 %v550
    %v982 = vunpack.c.l.b16 %v551
    %v983 = vunpack.c.h.b16 %v551
    %v984 = vunpack.c.l.b16 %v552
    %v985 = vunpack.c.h.b16 %v552
    %v986 = vunpack.c.l.b16 %v553
    %v987 = vunpack.c.h.b16 %v553
    %v988 = vunpack.c.l.b16 %v554
    %v989 = vunpack.c.h.b16 %v554
    %v990 = vpack.c.b16 %v742, %v734
    %v991 = vpack.c.b16 %v743, %v735
    %v992 = vpack.c.b16 %v744, %v736
    %v993 = vpack.c.b16 %v745, %v737
    %v994 = vpack.c.b16 %v746, %v738
    %v995 = vpack.c.b16 %v747, %v739
    %v996 = vpack.c.b16 %v748, %v740
    %v997 = vpack.c.b16 %v749, %v741
    %v998 = vpack.c.b16 %v758, %v750
    %v999 = vpack.c.b16 %v759, %v751
    %v1000 = vpack.c.b16 %v760, %v752
    %v1001 = vpack.c.b16 %v761, %v753
    %v1002 = vpack.c.b16 %v762, %v754
    %v1003 = vpack.c.b16 %v763, %v755
    %v1004 = vpack.c.b16 %v764, %v756
    %v1005 = vpack.c.b16 %v765, %v757
    %v1006 = vpack.c.b16 %v774, %v766
    %v1007 = vpack.c.b16 %v775, %v767
    %v1008 = vpack.c.b16 %v776, %v768
    %v1009 = vpack.c.b16 %v777, %v769
    %v1010 = vpack.c.b16 %v778, %v770
    %v1011 = vpack.c.b16 %v779, %v771
    %v1012 = vpack.c.b16 %v780, %v772
    %v1013 = vpack.c.b16 %v781, %v773
    %v1014 = vpack.c.b16 %v790, %v782
    %v1015 = vpack.c.b16 %v791, %v783
    %v1016 = vpack.c.b16 %v792, %v784
    %v1017 = vpack.c.b16 %v793, %v785
    %v1018 = vpack.c.b16 %v794, %v786
    %v1019 = vpack.c.b16 %v795, %v787
    %v1020 = vpack.c.b16 %v796, %v788
    %v1021 = vpack.c.b16 %v797, %v789
    %v1022 = vpack.c.b16 %v806, %v798
    %v1023 = vpack.c.b16 %v807, %v799
    %v1024 = vpack.c.b16 %v808, %v800
    %v1025 = vpack.c.b16 %v809, %v801
    %v1026 = vpack.c.b16 %v810, %v802
    %v1027 = vpack.c.b16 %v811, %v803
    %v1028 = vpack.c.b16 %v812, %v804
    %v1029 = vpack.c.b16 %v813, %v805
    %v1030 = vpack.c.b16 %v822, %v814
    %v1031 = vpack.c.b16 %v823, %v815
    %v1032 = vpack.c.b16 %v824, %v816
    %v1033 = vpack.c.b16 %v825, %v817
    %v1034 = vpack.c.b16 %v826, %v818
    %v1035 = vpack.c.b16 %v827, %v819
    %v1036 = vpack.c.b16 %v828, %v820
    %v1037 = vpack.c.b16 %v829, %v821
    %v1038 = vpack.c.b16 %v838, %v830
    %v1039 = vpack.c.b16 %v839, %v831
    %v1040 = vpack.c.b16 %v840, %v832
    %v1041 = vpack.c.b16 %v841, %v833
    %v1042 = vpack.c.b16 %v842, %v834
    %v1043 = vpack.c.b16 %v843, %v835
    %v1044 = vpack.c.b16 %v844, %v836
    %v1045 = vpack.c.b16 %v845, %v837
    %v1046 = vpack.c.b16 %v854, %v846
    %v1047 = vpack.c.b16 %v855, %v847
    %v1048 = vpack.c.b16 %v856, %v848
    %v1049 = vpack.c.b16 %v857, %v849
    %v1050 = vpack.c.b16 %v858, %v850
    %v1051 = vpack.c.b16 %v859, %v851
    %v1052 = vpack.c.b16 %v860, %v852
    %v1053 = vpack.c.b16 %v861, %v853
    %v1054 = vpack.c.b16 %v870, %v862
    %v1055 = vpack.c.b16 %v871, %v863
    %v1056 = vpack.c.b16 %v872, %v864
    %v1057 = vpack.c.b16 %v873, %v865
    %v1058 = vpack.c.b16 %v874, %v866
    %v1059 = vpack.c.b16 %v875, %v867
    %v1060 = vpack.c.b16 %v876, %v868
    %v1061 = vpack.c.b16 %v877, %v869
    %v1062 = vpack.c.b16 %v886, %v878
    %v1063 = vpack.c.b16 %v887, %v879
    %v1064 = vpack.c.b16 %v888, %v880
    %v1065 = vpack.c.b16 %v889, %v881
    %v1066 = vpack.c.b16 %v890, %v882
    %v1067 = vpack.c.b16 %v891, %v883
    %v1068 = vpack.c.b16 %v892, %v884
    %v1069 = vpack.c.b16 %v893, %v885
    %v1070 = vpack.c.b16 %v902, %v894
    %v1071 = vpack.c.b16 %v903, %v895
    %v1072 = vpack.c.b16 %v904, %v896
    %v1073 = vpack.c.b16 %v905, %v897
    %v1074 = vpack.c.b16 %v906, %v898
    %v1075 = vpack.c.b16 %v907, %v899
    %v1076 = vpack.c.b16 %v908, %v900
    %v1077 = vpack.c.b16 %v909, %v901
    %v1078 = vpack.c.b16 %v918, %v910
    %v1079 = vpack.c.b16 %v919, %v911
    %v1080 = vpack.c.b16 %v920, %v912
    %v1081 = vpack.c.b16 %v921, %v913
    %v1082 = vpack.c.b16 %v922, %v914
    %v1083 = vpack.c.b16 %v923, %v915
    %v1084 = vpack.c.b16 %v924, %v916
    %v1085 = vpack.c.b16 %v925, %v917
    %v1086 = vpack.c.b16 %v934, %v926
    %v1087 = vpack.c.b16 %v935, %v927
    %v1088 = vpack.c.b16 %v936, %v928
    %v1089 = vpack.c.b16 %v937, %v929
    %v1090 = vpack.c.b16 %v938, %v930
    %v1091 = vpack.c.b16 %v939, %v931
    %v1092 = vpack.c.b16 %v940, %v932
    %v1093 = vpack.c.b16 %v941, %v933
    %v1094 = vpack.c.b16 %v950, %v942
    %v1095 = vpack.c.b16 %v951, %v943
    %v1096 = vpack.c.b16 %v952, %v944
    %v1097 = vpack.c.b16 %v953, %v945
    %v1098 = vpack.c.b16 %v954, %v946
    %v1099 = vpack.c.b16 %v955, %v947
    %v1100 = vpack.c.b16 %v956, %v948
    %v1101 = vpack.c.b16 %v957, %v949
    %v1102 = vpack.c.b16 %v966, %v958
    %v1103 = vpack.c.b16 %v967, %v959
    %v1104 = vpack.c.b16 %v968, %v960
    %v1105 = vpack.c.b16 %v969, %v961
    %v1106 = vpack.c.b16 %v970, %v962
    %v1107 = vpack.c.b16 %v971, %v963
    %v1108 = vpack.c.b16 %v972, %v964
    %v1109 = vpack.c.b16 %v973, %v965
    %v1110 = vpack.c.b16 %v982, %v974
    %v1111 = vpack.c.b16 %v983, %v975
    %v1112 = vpack.c.b16 %v984, %v976
    %v1113 = vpack.c.b16 %v985, %v977
    %v1114 = vpack.c.b16 %v986, %v978
    %v1115 = vpack.c.b16 %v987, %v979
    %v1116 = vpack.c.b16 %v988, %v980
    %v1117 = vpack.c.b16 %v989, %v981
    %1246 = vmatprep.subr.bf16.mxu0 %v1047
    %1247 = vmatpush1.bf16.msra.mxu0 %v1046
    %1248 = vmatprep.subr.bf16.mxu0 %v1039
    %1249 = vmatpush1.bf16.msra.mxu0 %v1038
    %1250 = vmatprep.subr.bf16.mxu0 %v1031
    %1251 = vmatpush1.bf16.msra.mxu0 %v1030
    %1252 = vmatprep.subr.bf16.mxu0 %v1023
    %1253 = vmatpush1.bf16.msra.mxu0 %v1022
    %1254 = vmatprep.subr.bf16.mxu0 %v1015
    %1255 = vmatpush1.bf16.msra.mxu0 %v1014
    %1256 = vmatprep.subr.bf16.mxu0 %v1007
    %1257 = vmatpush1.bf16.msra.mxu0 %v1006
    %1258 = vmatprep.subr.bf16.mxu0 %v999
    %1259 = vmatpush1.bf16.msra.mxu0 %v998
    %1260 = vmatprep.subr.bf16.mxu0 %v991
    %1261 = vmatpush1.bf16.msra.mxu0 %v990
    %1262 = vmatprep.subr.bf16.mxu0 %v1111
    %1263 = vmatpush2.bf16.msra.mxu0 %v1110
    %1264 = vmatprep.subr.bf16.mxu0 %v1103
    %1265 = vmatpush2.bf16.msra.mxu0 %v1102
    %1266 = vmatprep.subr.bf16.mxu0 %v1095
    %1267 = vmatpush2.bf16.msra.mxu0 %v1094
    %1268 = vmatprep.subr.bf16.mxu0 %v1087
    %1269 = vmatpush2.bf16.msra.mxu0 %v1086
    %1270 = vmatprep.subr.bf16.mxu0 %v1079
    %1271 = vmatpush2.bf16.msra.mxu0 %v1078
    %1272 = vmatprep.subr.bf16.mxu0 %v1071
    %1273 = vmatpush2.bf16.msra.mxu0 %v1070
    %1274 = vmatprep.subr.bf16.mxu0 %v1063
    %1275 = vmatpush2.bf16.msra.mxu0 %v1062
    %1276 = vmatprep.subr.bf16.mxu0 %v1055
    %1277 = vmatpush2.bf16.msra.mxu0 %v1054
    %1278 = vmatprep.mubr.bf16.mxu0 %v605
    %1279 = vmatmul.mubr.bf16.gmra.mxu0 %v604
    %v1280 = vpop.f32.mrf.mxu0
    %v1281 = vadd.f32 0.0, %v1280
    %v1282 = vpop.f32.mrf.mxu0
    %v1283 = vadd.f32 0.0, %v1282
    %v1284 = vpop.f32.mrf.mxu0
    %v1285 = vpop.f32.mrf.mxu0
    %1286 = vdwg.mxu0
    %1287 = vmatprep.subr.bf16.mxu0 %v1049
    %1288 = vmatpush1.bf16.msra.mxu0 %v1048
    %1289 = vmatprep.subr.bf16.mxu0 %v1041
    %1290 = vmatpush1.bf16.msra.mxu0 %v1040
    %1291 = vmatprep.subr.bf16.mxu0 %v1033
    %1292 = vmatpush1.bf16.msra.mxu0 %v1032
    %1293 = vmatprep.subr.bf16.mxu0 %v1025
    %1294 = vmatpush1.bf16.msra.mxu0 %v1024
    %1295 = vmatprep.subr.bf16.mxu0 %v1017
    %1296 = vmatpush1.bf16.msra.mxu0 %v1016
    %1297 = vmatprep.subr.bf16.mxu0 %v1009
    %1298 = vmatpush1.bf16.msra.mxu0 %v1008
    %1299 = vmatprep.subr.bf16.mxu0 %v1001
    %1300 = vmatpush1.bf16.msra.mxu0 %v1000
    %1301 = vmatprep.subr.bf16.mxu0 %v993
    %1302 = vmatpush1.bf16.msra.mxu0 %v992
    %1303 = vmatprep.subr.bf16.mxu0 %v1113
    %1304 = vmatpush2.bf16.msra.mxu0 %v1112
    %1305 = vmatprep.subr.bf16.mxu0 %v1105
    %1306 = vmatpush2.bf16.msra.mxu0 %v1104
    %1307 = vmatprep.subr.bf16.mxu0 %v1097
    %1308 = vmatpush2.bf16.msra.mxu0 %v1096
    %1309 = vmatprep.subr.bf16.mxu0 %v1089
    %1310 = vmatpush2.bf16.msra.mxu0 %v1088
    %1311 = vmatprep.subr.bf16.mxu0 %v1081
    %1312 = vmatpush2.bf16.msra.mxu0 %v1080
    %1313 = vmatprep.subr.bf16.mxu0 %v1073
    %1314 = vmatpush2.bf16.msra.mxu0 %v1072
    %1315 = vmatprep.subr.bf16.mxu0 %v1065
    %1316 = vmatpush2.bf16.msra.mxu0 %v1064
    %1317 = vmatprep.subr.bf16.mxu0 %v1057
    %1318 = vmatpush2.bf16.msra.mxu0 %v1056
    %1319 = vmatprep.mubr.bf16.mxu0 %v605
    %1320 = vmatmul.mubr.bf16.gmra.mxu0 %v604
    %v1321 = vpop.f32.mrf.mxu0
    %v1322 = vadd.f32 0.0, %v1321
    %v1323 = vpop.f32.mrf.mxu0
    %v1324 = vadd.f32 0.0, %v1323
    %v1325 = vpop.f32.mrf.mxu0
    %v1326 = vpop.f32.mrf.mxu0
    %1327 = vdwg.mxu0
    %1328 = vmatprep.subr.bf16.mxu0 %v1051
    %1329 = vmatpush1.bf16.msra.mxu0 %v1050
    %1330 = vmatprep.subr.bf16.mxu0 %v1043
    %1331 = vmatpush1.bf16.msra.mxu0 %v1042
    %1332 = vmatprep.subr.bf16.mxu0 %v1035
    %1333 = vmatpush1.bf16.msra.mxu0 %v1034
    %1334 = vmatprep.subr.bf16.mxu0 %v1027
    %1335 = vmatpush1.bf16.msra.mxu0 %v1026
    %1336 = vmatprep.subr.bf16.mxu0 %v1019
    %1337 = vmatpush1.bf16.msra.mxu0 %v1018
    %1338 = vmatprep.subr.bf16.mxu0 %v1011
    %1339 = vmatpush1.bf16.msra.mxu0 %v1010
    %1340 = vmatprep.subr.bf16.mxu0 %v1003
    %1341 = vmatpush1.bf16.msra.mxu0 %v1002
    %1342 = vmatprep.subr.bf16.mxu0 %v995
    %1343 = vmatpush1.bf16.msra.mxu0 %v994
    %1344 = vmatprep.subr.bf16.mxu0 %v1115
    %1345 = vmatpush2.bf16.msra.mxu0 %v1114
    %1346 = vmatprep.subr.bf16.mxu0 %v1107
    %1347 = vmatpush2.bf16.msra.mxu0 %v1106
    %1348 = vmatprep.subr.bf16.mxu0 %v1099
    %1349 = vmatpush2.bf16.msra.mxu0 %v1098
    %1350 = vmatprep.subr.bf16.mxu0 %v1091
    %1351 = vmatpush2.bf16.msra.mxu0 %v1090
    %1352 = vmatprep.subr.bf16.mxu0 %v1083
    %1353 = vmatpush2.bf16.msra.mxu0 %v1082
    %1354 = vmatprep.subr.bf16.mxu0 %v1075
    %1355 = vmatpush2.bf16.msra.mxu0 %v1074
    %1356 = vmatprep.subr.bf16.mxu0 %v1067
    %1357 = vmatpush2.bf16.msra.mxu0 %v1066
    %1358 = vmatprep.subr.bf16.mxu0 %v1059
    %1359 = vmatpush2.bf16.msra.mxu0 %v1058
    %1360 = vmatprep.mubr.bf16.mxu0 %v605
    %1361 = vmatmul.mubr.bf16.gmra.mxu0 %v604
    %v1362 = vpop.f32.mrf.mxu0
    %v1363 = vadd.f32 0.0, %v1362
    %v1364 = vpop.f32.mrf.mxu0
    %v1365 = vadd.f32 0.0, %v1364
    %v1366 = vpop.f32.mrf.mxu0
    %v1367 = vpop.f32.mrf.mxu0
    %1368 = vdwg.mxu0
    %1369 = vmatprep.subr.bf16.mxu0 %v1053
    %1370 = vmatpush1.bf16.msra.mxu0 %v1052
    %1371 = vmatprep.subr.bf16.mxu0 %v1045
    %1372 = vmatpush1.bf16.msra.mxu0 %v1044
    %1373 = vmatprep.subr.bf16.mxu0 %v1037
    %1374 = vmatpush1.bf16.msra.mxu0 %v1036
    %1375 = vmatprep.subr.bf16.mxu0 %v1029
    %1376 = vmatpush1.bf16.msra.mxu0 %v1028
    %1377 = vmatprep.subr.bf16.mxu0 %v1021
    %1378 = vmatpush1.bf16.msra.mxu0 %v1020
    %1379 = vmatprep.subr.bf16.mxu0 %v1013
    %1380 = vmatpush1.bf16.msra.mxu0 %v1012
    %1381 = vmatprep.subr.bf16.mxu0 %v1005
    %1382 = vmatpush1.bf16.msra.mxu0 %v1004
    %1383 = vmatprep.subr.bf16.mxu0 %v997
    %1384 = vmatpush1.bf16.msra.mxu0 %v996
    %1385 = vmatprep.subr.bf16.mxu0 %v1117
    %1386 = vmatpush2.bf16.msra.mxu0 %v1116
    %1387 = vmatprep.subr.bf16.mxu0 %v1109
    %1388 = vmatpush2.bf16.msra.mxu0 %v1108
    %1389 = vmatprep.subr.bf16.mxu0 %v1101
    %1390 = vmatpush2.bf16.msra.mxu0 %v1100
    %1391 = vmatprep.subr.bf16.mxu0 %v1093
    %1392 = vmatpush2.bf16.msra.mxu0 %v1092
    %1393 = vmatprep.subr.bf16.mxu0 %v1085
    %1394 = vmatpush2.bf16.msra.mxu0 %v1084
    %1395 = vmatprep.subr.bf16.mxu0 %v1077
    %1396 = vmatpush2.bf16.msra.mxu0 %v1076
    %1397 = vmatprep.subr.bf16.mxu0 %v1069
    %1398 = vmatpush2.bf16.msra.mxu0 %v1068
    %1399 = vmatprep.subr.bf16.mxu0 %v1061
    %1400 = vmatpush2.bf16.msra.mxu0 %v1060
    %1401 = vmatprep.mubr.bf16.mxu0 %v605
    %1402 = vmatmul.mubr.bf16.gmra.mxu0 %v604
    %v1403 = vpop.f32.mrf.mxu0
    %v1404 = vadd.f32 0.0, %v1403
    %v1405 = vpop.f32.mrf.mxu0
    %v1406 = vadd.f32 0.0, %v1405
    %v1407 = vpop.f32.mrf.mxu0
    %v1408 = vpop.f32.mrf.mxu0
    %1409 = vdwg.mxu0
    %v1418 = vcombine.low %v1281, %v1283
    %v1419 = vcombine.low %v1322, %v1324
    %v1420 = vcombine.low %v1363, %v1365
    %v1421 = vcombine.low %v1404, %v1406
    %v1423 = vunpack.c.l.s4 1966171168
    %v1424 = vunpack.c.0.s8 %v1423
    %v1425 = vlaneseq
    %v1426 = vshrl.u32 %v1425, 7
    %v1427 = vsub.s32 %v1424, %v1426
    %v1428 = vrot.slane %v1418, %v1427
    %v1430 = vunpack.c.l.s4 1966171168
    %v1431 = vunpack.c.0.s8 %v1430
    %v1432 = vlaneseq
    %v1433 = vshrl.u32 %v1432, 7
    %v1434 = vsub.s32 %v1431, %v1433
    %v1435 = vrot.slane %v1419, %v1434
    %v1437 = vunpack.c.l.s4 1966171168
    %v1438 = vunpack.c.0.s8 %v1437
    %v1439 = vlaneseq
    %v1440 = vshrl.u32 %v1439, 7
    %v1441 = vsub.s32 %v1438, %v1440
    %v1442 = vrot.slane %v1420, %v1441
    %v1444 = vunpack.c.l.s4 1966171168
    %v1445 = vunpack.c.0.s8 %v1444
    %v1446 = vlaneseq
    %v1447 = vshrl.u32 %v1446, 7
    %v1448 = vsub.s32 %v1445, %v1447
    %v1449 = vrot.slane %v1421, %v1448
    %v1450 = vcombine.low %v1428, %v1435
    %v1451 = vcombine.low %v1442, %v1449
    %v1453 = vunpack.c.l.s4 1966171168
    %v1454 = vunpack.c.0.s8 %v1453
    %v1455 = vlaneseq
    %v1456 = vshrl.u32 %v1455, 7
    %v1457 = vsub.s32 %v1454, %v1456
    %v1458 = vrot.slane %v1450, %v1457
    %v1460 = vunpack.c.l.s4 1966171168
    %v1461 = vunpack.c.0.s8 %v1460
    %v1462 = vlaneseq
    %v1463 = vshrl.u32 %v1462, 7
    %v1464 = vsub.s32 %v1461, %v1463
    %v1465 = vrot.slane %v1451, %v1464
    %v1466 = vcombine.low %v1458, %v1465
    %v1468 = vadd.f32 %v592, %v1466
    %v1469 = vsub.f32 0.0, %v1468
    %v1470 = vmul.f32 %v1469, 1.442695
    %v1471 = vpow.pop %v1470
    %v1472 = vadd.f32 %v1471, 1.0
    %v1473 = vrcp.pop %v1472
    %v1475 = vrot.slane %v1468, 2
    %v1477 = vsub.f32 0.0, %v1475
    %v1478 = vmul.f32 %v1477, 1.442695
    %v1479 = vpow.pop %v1478
    %v1480 = vadd.f32 %v1479, 1.0
    %v1481 = vrcp.pop %v1480
    %v1482 = vrot.slane %v1468, 4
    %v1484 = vtanh.pop %v1482
    %v1485 = vrot.slane %v1468, 6
    %v1487 = vsub.f32 0.0, %v1485
    %v1488 = vmul.f32 %v1487, 1.442695
    %v1489 = vpow.pop %v1488
    %v1490 = vadd.f32 %v1489, 1.0
    %v1491 = vrcp.pop %v1490
    %v1492 = vmul.f32 %v1481, %v589
    %v1493 = vmul.f32 %v1473, %v1484
    %v1494 = vadd.f32 %v1492, %v1493
    %v1495 = vtanh.pop %v1494
    %v1496 = vmul.f32 %v1491, %v1495
    %v1498 = vlaneseq
    %v1499 = vshrl.u32 %v1498, 7
    %v1500 = vsub.s32 0, %v1499
    %v1501 = vrot.slane %v1496, %v1500
    %v1502 = vlaneseq
    %v1503 = vshrl.u32 %v1502, 7
    %v1504 = vsub.s32 1, %v1503
    %v1505 = vrot.slane %v1496, %v1504
    %v1508 = vpack.c.bf16 %v1501, %v1501
    %v1509 = vpack.c.bf16 %v1505, %v1505
    %v1542 = vunpack.c.l.b16 %v555
    %v1543 = vunpack.c.l.b16 %v556
    %v1544 = vunpack.c.l.b16 %v557
    %v1545 = vunpack.c.l.b16 %v558
    %v1546 = vunpack.c.l.b16 %v559
    %v1547 = vunpack.c.l.b16 %v560
    %v1548 = vunpack.c.l.b16 %v561
    %v1549 = vunpack.c.l.b16 %v562
    %v1550 = vunpack.c.l.b16 %v563
    %v1551 = vunpack.c.l.b16 %v564
    %v1552 = vunpack.c.l.b16 %v565
    %v1553 = vunpack.c.l.b16 %v566
    %v1554 = vunpack.c.l.b16 %v567
    %v1555 = vunpack.c.l.b16 %v568
    %v1556 = vunpack.c.l.b16 %v569
    %v1557 = vunpack.c.l.b16 %v570
    %v1558 = vunpack.c.l.b16 %v571
    %v1559 = vunpack.c.l.b16 %v572
    %v1560 = vunpack.c.l.b16 %v573
    %v1561 = vunpack.c.l.b16 %v574
    %v1562 = vunpack.c.l.b16 %v575
    %v1563 = vunpack.c.l.b16 %v576
    %v1564 = vunpack.c.l.b16 %v577
    %v1565 = vunpack.c.l.b16 %v578
    %v1566 = vunpack.c.l.b16 %v579
    %v1567 = vunpack.c.l.b16 %v580
    %v1568 = vunpack.c.l.b16 %v581
    %v1569 = vunpack.c.l.b16 %v582
    %v1570 = vunpack.c.l.b16 %v583
    %v1571 = vunpack.c.l.b16 %v584
    %v1572 = vunpack.c.l.b16 %v585
    %v1573 = vunpack.c.l.b16 %v586
    %v1574 = vpack.c.b16 %v1543, %v1542
    %v1575 = vpack.c.b16 %v1545, %v1544
    %v1576 = vpack.c.b16 %v1547, %v1546
    %v1577 = vpack.c.b16 %v1549, %v1548
    %v1578 = vpack.c.b16 %v1551, %v1550
    %v1579 = vpack.c.b16 %v1553, %v1552
    %v1580 = vpack.c.b16 %v1555, %v1554
    %v1581 = vpack.c.b16 %v1557, %v1556
    %v1582 = vpack.c.b16 %v1559, %v1558
    %v1583 = vpack.c.b16 %v1561, %v1560
    %v1584 = vpack.c.b16 %v1563, %v1562
    %v1585 = vpack.c.b16 %v1565, %v1564
    %v1586 = vpack.c.b16 %v1567, %v1566
    %v1587 = vpack.c.b16 %v1569, %v1568
    %v1588 = vpack.c.b16 %v1571, %v1570
    %v1589 = vpack.c.b16 %v1573, %v1572
    %1606 = vmatprep.subr.bf16.mxu0 0
    %1607 = vmatpush1.bf16.msra.mxu0 %v1581
    %1608 = vmatprep.subr.bf16.mxu0 0
    %1609 = vmatpush1.bf16.msra.mxu0 %v1580
    %1610 = vmatprep.subr.bf16.mxu0 0
    %1611 = vmatpush1.bf16.msra.mxu0 %v1579
    %1612 = vmatprep.subr.bf16.mxu0 0
    %1613 = vmatpush1.bf16.msra.mxu0 %v1578
    %1614 = vmatprep.subr.bf16.mxu0 0
    %1615 = vmatpush1.bf16.msra.mxu0 %v1577
    %1616 = vmatprep.subr.bf16.mxu0 0
    %1617 = vmatpush1.bf16.msra.mxu0 %v1576
    %1618 = vmatprep.subr.bf16.mxu0 0
    %1619 = vmatpush1.bf16.msra.mxu0 %v1575
    %1620 = vmatprep.subr.bf16.mxu0 0
    %1621 = vmatpush1.bf16.msra.mxu0 %v1574
    %1622 = vmatprep.subr.bf16.mxu0 0
    %1623 = vmatpush2.bf16.msra.mxu0 %v1589
    %1624 = vmatprep.subr.bf16.mxu0 0
    %1625 = vmatpush2.bf16.msra.mxu0 %v1588
    %1626 = vmatprep.subr.bf16.mxu0 0
    %1627 = vmatpush2.bf16.msra.mxu0 %v1587
    %1628 = vmatprep.subr.bf16.mxu0 0
    %1629 = vmatpush2.bf16.msra.mxu0 %v1586
    %1630 = vmatprep.subr.bf16.mxu0 0
    %1631 = vmatpush2.bf16.msra.mxu0 %v1585
    %1632 = vmatprep.subr.bf16.mxu0 0
    %1633 = vmatpush2.bf16.msra.mxu0 %v1584
    %1634 = vmatprep.subr.bf16.mxu0 0
    %1635 = vmatpush2.bf16.msra.mxu0 %v1583
    %1636 = vmatprep.subr.bf16.mxu0 0
    %1637 = vmatpush2.bf16.msra.mxu0 %v1582
    %1638 = vmatprep.mubr.bf16.mxu0 %v1509
    %1639 = vmatmul.mubr.bf16.gmra.mxu0 %v1508
    %v1640 = vpop.f32.mrf.mxu0
    %v1641 = vadd.f32 %v587, %v1640
    %v1642 = vpop.f32.mrf.mxu0
    %v1643 = vpop.f32.mrf.mxu0
    %v1644 = vpop.f32.mrf.mxu0
    %1645 = vdwg.mxu0
    %vm1646 = vcmask 1040384
    %v1647 = vsel %vm1646, %v1641, -inf
    %1648 = vmax.xlane.f32.xlu0 %v1647
    %v1649 = vpop.xlane.xlu0 %1648
    %v1650 = vsub.f32 %v1641, %v1649
    %v1651 = vmul.f32 %v1650, 1.442695
    %v1652 = vpow.pop %v1651
    %v1653 = vsel %vm1646, %v1652, 0.0
    %1654 = vadd.xlane.f32.xlu0 %v1653
    %v1655 = vpop.xlane.xlu0 %1654
    %v1656 = vlog2.pop %v1655
    %v1657 = vmul.f32 %v1656, 0.6931472
    %v1658 = vsub.f32 %v1650, %v1657
    %1659 = vst [vmem:[#allocation14] sm:$0x1] %v1658
    %s1660 = scalar_lea.vmem [#allocation2], 1
    %v1661 = vld [vmem:[%s1660] ss:$8 sm:$0xf]
    %v1662 = vld [vmem:[%s1660] ss:$8 sm:$0xf0]
    %v1663 = vor.u32 %v1661, %v1662
    %1664 = vmatprep.subr.bf16.mxu0 %v1047
    %1665 = vmatpush1.bf16.msra.mxu0 %v1046
    %1666 = vmatprep.subr.bf16.mxu0 %v1039
    %1667 = vmatpush1.bf16.msra.mxu0 %v1038
    %1668 = vmatprep.subr.bf16.mxu0 %v1031
    %1669 = vmatpush1.bf16.msra.mxu0 %v1030
    %1670 = vmatprep.subr.bf16.mxu0 %v1023
    %1671 = vmatpush1.bf16.msra.mxu0 %v1022
    %1672 = vmatprep.subr.bf16.mxu0 %v1015
    %1673 = vmatpush1.bf16.msra.mxu0 %v1014
    %1674 = vmatprep.subr.bf16.mxu0 %v1007
    %1675 = vmatpush1.bf16.msra.mxu0 %v1006
    %1676 = vmatprep.subr.bf16.mxu0 %v999
    %1677 = vmatpush1.bf16.msra.mxu0 %v998
    %1678 = vmatprep.subr.bf16.mxu0 %v991
    %1679 = vmatpush1.bf16.msra.mxu0 %v990
    %1680 = vmatprep.subr.bf16.mxu0 %v1111
    %1681 = vmatpush2.bf16.msra.mxu0 %v1110
    %1682 = vmatprep.subr.bf16.mxu0 %v1103
    %1683 = vmatpush2.bf16.msra.mxu0 %v1102
    %1684 = vmatprep.subr.bf16.mxu0 %v1095
    %1685 = vmatpush2.bf16.msra.mxu0 %v1094
    %1686 = vmatprep.subr.bf16.mxu0 %v1087
    %1687 = vmatpush2.bf16.msra.mxu0 %v1086
    %1688 = vmatprep.subr.bf16.mxu0 %v1079
    %1689 = vmatpush2.bf16.msra.mxu0 %v1078
    %1690 = vmatprep.subr.bf16.mxu0 %v1071
    %1691 = vmatpush2.bf16.msra.mxu0 %v1070
    %1692 = vmatprep.subr.bf16.mxu0 %v1063
    %1693 = vmatpush2.bf16.msra.mxu0 %v1062
    %1694 = vmatprep.subr.bf16.mxu0 %v1055
    %1695 = vmatpush2.bf16.msra.mxu0 %v1054
    %1696 = vmatprep.mubr.bf16.mxu0 %v1509
    %1697 = vmatmul.mubr.bf16.gmra.mxu0 %v1508
    %v1698 = vpop.f32.mrf.mxu0
    %v1699 = vadd.f32 0.0, %v1698
    %v1700 = vpop.f32.mrf.mxu0
    %v1701 = vadd.f32 0.0, %v1700
    %v1702 = vpop.f32.mrf.mxu0
    %v1703 = vpop.f32.mrf.mxu0
    %1704 = vdwg.mxu0
    %1705 = vmatprep.subr.bf16.mxu0 %v1049
    %1706 = vmatpush1.bf16.msra.mxu0 %v1048
    %1707 = vmatprep.subr.bf16.mxu0 %v1041
    %1708 = vmatpush1.bf16.msra.mxu0 %v1040
    %1709 = vmatprep.subr.bf16.mxu0 %v1033
    %1710 = vmatpush1.bf16.msra.mxu0 %v1032
    %1711 = vmatprep.subr.bf16.mxu0 %v1025
    %1712 = vmatpush1.bf16.msra.mxu0 %v1024
    %1713 = vmatprep.subr.bf16.mxu0 %v1017
    %1714 = vmatpush1.bf16.msra.mxu0 %v1016
    %1715 = vmatprep.subr.bf16.mxu0 %v1009
    %1716 = vmatpush1.bf16.msra.mxu0 %v1008
    %1717 = vmatprep.subr.bf16.mxu0 %v1001
    %1718 = vmatpush1.bf16.msra.mxu0 %v1000
    %1719 = vmatprep.subr.bf16.mxu0 %v993
    %1720 = vmatpush1.bf16.msra.mxu0 %v992
    %1721 = vmatprep.subr.bf16.mxu0 %v1113
    %1722 = vmatpush2.bf16.msra.mxu0 %v1112
    %1723 = vmatprep.subr.bf16.mxu0 %v1105
    %1724 = vmatpush2.bf16.msra.mxu0 %v1104
    %1725 = vmatprep.subr.bf16.mxu0 %v1097
    %1726 = vmatpush2.bf16.msra.mxu0 %v1096
    %1727 = vmatprep.subr.bf16.mxu0 %v1089
    %1728 = vmatpush2.bf16.msra.mxu0 %v1088
    %1729 = vmatprep.subr.bf16.mxu0 %v1081
    %1730 = vmatpush2.bf16.msra.mxu0 %v1080
    %1731 = vmatprep.subr.bf16.mxu0 %v1073
    %1732 = vmatpush2.bf16.msra.mxu0 %v1072
    %1733 = vmatprep.subr.bf16.mxu0 %v1065
    %1734 = vmatpush2.bf16.msra.mxu0 %v1064
    %1735 = vmatprep.subr.bf16.mxu0 %v1057
    %1736 = vmatpush2.bf16.msra.mxu0 %v1056
    %1737 = vmatprep.mubr.bf16.mxu0 %v1509
    %1738 = vmatmul.mubr.bf16.gmra.mxu0 %v1508
    %v1739 = vpop.f32.mrf.mxu0
    %v1740 = vadd.f32 0.0, %v1739
    %v1741 = vpop.f32.mrf.mxu0
    %v1742 = vadd.f32 0.0, %v1741
    %v1743 = vpop.f32.mrf.mxu0
    %v1744 = vpop.f32.mrf.mxu0
    %1745 = vdwg.mxu0
    %1746 = vmatprep.subr.bf16.mxu0 %v1051
    %1747 = vmatpush1.bf16.msra.mxu0 %v1050
    %1748 = vmatprep.subr.bf16.mxu0 %v1043
    %1749 = vmatpush1.bf16.msra.mxu0 %v1042
    %1750 = vmatprep.subr.bf16.mxu0 %v1035
    %1751 = vmatpush1.bf16.msra.mxu0 %v1034
    %1752 = vmatprep.subr.bf16.mxu0 %v1027
    %1753 = vmatpush1.bf16.msra.mxu0 %v1026
    %1754 = vmatprep.subr.bf16.mxu0 %v1019
    %1755 = vmatpush1.bf16.msra.mxu0 %v1018
    %1756 = vmatprep.subr.bf16.mxu0 %v1011
    %1757 = vmatpush1.bf16.msra.mxu0 %v1010
    %1758 = vmatprep.subr.bf16.mxu0 %v1003
    %1759 = vmatpush1.bf16.msra.mxu0 %v1002
    %1760 = vmatprep.subr.bf16.mxu0 %v995
    %1761 = vmatpush1.bf16.msra.mxu0 %v994
    %1762 = vmatprep.subr.bf16.mxu0 %v1115
    %1763 = vmatpush2.bf16.msra.mxu0 %v1114
    %1764 = vmatprep.subr.bf16.mxu0 %v1107
    %1765 = vmatpush2.bf16.msra.mxu0 %v1106
    %1766 = vmatprep.subr.bf16.mxu0 %v1099
    %1767 = vmatpush2.bf16.msra.mxu0 %v1098
    %1768 = vmatprep.subr.bf16.mxu0 %v1091
    %1769 = vmatpush2.bf16.msra.mxu0 %v1090
    %1770 = vmatprep.subr.bf16.mxu0 %v1083
    %1771 = vmatpush2.bf16.msra.mxu0 %v1082
    %1772 = vmatprep.subr.bf16.mxu0 %v1075
    %1773 = vmatpush2.bf16.msra.mxu0 %v1074
    %1774 = vmatprep.subr.bf16.mxu0 %v1067
    %1775 = vmatpush2.bf16.msra.mxu0 %v1066
    %1776 = vmatprep.subr.bf16.mxu0 %v1059
    %1777 = vmatpush2.bf16.msra.mxu0 %v1058
    %1778 = vmatprep.mubr.bf16.mxu0 %v1509
    %1779 = vmatmul.mubr.bf16.gmra.mxu0 %v1508
    %v1780 = vpop.f32.mrf.mxu0
    %v1781 = vadd.f32 0.0, %v1780
    %v1782 = vpop.f32.mrf.mxu0
    %v1783 = vadd.f32 0.0, %v1782
    %v1784 = vpop.f32.mrf.mxu0
    %v1785 = vpop.f32.mrf.mxu0
    %1786 = vdwg.mxu0
    %1787 = vmatprep.subr.bf16.mxu0 %v1053
    %1788 = vmatpush1.bf16.msra.mxu0 %v1052
    %1789 = vmatprep.subr.bf16.mxu0 %v1045
    %1790 = vmatpush1.bf16.msra.mxu0 %v1044
    %1791 = vmatprep.subr.bf16.mxu0 %v1037
    %1792 = vmatpush1.bf16.msra.mxu0 %v1036
    %1793 = vmatprep.subr.bf16.mxu0 %v1029
    %1794 = vmatpush1.bf16.msra.mxu0 %v1028
    %1795 = vmatprep.subr.bf16.mxu0 %v1021
    %1796 = vmatpush1.bf16.msra.mxu0 %v1020
    %1797 = vmatprep.subr.bf16.mxu0 %v1013
    %1798 = vmatpush1.bf16.msra.mxu0 %v1012
    %1799 = vmatprep.subr.bf16.mxu0 %v1005
    %1800 = vmatpush1.bf16.msra.mxu0 %v1004
    %1801 = vmatprep.subr.bf16.mxu0 %v997
    %1802 = vmatpush1.bf16.msra.mxu0 %v996
    %1803 = vmatprep.subr.bf16.mxu0 %v1117
    %1804 = vmatpush2.bf16.msra.mxu0 %v1116
    %1805 = vmatprep.subr.bf16.mxu0 %v1109
    %1806 = vmatpush2.bf16.msra.mxu0 %v1108
    %1807 = vmatprep.subr.bf16.mxu0 %v1101
    %1808 = vmatpush2.bf16.msra.mxu0 %v1100
    %1809 = vmatprep.subr.bf16.mxu0 %v1093
    %1810 = vmatpush2.bf16.msra.mxu0 %v1092
    %1811 = vmatprep.subr.bf16.mxu0 %v1085
    %1812 = vmatpush2.bf16.msra.mxu0 %v1084
    %1813 = vmatprep.subr.bf16.mxu0 %v1077
    %1814 = vmatpush2.bf16.msra.mxu0 %v1076
    %1815 = vmatprep.subr.bf16.mxu0 %v1069
    %1816 = vmatpush2.bf16.msra.mxu0 %v1068
    %1817 = vmatprep.subr.bf16.mxu0 %v1061
    %1818 = vmatpush2.bf16.msra.mxu0 %v1060
    %1819 = vmatprep.mubr.bf16.mxu0 %v1509
    %1820 = vmatmul.mubr.bf16.gmra.mxu0 %v1508
    %v1821 = vpop.f32.mrf.mxu0
    %v1822 = vadd.f32 0.0, %v1821
    %v1823 = vpop.f32.mrf.mxu0
    %v1824 = vadd.f32 0.0, %v1823
    %v1825 = vpop.f32.mrf.mxu0
    %v1826 = vpop.f32.mrf.mxu0
    %1827 = vdwg.mxu0
    %v1836 = vcombine.low %v1699, %v1701
    %v1837 = vcombine.low %v1740, %v1742
    %v1838 = vcombine.low %v1781, %v1783
    %v1839 = vcombine.low %v1822, %v1824
    %v1841 = vunpack.c.l.s4 1966171168
    %v1842 = vunpack.c.0.s8 %v1841
    %v1843 = vlaneseq
    %v1844 = vshrl.u32 %v1843, 7
    %v1845 = vsub.s32 %v1842, %v1844
    %v1846 = vrot.slane %v1836, %v1845
    %v1848 = vunpack.c.l.s4 1966171168
    %v1849 = vunpack.c.0.s8 %v1848
    %v1850 = vlaneseq
    %v1851 = vshrl.u32 %v1850, 7
    %v1852 = vsub.s32 %v1849, %v1851
    %v1853 = vrot.slane %v1837, %v1852
    %v1855 = vunpack.c.l.s4 1966171168
    %v1856 = vunpack.c.0.s8 %v1855
    %v1857 = vlaneseq
    %v1858 = vshrl.u32 %v1857, 7
    %v1859 = vsub.s32 %v1856, %v1858
    %v1860 = vrot.slane %v1838, %v1859
    %v1862 = vunpack.c.l.s4 1966171168
    %v1863 = vunpack.c.0.s8 %v1862
    %v1864 = vlaneseq
    %v1865 = vshrl.u32 %v1864, 7
    %v1866 = vsub.s32 %v1863, %v1865
    %v1867 = vrot.slane %v1839, %v1866
    %v1868 = vcombine.low %v1846, %v1853
    %v1869 = vcombine.low %v1860, %v1867
    %v1871 = vunpack.c.l.s4 1966171168
    %v1872 = vunpack.c.0.s8 %v1871
    %v1873 = vlaneseq
    %v1874 = vshrl.u32 %v1873, 7
    %v1875 = vsub.s32 %v1872, %v1874
    %v1876 = vrot.slane %v1868, %v1875
    %v1878 = vunpack.c.l.s4 1966171168
    %v1879 = vunpack.c.0.s8 %v1878
    %v1880 = vlaneseq
    %v1881 = vshrl.u32 %v1880, 7
    %v1882 = vsub.s32 %v1879, %v1881
    %v1883 = vrot.slane %v1869, %v1882
    %v1884 = vcombine.low %v1876, %v1883
    %v1886 = vadd.f32 %v1663, %v1884
    %v1887 = vsub.f32 0.0, %v1886
    %v1888 = vmul.f32 %v1887, 1.442695
    %v1889 = vpow.pop %v1888
    %v1890 = vadd.f32 %v1889, 1.0
    %v1891 = vrcp.pop %v1890
    %v1893 = vrot.slane %v1886, 2
    %v1895 = vsub.f32 0.0, %v1893
    %v1896 = vmul.f32 %v1895, 1.442695
    %v1897 = vpow.pop %v1896
    %v1898 = vadd.f32 %v1897, 1.0
    %v1899 = vrcp.pop %v1898
    %v1900 = vrot.slane %v1886, 4
    %v1902 = vtanh.pop %v1900
    %v1903 = vrot.slane %v1886, 6
    %v1905 = vsub.f32 0.0, %v1903
    %v1906 = vmul.f32 %v1905, 1.442695
    %v1907 = vpow.pop %v1906
    %v1908 = vadd.f32 %v1907, 1.0
    %v1909 = vrcp.pop %v1908
    %v1910 = vmul.f32 %v1899, %v1494
    %v1911 = vmul.f32 %v1891, %v1902
    %v1912 = vadd.f32 %v1910, %v1911
    %v1913 = vtanh.pop %v1912
    %v1914 = vmul.f32 %v1909, %v1913
    %v1916 = vlaneseq
    %v1917 = vshrl.u32 %v1916, 7
    %v1918 = vsub.s32 0, %v1917
    %v1919 = vrot.slane %v1914, %v1918
    %v1920 = vlaneseq
    %v1921 = vshrl.u32 %v1920, 7
    %v1922 = vsub.s32 1, %v1921
    %v1923 = vrot.slane %v1914, %v1922
    %v1926 = vpack.c.bf16 %v1919, %v1919
    %v1927 = vpack.c.bf16 %v1923, %v1923
    %1928 = vmatprep.subr.bf16.mxu0 0
    %1929 = vmatpush1.bf16.msra.mxu0 %v1581
    %1930 = vmatprep.subr.bf16.mxu0 0
    %1931 = vmatpush1.bf16.msra.mxu0 %v1580
    %1932 = vmatprep.subr.bf16.mxu0 0
    %1933 = vmatpush1.bf16.msra.mxu0 %v1579
    %1934 = vmatprep.subr.bf16.mxu0 0
    %1935 = vmatpush1.bf16.msra.mxu0 %v1578
    %1936 = vmatprep.subr.bf16.mxu0 0
    %1937 = vmatpush1.bf16.msra.mxu0 %v1577
    %1938 = vmatprep.subr.bf16.mxu0 0
    %1939 = vmatpush1.bf16.msra.mxu0 %v1576
    %1940 = vmatprep.subr.bf16.mxu0 0
    %1941 = vmatpush1.bf16.msra.mxu0 %v1575
    %1942 = vmatprep.subr.bf16.mxu0 0
    %1943 = vmatpush1.bf16.msra.mxu0 %v1574
    %1944 = vmatprep.subr.bf16.mxu0 0
    %1945 = vmatpush2.bf16.msra.mxu0 %v1589
    %1946 = vmatprep.subr.bf16.mxu0 0
    %1947 = vmatpush2.bf16.msra.mxu0 %v1588
    %1948 = vmatprep.subr.bf16.mxu0 0
    %1949 = vmatpush2.bf16.msra.mxu0 %v1587
    %1950 = vmatprep.subr.bf16.mxu0 0
    %1951 = vmatpush2.bf16.msra.mxu0 %v1586
    %1952 = vmatprep.subr.bf16.mxu0 0
    %1953 = vmatpush2.bf16.msra.mxu0 %v1585
    %1954 = vmatprep.subr.bf16.mxu0 0
    %1955 = vmatpush2.bf16.msra.mxu0 %v1584
    %1956 = vmatprep.subr.bf16.mxu0 0
    %1957 = vmatpush2.bf16.msra.mxu0 %v1583
    %1958 = vmatprep.subr.bf16.mxu0 0
    %1959 = vmatpush2.bf16.msra.mxu0 %v1582
    %1960 = vmatprep.mubr.bf16.mxu0 %v1927
    %1961 = vmatmul.mubr.bf16.gmra.mxu0 %v1926
    %v1962 = vpop.f32.mrf.mxu0
    %v1963 = vadd.f32 %v587, %v1962
    %v1964 = vpop.f32.mrf.mxu0
    %v1965 = vpop.f32.mrf.mxu0
    %v1966 = vpop.f32.mrf.mxu0
    %1967 = vdwg.mxu0
    %v1968 = vsel %vm1646, %v1963, -inf
    %1969 = vmax.xlane.f32.xlu0 %v1968
    %v1970 = vpop.xlane.xlu0 %1969
    %v1971 = vsub.f32 %v1963, %v1970
    %v1972 = vmul.f32 %v1971, 1.442695
    %v1973 = vpow.pop %v1972
    %v1974 = vsel %vm1646, %v1973, 0.0
    %1975 = vadd.xlane.f32.xlu0 %v1974
    %v1976 = vpop.xlane.xlu0 %1975
    %v1977 = vlog2.pop %v1976
    %v1978 = vmul.f32 %v1977, 0.6931472
    %v1979 = vsub.f32 %v1971, %v1978
    %1980 = vst [vmem:[#allocation14 + $0x1] sm:$0x1] %v1979
    %s1981 = scalar_lea.vmem [#allocation2], 2
    %v1982 = vld [vmem:[%s1981] ss:$8 sm:$0xf]
    %v1983 = vld [vmem:[%s1981] ss:$8 sm:$0xf0]
    %v1984 = vor.u32 %v1982, %v1983
    %1985 = vmatprep.subr.bf16.mxu0 %v1047
    %1986 = vmatpush1.bf16.msra.mxu0 %v1046
    %1987 = vmatprep.subr.bf16.mxu0 %v1039
    %1988 = vmatpush1.bf16.msra.mxu0 %v1038
    %1989 = vmatprep.subr.bf16.mxu0 %v1031
    %1990 = vmatpush1.bf16.msra.mxu0 %v1030
    %1991 = vmatprep.subr.bf16.mxu0 %v1023
    %1992 = vmatpush1.bf16.msra.mxu0 %v1022
    %1993 = vmatprep.subr.bf16.mxu0 %v1015
    %1994 = vmatpush1.bf16.msra.mxu0 %v1014
    %1995 = vmatprep.subr.bf16.mxu0 %v1007
    %1996 = vmatpush1.bf16.msra.mxu0 %v1006
    %1997 = vmatprep.subr.bf16.mxu0 %v999
    %1998 = vmatpush1.bf16.msra.mxu0 %v998
    %1999 = vmatprep.subr.bf16.mxu0 %v991
    %2000 = vmatpush1.bf16.msra.mxu0 %v990
    %2001 = vmatprep.subr.bf16.mxu0 %v1111
    %2002 = vmatpush2.bf16.msra.mxu0 %v1110
    %2003 = vmatprep.subr.bf16.mxu0 %v1103
    %2004 = vmatpush2.bf16.msra.mxu0 %v1102
    %2005 = vmatprep.subr.bf16.mxu0 %v1095
    %2006 = vmatpush2.bf16.msra.mxu0 %v1094
    %2007 = vmatprep.subr.bf16.mxu0 %v1087
    %2008 = vmatpush2.bf16.msra.mxu0 %v1086
    %2009 = vmatprep.subr.bf16.mxu0 %v1079
    %2010 = vmatpush2.bf16.msra.mxu0 %v1078
    %2011 = vmatprep.subr.bf16.mxu0 %v1071
    %2012 = vmatpush2.bf16.msra.mxu0 %v1070
    %2013 = vmatprep.subr.bf16.mxu0 %v1063
    %2014 = vmatpush2.bf16.msra.mxu0 %v1062
    %2015 = vmatprep.subr.bf16.mxu0 %v1055
    %2016 = vmatpush2.bf16.msra.mxu0 %v1054
    %2017 = vmatprep.mubr.bf16.mxu0 %v1927
    %2018 = vmatmul.mubr.bf16.gmra.mxu0 %v1926
    %v2019 = vpop.f32.mrf.mxu0
    %v2020 = vadd.f32 0.0, %v2019
    %v2021 = vpop.f32.mrf.mxu0
    %v2022 = vadd.f32 0.0, %v2021
    %v2023 = vpop.f32.mrf.mxu0
    %v2024 = vpop.f32.mrf.mxu0
    %2025 = vdwg.mxu0
    %2026 = vmatprep.subr.bf16.mxu0 %v1049
    %2027 = vmatpush1.bf16.msra.mxu0 %v1048
    %2028 = vmatprep.subr.bf16.mxu0 %v1041
    %2029 = vmatpush1.bf16.msra.mxu0 %v1040
    %2030 = vmatprep.subr.bf16.mxu0 %v1033
    %2031 = vmatpush1.bf16.msra.mxu0 %v1032
    %2032 = vmatprep.subr.bf16.mxu0 %v1025
    %2033 = vmatpush1.bf16.msra.mxu0 %v1024
    %2034 = vmatprep.subr.bf16.mxu0 %v1017
    %2035 = vmatpush1.bf16.msra.mxu0 %v1016
    %2036 = vmatprep.subr.bf16.mxu0 %v1009
    %2037 = vmatpush1.bf16.msra.mxu0 %v1008
    %2038 = vmatprep.subr.bf16.mxu0 %v1001
    %2039 = vmatpush1.bf16.msra.mxu0 %v1000
    %2040 = vmatprep.subr.bf16.mxu0 %v993
    %2041 = vmatpush1.bf16.msra.mxu0 %v992
    %2042 = vmatprep.subr.bf16.mxu0 %v1113
    %2043 = vmatpush2.bf16.msra.mxu0 %v1112
    %2044 = vmatprep.subr.bf16.mxu0 %v1105
    %2045 = vmatpush2.bf16.msra.mxu0 %v1104
    %2046 = vmatprep.subr.bf16.mxu0 %v1097
    %2047 = vmatpush2.bf16.msra.mxu0 %v1096
    %2048 = vmatprep.subr.bf16.mxu0 %v1089
    %2049 = vmatpush2.bf16.msra.mxu0 %v1088
    %2050 = vmatprep.subr.bf16.mxu0 %v1081
    %2051 = vmatpush2.bf16.msra.mxu0 %v1080
    %2052 = vmatprep.subr.bf16.mxu0 %v1073
    %2053 = vmatpush2.bf16.msra.mxu0 %v1072
    %2054 = vmatprep.subr.bf16.mxu0 %v1065
    %2055 = vmatpush2.bf16.msra.mxu0 %v1064
    %2056 = vmatprep.subr.bf16.mxu0 %v1057
    %2057 = vmatpush2.bf16.msra.mxu0 %v1056
    %2058 = vmatprep.mubr.bf16.mxu0 %v1927
    %2059 = vmatmul.mubr.bf16.gmra.mxu0 %v1926
    %v2060 = vpop.f32.mrf.mxu0
    %v2061 = vadd.f32 0.0, %v2060
    %v2062 = vpop.f32.mrf.mxu0
    %v2063 = vadd.f32 0.0, %v2062
    %v2064 = vpop.f32.mrf.mxu0
    %v2065 = vpop.f32.mrf.mxu0
    %2066 = vdwg.mxu0
    %2067 = vmatprep.subr.bf16.mxu0 %v1051
    %2068 = vmatpush1.bf16.msra.mxu0 %v1050
    %2069 = vmatprep.subr.bf16.mxu0 %v1043
    %2070 = vmatpush1.bf16.msra.mxu0 %v1042
    %2071 = vmatprep.subr.bf16.mxu0 %v1035
    %2072 = vmatpush1.bf16.msra.mxu0 %v1034
    %2073 = vmatprep.subr.bf16.mxu0 %v1027
    %2074 = vmatpush1.bf16.msra.mxu0 %v1026
    %2075 = vmatprep.subr.bf16.mxu0 %v1019
    %2076 = vmatpush1.bf16.msra.mxu0 %v1018
    %2077 = vmatprep.subr.bf16.mxu0 %v1011
    %2078 = vmatpush1.bf16.msra.mxu0 %v1010
    %2079 = vmatprep.subr.bf16.mxu0 %v1003
    %2080 = vmatpush1.bf16.msra.mxu0 %v1002
    %2081 = vmatprep.subr.bf16.mxu0 %v995
    %2082 = vmatpush1.bf16.msra.mxu0 %v994
    %2083 = vmatprep.subr.bf16.mxu0 %v1115
    %2084 = vmatpush2.bf16.msra.mxu0 %v1114
    %2085 = vmatprep.subr.bf16.mxu0 %v1107
    %2086 = vmatpush2.bf16.msra.mxu0 %v1106
    %2087 = vmatprep.subr.bf16.mxu0 %v1099
    %2088 = vmatpush2.bf16.msra.mxu0 %v1098
    %2089 = vmatprep.subr.bf16.mxu0 %v1091
    %2090 = vmatpush2.bf16.msra.mxu0 %v1090
    %2091 = vmatprep.subr.bf16.mxu0 %v1083
    %2092 = vmatpush2.bf16.msra.mxu0 %v1082
    %2093 = vmatprep.subr.bf16.mxu0 %v1075
    %2094 = vmatpush2.bf16.msra.mxu0 %v1074
    %2095 = vmatprep.subr.bf16.mxu0 %v1067
    %2096 = vmatpush2.bf16.msra.mxu0 %v1066
    %2097 = vmatprep.subr.bf16.mxu0 %v1059
    %2098 = vmatpush2.bf16.msra.mxu0 %v1058
    %2099 = vmatprep.mubr.bf16.mxu0 %v1927
    %2100 = vmatmul.mubr.bf16.gmra.mxu0 %v1926
    %v2101 = vpop.f32.mrf.mxu0
    %v2102 = vadd.f32 0.0, %v2101
    %v2103 = vpop.f32.mrf.mxu0
    %v2104 = vadd.f32 0.0, %v2103
    %v2105 = vpop.f32.mrf.mxu0
    %v2106 = vpop.f32.mrf.mxu0
    %2107 = vdwg.mxu0
    %2108 = vmatprep.subr.bf16.mxu0 %v1053
    %2109 = vmatpush1.bf16.msra.mxu0 %v1052
    %2110 = vmatprep.subr.bf16.mxu0 %v1045
    %2111 = vmatpush1.bf16.msra.mxu0 %v1044
    %2112 = vmatprep.subr.bf16.mxu0 %v1037
    %2113 = vmatpush1.bf16.msra.mxu0 %v1036
    %2114 = vmatprep.subr.bf16.mxu0 %v1029
    %2115 = vmatpush1.bf16.msra.mxu0 %v1028
    %2116 = vmatprep.subr.bf16.mxu0 %v1021
    %2117 = vmatpush1.bf16.msra.mxu0 %v1020
    %2118 = vmatprep.subr.bf16.mxu0 %v1013
    %2119 = vmatpush1.bf16.msra.mxu0 %v1012
    %2120 = vmatprep.subr.bf16.mxu0 %v1005
    %2121 = vmatpush1.bf16.msra.mxu0 %v1004
    %2122 = vmatprep.subr.bf16.mxu0 %v997
    %2123 = vmatpush1.bf16.msra.mxu0 %v996
    %2124 = vmatprep.subr.bf16.mxu0 %v1117
    %2125 = vmatpush2.bf16.msra.mxu0 %v1116
    %2126 = vmatprep.subr.bf16.mxu0 %v1109
    %2127 = vmatpush2.bf16.msra.mxu0 %v1108
    %2128 = vmatprep.subr.bf16.mxu0 %v1101
    %2129 = vmatpush2.bf16.msra.mxu0 %v1100
    %2130 = vmatprep.subr.bf16.mxu0 %v1093
    %2131 = vmatpush2.bf16.msra.mxu0 %v1092
    %2132 = vmatprep.subr.bf16.mxu0 %v1085
    %2133 = vmatpush2.bf16.msra.mxu0 %v1084
    %2134 = vmatprep.subr.bf16.mxu0 %v1077
    %2135 = vmatpush2.bf16.msra.mxu0 %v1076
    %2136 = vmatprep.subr.bf16.mxu0 %v1069
    %2137 = vmatpush2.bf16.msra.mxu0 %v1068
    %2138 = vmatprep.subr.bf16.mxu0 %v1061
    %2139 = vmatpush2.bf16.msra.mxu0 %v1060
    %2140 = vmatprep.mubr.bf16.mxu0 %v1927
    %2141 = vmatmul.mubr.bf16.gmra.mxu0 %v1926
    %v2142 = vpop.f32.mrf.mxu0
    %v2143 = vadd.f32 0.0, %v2142
    %v2144 = vpop.f32.mrf.mxu0
    %v2145 = vadd.f32 0.0, %v2144
    %v2146 = vpop.f32.mrf.mxu0
    %v2147 = vpop.f32.mrf.mxu0
    %2148 = vdwg.mxu0
    %v2157 = vcombine.low %v2020, %v2022
    %v2158 = vcombine.low %v2061, %v2063
    %v2159 = vcombine.low %v2102, %v2104
    %v2160 = vcombine.low %v2143, %v2145
    %v2162 = vunpack.c.l.s4 1966171168
    %v2163 = vunpack.c.0.s8 %v2162
    %v2164 = vlaneseq
    %v2165 = vshrl.u32 %v2164, 7
    %v2166 = vsub.s32 %v2163, %v2165
    %v2167 = vrot.slane %v2157, %v2166
    %v2169 = vunpack.c.l.s4 1966171168
    %v2170 = vunpack.c.0.s8 %v2169
    %v2171 = vlaneseq
    %v2172 = vshrl.u32 %v2171, 7
    %v2173 = vsub.s32 %v2170, %v2172
    %v2174 = vrot.slane %v2158, %v2173
    %v2176 = vunpack.c.l.s4 1966171168
    %v2177 = vunpack.c.0.s8 %v2176
    %v2178 = vlaneseq
    %v2179 = vshrl.u32 %v2178, 7
    %v2180 = vsub.s32 %v2177, %v2179
    %v2181 = vrot.slane %v2159, %v2180
    %v2183 = vunpack.c.l.s4 1966171168
    %v2184 = vunpack.c.0.s8 %v2183
    %v2185 = vlaneseq
    %v2186 = vshrl.u32 %v2185, 7
    %v2187 = vsub.s32 %v2184, %v2186
    %v2188 = vrot.slane %v2160, %v2187
    %v2189 = vcombine.low %v2167, %v2174
    %v2190 = vcombine.low %v2181, %v2188
    %v2192 = vunpack.c.l.s4 1966171168
    %v2193 = vunpack.c.0.s8 %v2192
    %v2194 = vlaneseq
    %v2195 = vshrl.u32 %v2194, 7
    %v2196 = vsub.s32 %v2193, %v2195
    %v2197 = vrot.slane %v2189, %v2196
    %v2199 = vunpack.c.l.s4 1966171168
    %v2200 = vunpack.c.0.s8 %v2199
    %v2201 = vlaneseq
    %v2202 = vshrl.u32 %v2201, 7
    %v2203 = vsub.s32 %v2200, %v2202
    %v2204 = vrot.slane %v2190, %v2203
    %v2205 = vcombine.low %v2197, %v2204
    %v2207 = vadd.f32 %v1984, %v2205
    %v2208 = vsub.f32 0.0, %v2207
    %v2209 = vmul.f32 %v2208, 1.442695
    %v2210 = vpow.pop %v2209
    %v2211 = vadd.f32 %v2210, 1.0
    %v2212 = vrcp.pop %v2211
    %v2214 = vrot.slane %v2207, 2
    %v2216 = vsub.f32 0.0, %v2214
    %v2217 = vmul.f32 %v2216, 1.442695
    %v2218 = vpow.pop %v2217
    %v2219 = vadd.f32 %v2218, 1.0
    %v2220 = vrcp.pop %v2219
    %v2221 = vrot.slane %v2207, 4
    %v2223 = vtanh.pop %v2221
    %v2224 = vrot.slane %v2207, 6
    %v2226 = vsub.f32 0.0, %v2224
    %v2227 = vmul.f32 %v2226, 1.442695
    %v2228 = vpow.pop %v2227
    %v2229 = vadd.f32 %v2228, 1.0
    %v2230 = vrcp.pop %v2229
    %v2231 = vmul.f32 %v2220, %v1912
    %v2232 = vmul.f32 %v2212, %v2223
    %v2233 = vadd.f32 %v2231, %v2232
    %v2234 = vtanh.pop %v2233
    %v2235 = vmul.f32 %v2230, %v2234
    %v2237 = vlaneseq
    %v2238 = vshrl.u32 %v2237, 7
    %v2239 = vsub.s32 0, %v2238
    %v2240 = vrot.slane %v2235, %v2239
    %v2241 = vlaneseq
    %v2242 = vshrl.u32 %v2241, 7
    %v2243 = vsub.s32 1, %v2242
    %v2244 = vrot.slane %v2235, %v2243
    %v2247 = vpack.c.bf16 %v2240, %v2240
    %v2248 = vpack.c.bf16 %v2244, %v2244
    %2249 = vmatprep.subr.bf16.mxu0 0
    %2250 = vmatpush1.bf16.msra.mxu0 %v1581
    %2251 = vmatprep.subr.bf16.mxu0 0
    %2252 = vmatpush1.bf16.msra.mxu0 %v1580
    %2253 = vmatprep.subr.bf16.mxu0 0
    %2254 = vmatpush1.bf16.msra.mxu0 %v1579
    %2255 = vmatprep.subr.bf16.mxu0 0
    %2256 = vmatpush1.bf16.msra.mxu0 %v1578
    %2257 = vmatprep.subr.bf16.mxu0 0
    %2258 = vmatpush1.bf16.msra.mxu0 %v1577
    %2259 = vmatprep.subr.bf16.mxu0 0
    %2260 = vmatpush1.bf16.msra.mxu0 %v1576
    %2261 = vmatprep.subr.bf16.mxu0 0
    %2262 = vmatpush1.bf16.msra.mxu0 %v1575
    %2263 = vmatprep.subr.bf16.mxu0 0
    %2264 = vmatpush1.bf16.msra.mxu0 %v1574
    %2265 = vmatprep.subr.bf16.mxu0 0
    %2266 = vmatpush2.bf16.msra.mxu0 %v1589
    %2267 = vmatprep.subr.bf16.mxu0 0
    %2268 = vmatpush2.bf16.msra.mxu0 %v1588
    %2269 = vmatprep.subr.bf16.mxu0 0
    %2270 = vmatpush2.bf16.msra.mxu0 %v1587
    %2271 = vmatprep.subr.bf16.mxu0 0
    %2272 = vmatpush2.bf16.msra.mxu0 %v1586
    %2273 = vmatprep.subr.bf16.mxu0 0
    %2274 = vmatpush2.bf16.msra.mxu0 %v1585
    %2275 = vmatprep.subr.bf16.mxu0 0
    %2276 = vmatpush2.bf16.msra.mxu0 %v1584
    %2277 = vmatprep.subr.bf16.mxu0 0
    %2278 = vmatpush2.bf16.msra.mxu0 %v1583
    %2279 = vmatprep.subr.bf16.mxu0 0
    %2280 = vmatpush2.bf16.msra.mxu0 %v1582
    %2281 = vmatprep.mubr.bf16.mxu0 %v2248
    %2282 = vmatmul.mubr.bf16.gmra.mxu0 %v2247
    %v2283 = vpop.f32.mrf.mxu0
    %v2284 = vadd.f32 %v587, %v2283
    %v2285 = vpop.f32.mrf.mxu0
    %v2286 = vpop.f32.mrf.mxu0
    %v2287 = vpop.f32.mrf.mxu0
    %2288 = vdwg.mxu0
    %v2289 = vsel %vm1646, %v2284, -inf
    %2290 = vmax.xlane.f32.xlu0 %v2289
    %v2291 = vpop.xlane.xlu0 %2290
    %v2292 = vsub.f32 %v2284, %v2291
    %v2293 = vmul.f32 %v2292, 1.442695
    %v2294 = vpow.pop %v2293
    %v2295 = vsel %vm1646, %v2294, 0.0
    %2296 = vadd.xlane.f32.xlu0 %v2295
    %v2297 = vpop.xlane.xlu0 %2296
    %v2298 = vlog2.pop %v2297
    %v2299 = vmul.f32 %v2298, 0.6931472
    %v2300 = vsub.f32 %v2292, %v2299
    %2301 = vst [vmem:[#allocation14 + $0x2] sm:$0x1] %v2300
    %s2302 = scalar_lea.vmem [#allocation2], 3
    %v2303 = vld [vmem:[%s2302] ss:$8 sm:$0xf]
    %v2304 = vld [vmem:[%s2302] ss:$8 sm:$0xf0]
    %v2305 = vor.u32 %v2303, %v2304
    %2306 = vmatprep.subr.bf16.mxu0 %v1047
    %2307 = vmatpush1.bf16.msra.mxu0 %v1046
    %2308 = vmatprep.subr.bf16.mxu0 %v1039
    %2309 = vmatpush1.bf16.msra.mxu0 %v1038
    %2310 = vmatprep.subr.bf16.mxu0 %v1031
    %2311 = vmatpush1.bf16.msra.mxu0 %v1030
    %2312 = vmatprep.subr.bf16.mxu0 %v1023
    %2313 = vmatpush1.bf16.msra.mxu0 %v1022
    %2314 = vmatprep.subr.bf16.mxu0 %v1015
    %2315 = vmatpush1.bf16.msra.mxu0 %v1014
    %2316 = vmatprep.subr.bf16.mxu0 %v1007
    %2317 = vmatpush1.bf16.msra.mxu0 %v1006
    %2318 = vmatprep.subr.bf16.mxu0 %v999
    %2319 = vmatpush1.bf16.msra.mxu0 %v998
    %2320 = vmatprep.subr.bf16.mxu0 %v991
    %2321 = vmatpush1.bf16.msra.mxu0 %v990
    %2322 = vmatprep.subr.bf16.mxu0 %v1111
    %2323 = vmatpush2.bf16.msra.mxu0 %v1110
    %2324 = vmatprep.subr.bf16.mxu0 %v1103
    %2325 = vmatpush2.bf16.msra.mxu0 %v1102
    %2326 = vmatprep.subr.bf16.mxu0 %v1095
    %2327 = vmatpush2.bf16.msra.mxu0 %v1094
    %2328 = vmatprep.subr.bf16.mxu0 %v1087
    %2329 = vmatpush2.bf16.msra.mxu0 %v1086
    %2330 = vmatprep.subr.bf16.mxu0 %v1079
    %2331 = vmatpush2.bf16.msra.mxu0 %v1078
    %2332 = vmatprep.subr.bf16.mxu0 %v1071
    %2333 = vmatpush2.bf16.msra.mxu0 %v1070
    %2334 = vmatprep.subr.bf16.mxu0 %v1063
    %2335 = vmatpush2.bf16.msra.mxu0 %v1062
    %2336 = vmatprep.subr.bf16.mxu0 %v1055
    %2337 = vmatpush2.bf16.msra.mxu0 %v1054
    %2338 = vmatprep.mubr.bf16.mxu0 %v2248
    %2339 = vmatmul.mubr.bf16.gmra.mxu0 %v2247
    %v2340 = vpop.f32.mrf.mxu0
    %v2341 = vadd.f32 0.0, %v2340
    %v2342 = vpop.f32.mrf.mxu0
    %v2343 = vadd.f32 0.0, %v2342
    %v2344 = vpop.f32.mrf.mxu0
    %v2345 = vpop.f32.mrf.mxu0
    %2346 = vdwg.mxu0
    %2347 = vmatprep.subr.bf16.mxu0 %v1049
    %2348 = vmatpush1.bf16.msra.mxu0 %v1048
    %2349 = vmatprep.subr.bf16.mxu0 %v1041
    %2350 = vmatpush1.bf16.msra.mxu0 %v1040
    %2351 = vmatprep.subr.bf16.mxu0 %v1033
    %2352 = vmatpush1.bf16.msra.mxu0 %v1032
    %2353 = vmatprep.subr.bf16.mxu0 %v1025
    %2354 = vmatpush1.bf16.msra.mxu0 %v1024
    %2355 = vmatprep.subr.bf16.mxu0 %v1017
    %2356 = vmatpush1.bf16.msra.mxu0 %v1016
    %2357 = vmatprep.subr.bf16.mxu0 %v1009
    %2358 = vmatpush1.bf16.msra.mxu0 %v1008
    %2359 = vmatprep.subr.bf16.mxu0 %v1001
    %2360 = vmatpush1.bf16.msra.mxu0 %v1000
    %2361 = vmatprep.subr.bf16.mxu0 %v993
    %2362 = vmatpush1.bf16.msra.mxu0 %v992
    %2363 = vmatprep.subr.bf16.mxu0 %v1113
    %2364 = vmatpush2.bf16.msra.mxu0 %v1112
    %2365 = vmatprep.subr.bf16.mxu0 %v1105
    %2366 = vmatpush2.bf16.msra.mxu0 %v1104
    %2367 = vmatprep.subr.bf16.mxu0 %v1097
    %2368 = vmatpush2.bf16.msra.mxu0 %v1096
    %2369 = vmatprep.subr.bf16.mxu0 %v1089
    %2370 = vmatpush2.bf16.msra.mxu0 %v1088
    %2371 = vmatprep.subr.bf16.mxu0 %v1081
    %2372 = vmatpush2.bf16.msra.mxu0 %v1080
    %2373 = vmatprep.subr.bf16.mxu0 %v1073
    %2374 = vmatpush2.bf16.msra.mxu0 %v1072
    %2375 = vmatprep.subr.bf16.mxu0 %v1065
    %2376 = vmatpush2.bf16.msra.mxu0 %v1064
    %2377 = vmatprep.subr.bf16.mxu0 %v1057
    %2378 = vmatpush2.bf16.msra.mxu0 %v1056
    %2379 = vmatprep.mubr.bf16.mxu0 %v2248
    %2380 = vmatmul.mubr.bf16.gmra.mxu0 %v2247
    %v2381 = vpop.f32.mrf.mxu0
    %v2382 = vadd.f32 0.0, %v2381
    %v2383 = vpop.f32.mrf.mxu0
    %v2384 = vadd.f32 0.0, %v2383
    %v2385 = vpop.f32.mrf.mxu0
    %v2386 = vpop.f32.mrf.mxu0
    %2387 = vdwg.mxu0
    %2388 = vmatprep.subr.bf16.mxu0 %v1051
    %2389 = vmatpush1.bf16.msra.mxu0 %v1050
    %2390 = vmatprep.subr.bf16.mxu0 %v1043
    %2391 = vmatpush1.bf16.msra.mxu0 %v1042
    %2392 = vmatprep.subr.bf16.mxu0 %v1035
    %2393 = vmatpush1.bf16.msra.mxu0 %v1034
    %2394 = vmatprep.subr.bf16.mxu0 %v1027
    %2395 = vmatpush1.bf16.msra.mxu0 %v1026
    %2396 = vmatprep.subr.bf16.mxu0 %v1019
    %2397 = vmatpush1.bf16.msra.mxu0 %v1018
    %2398 = vmatprep.subr.bf16.mxu0 %v1011
    %2399 = vmatpush1.bf16.msra.mxu0 %v1010
    %2400 = vmatprep.subr.bf16.mxu0 %v1003
    %2401 = vmatpush1.bf16.msra.mxu0 %v1002
    %2402 = vmatprep.subr.bf16.mxu0 %v995
    %2403 = vmatpush1.bf16.msra.mxu0 %v994
    %2404 = vmatprep.subr.bf16.mxu0 %v1115
    %2405 = vmatpush2.bf16.msra.mxu0 %v1114
    %2406 = vmatprep.subr.bf16.mxu0 %v1107
    %2407 = vmatpush2.bf16.msra.mxu0 %v1106
    %2408 = vmatprep.subr.bf16.mxu0 %v1099
    %2409 = vmatpush2.bf16.msra.mxu0 %v1098
    %2410 = vmatprep.subr.bf16.mxu0 %v1091
    %2411 = vmatpush2.bf16.msra.mxu0 %v1090
    %2412 = vmatprep.subr.bf16.mxu0 %v1083
    %2413 = vmatpush2.bf16.msra.mxu0 %v1082
    %2414 = vmatprep.subr.bf16.mxu0 %v1075
    %2415 = vmatpush2.bf16.msra.mxu0 %v1074
    %2416 = vmatprep.subr.bf16.mxu0 %v1067
    %2417 = vmatpush2.bf16.msra.mxu0 %v1066
    %2418 = vmatprep.subr.bf16.mxu0 %v1059
    %2419 = vmatpush2.bf16.msra.mxu0 %v1058
    %2420 = vmatprep.mubr.bf16.mxu0 %v2248
    %2421 = vmatmul.mubr.bf16.gmra.mxu0 %v2247
    %v2422 = vpop.f32.mrf.mxu0
    %v2423 = vadd.f32 0.0, %v2422
    %v2424 = vpop.f32.mrf.mxu0
    %v2425 = vadd.f32 0.0, %v2424
    %v2426 = vpop.f32.mrf.mxu0
    %v2427 = vpop.f32.mrf.mxu0
    %2428 = vdwg.mxu0
    %2429 = vmatprep.subr.bf16.mxu0 %v1053
    %2430 = vmatpush1.bf16.msra.mxu0 %v1052
    %2431 = vmatprep.subr.bf16.mxu0 %v1045
    %2432 = vmatpush1.bf16.msra.mxu0 %v1044
    %2433 = vmatprep.subr.bf16.mxu0 %v1037
    %2434 = vmatpush1.bf16.msra.mxu0 %v1036
    %2435 = vmatprep.subr.bf16.mxu0 %v1029
    %2436 = vmatpush1.bf16.msra.mxu0 %v1028
    %2437 = vmatprep.subr.bf16.mxu0 %v1021
    %2438 = vmatpush1.bf16.msra.mxu0 %v1020
    %2439 = vmatprep.subr.bf16.mxu0 %v1013
    %2440 = vmatpush1.bf16.msra.mxu0 %v1012
    %2441 = vmatprep.subr.bf16.mxu0 %v1005
    %2442 = vmatpush1.bf16.msra.mxu0 %v1004
    %2443 = vmatprep.subr.bf16.mxu0 %v997
    %2444 = vmatpush1.bf16.msra.mxu0 %v996
    %2445 = vmatprep.subr.bf16.mxu0 %v1117
    %2446 = vmatpush2.bf16.msra.mxu0 %v1116
    %2447 = vmatprep.subr.bf16.mxu0 %v1109
    %2448 = vmatpush2.bf16.msra.mxu0 %v1108
    %2449 = vmatprep.subr.bf16.mxu0 %v1101
    %2450 = vmatpush2.bf16.msra.mxu0 %v1100
    %2451 = vmatprep.subr.bf16.mxu0 %v1093
    %2452 = vmatpush2.bf16.msra.mxu0 %v1092
    %2453 = vmatprep.subr.bf16.mxu0 %v1085
    %2454 = vmatpush2.bf16.msra.mxu0 %v1084
    %2455 = vmatprep.subr.bf16.mxu0 %v1077
    %2456 = vmatpush2.bf16.msra.mxu0 %v1076
    %2457 = vmatprep.subr.bf16.mxu0 %v1069
    %2458 = vmatpush2.bf16.msra.mxu0 %v1068
    %2459 = vmatprep.subr.bf16.mxu0 %v1061
    %2460 = vmatpush2.bf16.msra.mxu0 %v1060
    %2461 = vmatprep.mubr.bf16.mxu0 %v2248
    %2462 = vmatmul.mubr.bf16.gmra.mxu0 %v2247
    %v2463 = vpop.f32.mrf.mxu0
    %v2464 = vadd.f32 0.0, %v2463
    %v2465 = vpop.f32.mrf.mxu0
    %v2466 = vadd.f32 0.0, %v2465
    %v2467 = vpop.f32.mrf.mxu0
    %v2468 = vpop.f32.mrf.mxu0
    %2469 = vdwg.mxu0
    %v2478 = vcombine.low %v2341, %v2343
    %v2479 = vcombine.low %v2382, %v2384
    %v2480 = vcombine.low %v2423, %v2425
    %v2481 = vcombine.low %v2464, %v2466
    %v2483 = vunpack.c.l.s4 1966171168
    %v2484 = vunpack.c.0.s8 %v2483
    %v2485 = vlaneseq
    %v2486 = vshrl.u32 %v2485, 7
    %v2487 = vsub.s32 %v2484, %v2486
    %v2488 = vrot.slane %v2478, %v2487
    %v2490 = vunpack.c.l.s4 1966171168
    %v2491 = vunpack.c.0.s8 %v2490
    %v2492 = vlaneseq
    %v2493 = vshrl.u32 %v2492, 7
    %v2494 = vsub.s32 %v2491, %v2493
    %v2495 = vrot.slane %v2479, %v2494
    %v2497 = vunpack.c.l.s4 1966171168
    %v2498 = vunpack.c.0.s8 %v2497
    %v2499 = vlaneseq
    %v2500 = vshrl.u32 %v2499, 7
    %v2501 = vsub.s32 %v2498, %v2500
    %v2502 = vrot.slane %v2480, %v2501
    %v2504 = vunpack.c.l.s4 1966171168
    %v2505 = vunpack.c.0.s8 %v2504
    %v2506 = vlaneseq
    %v2507 = vshrl.u32 %v2506, 7
    %v2508 = vsub.s32 %v2505, %v2507
    %v2509 = vrot.slane %v2481, %v2508
    %v2510 = vcombine.low %v2488, %v2495
    %v2511 = vcombine.low %v2502, %v2509
    %v2513 = vunpack.c.l.s4 1966171168
    %v2514 = vunpack.c.0.s8 %v2513
    %v2515 = vlaneseq
    %v2516 = vshrl.u32 %v2515, 7
    %v2517 = vsub.s32 %v2514, %v2516
    %v2518 = vrot.slane %v2510, %v2517
    %v2520 = vunpack.c.l.s4 1966171168
    %v2521 = vunpack.c.0.s8 %v2520
    %v2522 = vlaneseq
    %v2523 = vshrl.u32 %v2522, 7
    %v2524 = vsub.s32 %v2521, %v2523
    %v2525 = vrot.slane %v2511, %v2524
    %v2526 = vcombine.low %v2518, %v2525
    %v2528 = vadd.f32 %v2305, %v2526
    %v2529 = vsub.f32 0.0, %v2528
    %v2530 = vmul.f32 %v2529, 1.442695
    %v2531 = vpow.pop %v2530
    %v2532 = vadd.f32 %v2531, 1.0
    %v2533 = vrcp.pop %v2532
    %v2535 = vrot.slane %v2528, 2
    %v2537 = vsub.f32 0.0, %v2535
    %v2538 = vmul.f32 %v2537, 1.442695
    %v2539 = vpow.pop %v2538
    %v2540 = vadd.f32 %v2539, 1.0
    %v2541 = vrcp.pop %v2540
    %v2542 = vrot.slane %v2528, 4
    %v2544 = vtanh.pop %v2542
    %v2545 = vrot.slane %v2528, 6
    %v2547 = vsub.f32 0.0, %v2545
    %v2548 = vmul.f32 %v2547, 1.442695
    %v2549 = vpow.pop %v2548
    %v2550 = vadd.f32 %v2549, 1.0
    %v2551 = vrcp.pop %v2550
    %v2552 = vmul.f32 %v2541, %v2233
    %v2553 = vmul.f32 %v2533, %v2544
    %v2554 = vadd.f32 %v2552, %v2553
    %v2555 = vtanh.pop %v2554
    %v2556 = vmul.f32 %v2551, %v2555
    %v2558 = vlaneseq
    %v2559 = vshrl.u32 %v2558, 7
    %v2560 = vsub.s32 0, %v2559
    %v2561 = vrot.slane %v2556, %v2560
    %v2562 = vlaneseq
    %v2563 = vshrl.u32 %v2562, 7
    %v2564 = vsub.s32 1, %v2563
    %v2565 = vrot.slane %v2556, %v2564
    %v2568 = vpack.c.bf16 %v2561, %v2561
    %v2569 = vpack.c.bf16 %v2565, %v2565
    %2570 = vmatprep.subr.bf16.mxu0 0
    %2571 = vmatpush1.bf16.msra.mxu0 %v1581
    %2572 = vmatprep.subr.bf16.mxu0 0
    %2573 = vmatpush1.bf16.msra.mxu0 %v1580
    %2574 = vmatprep.subr.bf16.mxu0 0
    %2575 = vmatpush1.bf16.msra.mxu0 %v1579
    %2576 = vmatprep.subr.bf16.mxu0 0
    %2577 = vmatpush1.bf16.msra.mxu0 %v1578
    %2578 = vmatprep.subr.bf16.mxu0 0
    %2579 = vmatpush1.bf16.msra.mxu0 %v1577
    %2580 = vmatprep.subr.bf16.mxu0 0
    %2581 = vmatpush1.bf16.msra.mxu0 %v1576
    %2582 = vmatprep.subr.bf16.mxu0 0
    %2583 = vmatpush1.bf16.msra.mxu0 %v1575
    %2584 = vmatprep.subr.bf16.mxu0 0
    %2585 = vmatpush1.bf16.msra.mxu0 %v1574
    %2586 = vmatprep.subr.bf16.mxu0 0
    %2587 = vmatpush2.bf16.msra.mxu0 %v1589
    %2588 = vmatprep.subr.bf16.mxu0 0
    %2589 = vmatpush2.bf16.msra.mxu0 %v1588
    %2590 = vmatprep.subr.bf16.mxu0 0
    %2591 = vmatpush2.bf16.msra.mxu0 %v1587
    %2592 = vmatprep.subr.bf16.mxu0 0
    %2593 = vmatpush2.bf16.msra.mxu0 %v1586
    %2594 = vmatprep.subr.bf16.mxu0 0
    %2595 = vmatpush2.bf16.msra.mxu0 %v1585
    %2596 = vmatprep.subr.bf16.mxu0 0
    %2597 = vmatpush2.bf16.msra.mxu0 %v1584
    %2598 = vmatprep.subr.bf16.mxu0 0
    %2599 = vmatpush2.bf16.msra.mxu0 %v1583
    %2600 = vmatprep.subr.bf16.mxu0 0
    %2601 = vmatpush2.bf16.msra.mxu0 %v1582
    %2602 = vmatprep.mubr.bf16.mxu0 %v2569
    %2603 = vmatmul.mubr.bf16.gmra.mxu0 %v2568
    %v2604 = vpop.f32.mrf.mxu0
    %v2605 = vadd.f32 %v587, %v2604
    %v2606 = vpop.f32.mrf.mxu0
    %v2607 = vpop.f32.mrf.mxu0
    %v2608 = vpop.f32.mrf.mxu0
    %2609 = vdwg.mxu0
    %v2610 = vsel %vm1646, %v2605, -inf
    %2611 = vmax.xlane.f32.xlu0 %v2610
    %v2612 = vpop.xlane.xlu0 %2611
    %v2613 = vsub.f32 %v2605, %v2612
    %v2614 = vmul.f32 %v2613, 1.442695
    %v2615 = vpow.pop %v2614
    %v2616 = vsel %vm1646, %v2615, 0.0
    %2617 = vadd.xlane.f32.xlu0 %v2616
    %v2618 = vpop.xlane.xlu0 %2617
    %v2619 = vlog2.pop %v2618
    %v2620 = vmul.f32 %v2619, 0.6931472
    %v2621 = vsub.f32 %v2613, %v2620
    %2622 = vst [vmem:[#allocation14 + $0x3] sm:$0x1] %v2621
    %s2623 = scalar_lea.vmem [#allocation2], 4
    %v2624 = vld [vmem:[%s2623] ss:$8 sm:$0xf]
    %v2625 = vld [vmem:[%s2623] ss:$8 sm:$0xf0]
    %v2626 = vor.u32 %v2624, %v2625
    %2627 = vmatprep.subr.bf16.mxu0 %v1047
    %2628 = vmatpush1.bf16.msra.mxu0 %v1046
    %2629 = vmatprep.subr.bf16.mxu0 %v1039
    %2630 = vmatpush1.bf16.msra.mxu0 %v1038
    %2631 = vmatprep.subr.bf16.mxu0 %v1031
    %2632 = vmatpush1.bf16.msra.mxu0 %v1030
    %2633 = vmatprep.subr.bf16.mxu0 %v1023
    %2634 = vmatpush1.bf16.msra.mxu0 %v1022
    %2635 = vmatprep.subr.bf16.mxu0 %v1015
    %2636 = vmatpush1.bf16.msra.mxu0 %v1014
    %2637 = vmatprep.subr.bf16.mxu0 %v1007
    %2638 = vmatpush1.bf16.msra.mxu0 %v1006
    %2639 = vmatprep.subr.bf16.mxu0 %v999
    %2640 = vmatpush1.bf16.msra.mxu0 %v998
    %2641 = vmatprep.subr.bf16.mxu0 %v991
    %2642 = vmatpush1.bf16.msra.mxu0 %v990
    %2643 = vmatprep.subr.bf16.mxu0 %v1111
    %2644 = vmatpush2.bf16.msra.mxu0 %v1110
    %2645 = vmatprep.subr.bf16.mxu0 %v1103
    %2646 = vmatpush2.bf16.msra.mxu0 %v1102
    %2647 = vmatprep.subr.bf16.mxu0 %v1095
    %2648 = vmatpush2.bf16.msra.mxu0 %v1094
    %2649 = vmatprep.subr.bf16.mxu0 %v1087
    %2650 = vmatpush2.bf16.msra.mxu0 %v1086
    %2651 = vmatprep.subr.bf16.mxu0 %v1079
    %2652 = vmatpush2.bf16.msra.mxu0 %v1078
    %2653 = vmatprep.subr.bf16.mxu0 %v1071
    %2654 = vmatpush2.bf16.msra.mxu0 %v1070
    %2655 = vmatprep.subr.bf16.mxu0 %v1063
    %2656 = vmatpush2.bf16.msra.mxu0 %v1062
    %2657 = vmatprep.subr.bf16.mxu0 %v1055
    %2658 = vmatpush2.bf16.msra.mxu0 %v1054
    %2659 = vmatprep.mubr.bf16.mxu0 %v2569
    %2660 = vmatmul.mubr.bf16.gmra.mxu0 %v2568
    %v2661 = vpop.f32.mrf.mxu0
    %v2662 = vadd.f32 0.0, %v2661
    %v2663 = vpop.f32.mrf.mxu0
    %v2664 = vadd.f32 0.0, %v2663
    %v2665 = vpop.f32.mrf.mxu0
    %v2666 = vpop.f32.mrf.mxu0
    %2667 = vdwg.mxu0
    %2668 = vmatprep.subr.bf16.mxu0 %v1049
    %2669 = vmatpush1.bf16.msra.mxu0 %v1048
    %2670 = vmatprep.subr.bf16.mxu0 %v1041
    %2671 = vmatpush1.bf16.msra.mxu0 %v1040
    %2672 = vmatprep.subr.bf16.mxu0 %v1033
    %2673 = vmatpush1.bf16.msra.mxu0 %v1032
    %2674 = vmatprep.subr.bf16.mxu0 %v1025
    %2675 = vmatpush1.bf16.msra.mxu0 %v1024
    %2676 = vmatprep.subr.bf16.mxu0 %v1017
    %2677 = vmatpush1.bf16.msra.mxu0 %v1016
    %2678 = vmatprep.subr.bf16.mxu0 %v1009
    %2679 = vmatpush1.bf16.msra.mxu0 %v1008
    %2680 = vmatprep.subr.bf16.mxu0 %v1001
    %2681 = vmatpush1.bf16.msra.mxu0 %v1000
    %2682 = vmatprep.subr.bf16.mxu0 %v993
    %2683 = vmatpush1.bf16.msra.mxu0 %v992
    %2684 = vmatprep.subr.bf16.mxu0 %v1113
    %2685 = vmatpush2.bf16.msra.mxu0 %v1112
    %2686 = vmatprep.subr.bf16.mxu0 %v1105
    %2687 = vmatpush2.bf16.msra.mxu0 %v1104
    %2688 = vmatprep.subr.bf16.mxu0 %v1097
    %2689 = vmatpush2.bf16.msra.mxu0 %v1096
    %2690 = vmatprep.subr.bf16.mxu0 %v1089
    %2691 = vmatpush2.bf16.msra.mxu0 %v1088
    %2692 = vmatprep.subr.bf16.mxu0 %v1081
    %2693 = vmatpush2.bf16.msra.mxu0 %v1080
    %2694 = vmatprep.subr.bf16.mxu0 %v1073
    %2695 = vmatpush2.bf16.msra.mxu0 %v1072
    %2696 = vmatprep.subr.bf16.mxu0 %v1065
    %2697 = vmatpush2.bf16.msra.mxu0 %v1064
    %2698 = vmatprep.subr.bf16.mxu0 %v1057
    %2699 = vmatpush2.bf16.msra.mxu0 %v1056
    %2700 = vmatprep.mubr.bf16.mxu0 %v2569
    %2701 = vmatmul.mubr.bf16.gmra.mxu0 %v2568
    %v2702 = vpop.f32.mrf.mxu0
    %v2703 = vadd.f32 0.0, %v2702
    %v2704 = vpop.f32.mrf.mxu0
    %v2705 = vadd.f32 0.0, %v2704
    %v2706 = vpop.f32.mrf.mxu0
    %v2707 = vpop.f32.mrf.mxu0
    %2708 = vdwg.mxu0
    %2709 = vmatprep.subr.bf16.mxu0 %v1051
    %2710 = vmatpush1.bf16.msra.mxu0 %v1050
    %2711 = vmatprep.subr.bf16.mxu0 %v1043
    %2712 = vmatpush1.bf16.msra.mxu0 %v1042
    %2713 = vmatprep.subr.bf16.mxu0 %v1035
    %2714 = vmatpush1.bf16.msra.mxu0 %v1034
    %2715 = vmatprep.subr.bf16.mxu0 %v1027
    %2716 = vmatpush1.bf16.msra.mxu0 %v1026
    %2717 = vmatprep.subr.bf16.mxu0 %v1019
    %2718 = vmatpush1.bf16.msra.mxu0 %v1018
    %2719 = vmatprep.subr.bf16.mxu0 %v1011
    %2720 = vmatpush1.bf16.msra.mxu0 %v1010
    %2721 = vmatprep.subr.bf16.mxu0 %v1003
    %2722 = vmatpush1.bf16.msra.mxu0 %v1002
    %2723 = vmatprep.subr.bf16.mxu0 %v995
    %2724 = vmatpush1.bf16.msra.mxu0 %v994
    %2725 = vmatprep.subr.bf16.mxu0 %v1115
    %2726 = vmatpush2.bf16.msra.mxu0 %v1114
    %2727 = vmatprep.subr.bf16.mxu0 %v1107
    %2728 = vmatpush2.bf16.msra.mxu0 %v1106
    %2729 = vmatprep.subr.bf16.mxu0 %v1099
    %2730 = vmatpush2.bf16.msra.mxu0 %v1098
    %2731 = vmatprep.subr.bf16.mxu0 %v1091
    %2732 = vmatpush2.bf16.msra.mxu0 %v1090
    %2733 = vmatprep.subr.bf16.mxu0 %v1083
    %2734 = vmatpush2.bf16.msra.mxu0 %v1082
    %2735 = vmatprep.subr.bf16.mxu0 %v1075
    %2736 = vmatpush2.bf16.msra.mxu0 %v1074
    %2737 = vmatprep.subr.bf16.mxu0 %v1067
    %2738 = vmatpush2.bf16.msra.mxu0 %v1066
    %2739 = vmatprep.subr.bf16.mxu0 %v1059
    %2740 = vmatpush2.bf16.msra.mxu0 %v1058
    %2741 = vmatprep.mubr.bf16.mxu0 %v2569
    %2742 = vmatmul.mubr.bf16.gmra.mxu0 %v2568
    %v2743 = vpop.f32.mrf.mxu0
    %v2744 = vadd.f32 0.0, %v2743
    %v2745 = vpop.f32.mrf.mxu0
    %v2746 = vadd.f32 0.0, %v2745
    %v2747 = vpop.f32.mrf.mxu0
    %v2748 = vpop.f32.mrf.mxu0
    %2749 = vdwg.mxu0
    %2750 = vmatprep.subr.bf16.mxu0 %v1053
    %2751 = vmatpush1.bf16.msra.mxu0 %v1052
    %2752 = vmatprep.subr.bf16.mxu0 %v1045
    %2753 = vmatpush1.bf16.msra.mxu0 %v1044
    %2754 = vmatprep.subr.bf16.mxu0 %v1037
    %2755 = vmatpush1.bf16.msra.mxu0 %v1036
    %2756 = vmatprep.subr.bf16.mxu0 %v1029
    %2757 = vmatpush1.bf16.msra.mxu0 %v1028
    %2758 = vmatprep.subr.bf16.mxu0 %v1021
    %2759 = vmatpush1.bf16.msra.mxu0 %v1020
    %2760 = vmatprep.subr.bf16.mxu0 %v1013
    %2761 = vmatpush1.bf16.msra.mxu0 %v1012
    %2762 = vmatprep.subr.bf16.mxu0 %v1005
    %2763 = vmatpush1.bf16.msra.mxu0 %v1004
    %2764 = vmatprep.subr.bf16.mxu0 %v997
    %2765 = vmatpush1.bf16.msra.mxu0 %v996
    %2766 = vmatprep.subr.bf16.mxu0 %v1117
    %2767 = vmatpush2.bf16.msra.mxu0 %v1116
    %2768 = vmatprep.subr.bf16.mxu0 %v1109
    %2769 = vmatpush2.bf16.msra.mxu0 %v1108
    %2770 = vmatprep.subr.bf16.mxu0 %v1101
    %2771 = vmatpush2.bf16.msra.mxu0 %v1100
    %2772 = vmatprep.subr.bf16.mxu0 %v1093
    %2773 = vmatpush2.bf16.msra.mxu0 %v1092
    %2774 = vmatprep.subr.bf16.mxu0 %v1085
    %2775 = vmatpush2.bf16.msra.mxu0 %v1084
    %2776 = vmatprep.subr.bf16.mxu0 %v1077
    %2777 = vmatpush2.bf16.msra.mxu0 %v1076
    %2778 = vmatprep.subr.bf16.mxu0 %v1069
    %2779 = vmatpush2.bf16.msra.mxu0 %v1068
    %2780 = vmatprep.subr.bf16.mxu0 %v1061
    %2781 = vmatpush2.bf16.msra.mxu0 %v1060
    %2782 = vmatprep.mubr.bf16.mxu0 %v2569
    %2783 = vmatmul.mubr.bf16.gmra.mxu0 %v2568
    %v2784 = vpop.f32.mrf.mxu0
    %v2785 = vadd.f32 0.0, %v2784
    %v2786 = vpop.f32.mrf.mxu0
    %v2787 = vadd.f32 0.0, %v2786
    %v2788 = vpop.f32.mrf.mxu0
    %v2789 = vpop.f32.mrf.mxu0
    %2790 = vdwg.mxu0
    %v2799 = vcombine.low %v2662, %v2664
    %v2800 = vcombine.low %v2703, %v2705
    %v2801 = vcombine.low %v2744, %v2746
    %v2802 = vcombine.low %v2785, %v2787
    %v2804 = vunpack.c.l.s4 1966171168
    %v2805 = vunpack.c.0.s8 %v2804
    %v2806 = vlaneseq
    %v2807 = vshrl.u32 %v2806, 7
    %v2808 = vsub.s32 %v2805, %v2807
    %v2809 = vrot.slane %v2799, %v2808
    %v2811 = vunpack.c.l.s4 1966171168
    %v2812 = vunpack.c.0.s8 %v2811
    %v2813 = vlaneseq
    %v2814 = vshrl.u32 %v2813, 7
    %v2815 = vsub.s32 %v2812, %v2814
    %v2816 = vrot.slane %v2800, %v2815
    %v2818 = vunpack.c.l.s4 1966171168
    %v2819 = vunpack.c.0.s8 %v2818
    %v2820 = vlaneseq
    %v2821 = vshrl.u32 %v2820, 7
    %v2822 = vsub.s32 %v2819, %v2821
    %v2823 = vrot.slane %v2801, %v2822
    %v2825 = vunpack.c.l.s4 1966171168
    %v2826 = vunpack.c.0.s8 %v2825
    %v2827 = vlaneseq
    %v2828 = vshrl.u32 %v2827, 7
    %v2829 = vsub.s32 %v2826, %v2828
    %v2830 = vrot.slane %v2802, %v2829
    %v2831 = vcombine.low %v2809, %v2816
    %v2832 = vcombine.low %v2823, %v2830
    %v2834 = vunpack.c.l.s4 1966171168
    %v2835 = vunpack.c.0.s8 %v2834
    %v2836 = vlaneseq
    %v2837 = vshrl.u32 %v2836, 7
    %v2838 = vsub.s32 %v2835, %v2837
    %v2839 = vrot.slane %v2831, %v2838
    %v2841 = vunpack.c.l.s4 1966171168
    %v2842 = vunpack.c.0.s8 %v2841
    %v2843 = vlaneseq
    %v2844 = vshrl.u32 %v2843, 7
    %v2845 = vsub.s32 %v2842, %v2844
    %v2846 = vrot.slane %v2832, %v2845
    %v2847 = vcombine.low %v2839, %v2846
    %v2849 = vadd.f32 %v2626, %v2847
    %v2850 = vsub.f32 0.0, %v2849
    %v2851 = vmul.f32 %v2850, 1.442695
    %v2852 = vpow.pop %v2851
    %v2853 = vadd.f32 %v2852, 1.0
    %v2854 = vrcp.pop %v2853
    %v2856 = vrot.slane %v2849, 2
    %v2858 = vsub.f32 0.0, %v2856
    %v2859 = vmul.f32 %v2858, 1.442695
    %v2860 = vpow.pop %v2859
    %v2861 = vadd.f32 %v2860, 1.0
    %v2862 = vrcp.pop %v2861
    %v2863 = vrot.slane %v2849, 4
    %v2865 = vtanh.pop %v2863
    %v2866 = vrot.slane %v2849, 6
    %v2868 = vsub.f32 0.0, %v2866
    %v2869 = vmul.f32 %v2868, 1.442695
    %v2870 = vpow.pop %v2869
    %v2871 = vadd.f32 %v2870, 1.0
    %v2872 = vrcp.pop %v2871
    %v2873 = vmul.f32 %v2862, %v2554
    %v2874 = vmul.f32 %v2854, %v2865
    %v2875 = vadd.f32 %v2873, %v2874
    %v2876 = vtanh.pop %v2875
    %v2877 = vmul.f32 %v2872, %v2876
    %v2879 = vlaneseq
    %v2880 = vshrl.u32 %v2879, 7
    %v2881 = vsub.s32 0, %v2880
    %v2882 = vrot.slane %v2877, %v2881
    %v2883 = vlaneseq
    %v2884 = vshrl.u32 %v2883, 7
    %v2885 = vsub.s32 1, %v2884
    %v2886 = vrot.slane %v2877, %v2885
    %v2889 = vpack.c.bf16 %v2882, %v2882
    %v2890 = vpack.c.bf16 %v2886, %v2886
    %2891 = vmatprep.subr.bf16.mxu0 0
    %2892 = vmatpush1.bf16.msra.mxu0 %v1581
    %2893 = vmatprep.subr.bf16.mxu0 0
    %2894 = vmatpush1.bf16.msra.mxu0 %v1580
    %2895 = vmatprep.subr.bf16.mxu0 0
    %2896 = vmatpush1.bf16.msra.mxu0 %v1579
    %2897 = vmatprep.subr.bf16.mxu0 0
    %2898 = vmatpush1.bf16.msra.mxu0 %v1578
    %2899 = vmatprep.subr.bf16.mxu0 0
    %2900 = vmatpush1.bf16.msra.mxu0 %v1577
    %2901 = vmatprep.subr.bf16.mxu0 0
    %2902 = vmatpush1.bf16.msra.mxu0 %v1576
    %2903 = vmatprep.subr.bf16.mxu0 0
    %2904 = vmatpush1.bf16.msra.mxu0 %v1575
    %2905 = vmatprep.subr.bf16.mxu0 0
    %2906 = vmatpush1.bf16.msra.mxu0 %v1574
    %2907 = vmatprep.subr.bf16.mxu0 0
    %2908 = vmatpush2.bf16.msra.mxu0 %v1589
    %2909 = vmatprep.subr.bf16.mxu0 0
    %2910 = vmatpush2.bf16.msra.mxu0 %v1588
    %2911 = vmatprep.subr.bf16.mxu0 0
    %2912 = vmatpush2.bf16.msra.mxu0 %v1587
    %2913 = vmatprep.subr.bf16.mxu0 0
    %2914 = vmatpush2.bf16.msra.mxu0 %v1586
    %2915 = vmatprep.subr.bf16.mxu0 0
    %2916 = vmatpush2.bf16.msra.mxu0 %v1585
    %2917 = vmatprep.subr.bf16.mxu0 0
    %2918 = vmatpush2.bf16.msra.mxu0 %v1584
    %2919 = vmatprep.subr.bf16.mxu0 0
    %2920 = vmatpush2.bf16.msra.mxu0 %v1583
    %2921 = vmatprep.subr.bf16.mxu0 0
    %2922 = vmatpush2.bf16.msra.mxu0 %v1582
    %2923 = vmatprep.mubr.bf16.mxu0 %v2890
    %2924 = vmatmul.mubr.bf16.gmra.mxu0 %v2889
    %v2925 = vpop.f32.mrf.mxu0
    %v2926 = vadd.f32 %v587, %v2925
    %v2927 = vpop.f32.mrf.mxu0
    %v2928 = vpop.f32.mrf.mxu0
    %v2929 = vpop.f32.mrf.mxu0
    %2930 = vdwg.mxu0
    %v2931 = vsel %vm1646, %v2926, -inf
    %2932 = vmax.xlane.f32.xlu0 %v2931
    %v2933 = vpop.xlane.xlu0 %2932
    %v2934 = vsub.f32 %v2926, %v2933
    %v2935 = vmul.f32 %v2934, 1.442695
    %v2936 = vpow.pop %v2935
    %v2937 = vsel %vm1646, %v2936, 0.0
    %2938 = vadd.xlane.f32.xlu0 %v2937
    %v2939 = vpop.xlane.xlu0 %2938
    %v2940 = vlog2.pop %v2939
    %v2941 = vmul.f32 %v2940, 0.6931472
    %v2942 = vsub.f32 %v2934, %v2941
    %2943 = vst [vmem:[#allocation14 + $0x4] sm:$0x1] %v2942
    %s2944 = scalar_lea.vmem [#allocation2], 5
    %v2945 = vld [vmem:[%s2944] ss:$8 sm:$0xf]
    %v2946 = vld [vmem:[%s2944] ss:$8 sm:$0xf0]
    %v2947 = vor.u32 %v2945, %v2946
    %2948 = vmatprep.subr.bf16.mxu0 %v1047
    %2949 = vmatpush1.bf16.msra.mxu0 %v1046
    %2950 = vmatprep.subr.bf16.mxu0 %v1039
    %2951 = vmatpush1.bf16.msra.mxu0 %v1038
    %2952 = vmatprep.subr.bf16.mxu0 %v1031
    %2953 = vmatpush1.bf16.msra.mxu0 %v1030
    %2954 = vmatprep.subr.bf16.mxu0 %v1023
    %2955 = vmatpush1.bf16.msra.mxu0 %v1022
    %2956 = vmatprep.subr.bf16.mxu0 %v1015
    %2957 = vmatpush1.bf16.msra.mxu0 %v1014
    %2958 = vmatprep.subr.bf16.mxu0 %v1007
    %2959 = vmatpush1.bf16.msra.mxu0 %v1006
    %2960 = vmatprep.subr.bf16.mxu0 %v999
    %2961 = vmatpush1.bf16.msra.mxu0 %v998
    %2962 = vmatprep.subr.bf16.mxu0 %v991
    %2963 = vmatpush1.bf16.msra.mxu0 %v990
    %2964 = vmatprep.subr.bf16.mxu0 %v1111
    %2965 = vmatpush2.bf16.msra.mxu0 %v1110
    %2966 = vmatprep.subr.bf16.mxu0 %v1103
    %2967 = vmatpush2.bf16.msra.mxu0 %v1102
    %2968 = vmatprep.subr.bf16.mxu0 %v1095
    %2969 = vmatpush2.bf16.msra.mxu0 %v1094
    %2970 = vmatprep.subr.bf16.mxu0 %v1087
    %2971 = vmatpush2.bf16.msra.mxu0 %v1086
    %2972 = vmatprep.subr.bf16.mxu0 %v1079
    %2973 = vmatpush2.bf16.msra.mxu0 %v1078
    %2974 = vmatprep.subr.bf16.mxu0 %v1071
    %2975 = vmatpush2.bf16.msra.mxu0 %v1070
    %2976 = vmatprep.subr.bf16.mxu0 %v1063
    %2977 = vmatpush2.bf16.msra.mxu0 %v1062
    %2978 = vmatprep.subr.bf16.mxu0 %v1055
    %2979 = vmatpush2.bf16.msra.mxu0 %v1054
    %2980 = vmatprep.mubr.bf16.mxu0 %v2890
    %2981 = vmatmul.mubr.bf16.gmra.mxu0 %v2889
    %v2982 = vpop.f32.mrf.mxu0
    %v2983 = vadd.f32 0.0, %v2982
    %v2984 = vpop.f32.mrf.mxu0
    %v2985 = vadd.f32 0.0, %v2984
    %v2986 = vpop.f32.mrf.mxu0
    %v2987 = vpop.f32.mrf.mxu0
    %2988 = vdwg.mxu0
    %2989 = vmatprep.subr.bf16.mxu0 %v1049
    %2990 = vmatpush1.bf16.msra.mxu0 %v1048
    %2991 = vmatprep.subr.bf16.mxu0 %v1041
    %2992 = vmatpush1.bf16.msra.mxu0 %v1040
    %2993 = vmatprep.subr.bf16.mxu0 %v1033
    %2994 = vmatpush1.bf16.msra.mxu0 %v1032
    %2995 = vmatprep.subr.bf16.mxu0 %v1025
    %2996 = vmatpush1.bf16.msra.mxu0 %v1024
    %2997 = vmatprep.subr.bf16.mxu0 %v1017
    %2998 = vmatpush1.bf16.msra.mxu0 %v1016
    %2999 = vmatprep.subr.bf16.mxu0 %v1009
    %3000 = vmatpush1.bf16.msra.mxu0 %v1008
    %3001 = vmatprep.subr.bf16.mxu0 %v1001
    %3002 = vmatpush1.bf16.msra.mxu0 %v1000
    %3003 = vmatprep.subr.bf16.mxu0 %v993
    %3004 = vmatpush1.bf16.msra.mxu0 %v992
    %3005 = vmatprep.subr.bf16.mxu0 %v1113
    %3006 = vmatpush2.bf16.msra.mxu0 %v1112
    %3007 = vmatprep.subr.bf16.mxu0 %v1105
    %3008 = vmatpush2.bf16.msra.mxu0 %v1104
    %3009 = vmatprep.subr.bf16.mxu0 %v1097
    %3010 = vmatpush2.bf16.msra.mxu0 %v1096
    %3011 = vmatprep.subr.bf16.mxu0 %v1089
    %3012 = vmatpush2.bf16.msra.mxu0 %v1088
    %3013 = vmatprep.subr.bf16.mxu0 %v1081
    %3014 = vmatpush2.bf16.msra.mxu0 %v1080
    %3015 = vmatprep.subr.bf16.mxu0 %v1073
    %3016 = vmatpush2.bf16.msra.mxu0 %v1072
    %3017 = vmatprep.subr.bf16.mxu0 %v1065
    %3018 = vmatpush2.bf16.msra.mxu0 %v1064
    %3019 = vmatprep.subr.bf16.mxu0 %v1057
    %3020 = vmatpush2.bf16.msra.mxu0 %v1056
    %3021 = vmatprep.mubr.bf16.mxu0 %v2890
    %3022 = vmatmul.mubr.bf16.gmra.mxu0 %v2889
    %v3023 = vpop.f32.mrf.mxu0
    %v3024 = vadd.f32 0.0, %v3023
    %v3025 = vpop.f32.mrf.mxu0
    %v3026 = vadd.f32 0.0, %v3025
    %v3027 = vpop.f32.mrf.mxu0
    %v3028 = vpop.f32.mrf.mxu0
    %3029 = vdwg.mxu0
    %3030 = vmatprep.subr.bf16.mxu0 %v1051
    %3031 = vmatpush1.bf16.msra.mxu0 %v1050
    %3032 = vmatprep.subr.bf16.mxu0 %v1043
    %3033 = vmatpush1.bf16.msra.mxu0 %v1042
    %3034 = vmatprep.subr.bf16.mxu0 %v1035
    %3035 = vmatpush1.bf16.msra.mxu0 %v1034
    %3036 = vmatprep.subr.bf16.mxu0 %v1027
    %3037 = vmatpush1.bf16.msra.mxu0 %v1026
    %3038 = vmatprep.subr.bf16.mxu0 %v1019
    %3039 = vmatpush1.bf16.msra.mxu0 %v1018
    %3040 = vmatprep.subr.bf16.mxu0 %v1011
    %3041 = vmatpush1.bf16.msra.mxu0 %v1010
    %3042 = vmatprep.subr.bf16.mxu0 %v1003
    %3043 = vmatpush1.bf16.msra.mxu0 %v1002
    %3044 = vmatprep.subr.bf16.mxu0 %v995
    %3045 = vmatpush1.bf16.msra.mxu0 %v994
    %3046 = vmatprep.subr.bf16.mxu0 %v1115
    %3047 = vmatpush2.bf16.msra.mxu0 %v1114
    %3048 = vmatprep.subr.bf16.mxu0 %v1107
    %3049 = vmatpush2.bf16.msra.mxu0 %v1106
    %3050 = vmatprep.subr.bf16.mxu0 %v1099
    %3051 = vmatpush2.bf16.msra.mxu0 %v1098
    %3052 = vmatprep.subr.bf16.mxu0 %v1091
    %3053 = vmatpush2.bf16.msra.mxu0 %v1090
    %3054 = vmatprep.subr.bf16.mxu0 %v1083
    %3055 = vmatpush2.bf16.msra.mxu0 %v1082
    %3056 = vmatprep.subr.bf16.mxu0 %v1075
    %3057 = vmatpush2.bf16.msra.mxu0 %v1074
    %3058 = vmatprep.subr.bf16.mxu0 %v1067
    %3059 = vmatpush2.bf16.msra.mxu0 %v1066
    %3060 = vmatprep.subr.bf16.mxu0 %v1059
    %3061 = vmatpush2.bf16.msra.mxu0 %v1058
    %3062 = vmatprep.mubr.bf16.mxu0 %v2890
    %3063 = vmatmul.mubr.bf16.gmra.mxu0 %v2889
    %v3064 = vpop.f32.mrf.mxu0
    %v3065 = vadd.f32 0.0, %v3064
    %v3066 = vpop.f32.mrf.mxu0
    %v3067 = vadd.f32 0.0, %v3066
    %v3068 = vpop.f32.mrf.mxu0
    %v3069 = vpop.f32.mrf.mxu0
    %3070 = vdwg.mxu0
    %3071 = vmatprep.subr.bf16.mxu0 %v1053
    %3072 = vmatpush1.bf16.msra.mxu0 %v1052
    %3073 = vmatprep.subr.bf16.mxu0 %v1045
    %3074 = vmatpush1.bf16.msra.mxu0 %v1044
    %3075 = vmatprep.subr.bf16.mxu0 %v1037
    %3076 = vmatpush1.bf16.msra.mxu0 %v1036
    %3077 = vmatprep.subr.bf16.mxu0 %v1029
    %3078 = vmatpush1.bf16.msra.mxu0 %v1028
    %3079 = vmatprep.subr.bf16.mxu0 %v1021
    %3080 = vmatpush1.bf16.msra.mxu0 %v1020
    %3081 = vmatprep.subr.bf16.mxu0 %v1013
    %3082 = vmatpush1.bf16.msra.mxu0 %v1012
    %3083 = vmatprep.subr.bf16.mxu0 %v1005
    %3084 = vmatpush1.bf16.msra.mxu0 %v1004
    %3085 = vmatprep.subr.bf16.mxu0 %v997
    %3086 = vmatpush1.bf16.msra.mxu0 %v996
    %3087 = vmatprep.subr.bf16.mxu0 %v1117
    %3088 = vmatpush2.bf16.msra.mxu0 %v1116
    %3089 = vmatprep.subr.bf16.mxu0 %v1109
    %3090 = vmatpush2.bf16.msra.mxu0 %v1108
    %3091 = vmatprep.subr.bf16.mxu0 %v1101
    %3092 = vmatpush2.bf16.msra.mxu0 %v1100
    %3093 = vmatprep.subr.bf16.mxu0 %v1093
    %3094 = vmatpush2.bf16.msra.mxu0 %v1092
    %3095 = vmatprep.subr.bf16.mxu0 %v1085
    %3096 = vmatpush2.bf16.msra.mxu0 %v1084
    %3097 = vmatprep.subr.bf16.mxu0 %v1077
    %3098 = vmatpush2.bf16.msra.mxu0 %v1076
    %3099 = vmatprep.subr.bf16.mxu0 %v1069
    %3100 = vmatpush2.bf16.msra.mxu0 %v1068
    %3101 = vmatprep.subr.bf16.mxu0 %v1061
    %3102 = vmatpush2.bf16.msra.mxu0 %v1060
    %3103 = vmatprep.mubr.bf16.mxu0 %v2890
    %3104 = vmatmul.mubr.bf16.gmra.mxu0 %v2889
    %v3105 = vpop.f32.mrf.mxu0
    %v3106 = vadd.f32 0.0, %v3105
    %v3107 = vpop.f32.mrf.mxu0
    %v3108 = vadd.f32 0.0, %v3107
    %v3109 = vpop.f32.mrf.mxu0
    %v3110 = vpop.f32.mrf.mxu0
    %3111 = vdwg.mxu0
    %v3120 = vcombine.low %v2983, %v2985
    %v3121 = vcombine.low %v3024, %v3026
    %v3122 = vcombine.low %v3065, %v3067
    %v3123 = vcombine.low %v3106, %v3108
    %v3125 = vunpack.c.l.s4 1966171168
    %v3126 = vunpack.c.0.s8 %v3125
    %v3127 = vlaneseq
    %v3128 = vshrl.u32 %v3127, 7
    %v3129 = vsub.s32 %v3126, %v3128
    %v3130 = vrot.slane %v3120, %v3129
    %v3132 = vunpack.c.l.s4 1966171168
    %v3133 = vunpack.c.0.s8 %v3132
    %v3134 = vlaneseq
    %v3135 = vshrl.u32 %v3134, 7
    %v3136 = vsub.s32 %v3133, %v3135
    %v3137 = vrot.slane %v3121, %v3136
    %v3139 = vunpack.c.l.s4 1966171168
    %v3140 = vunpack.c.0.s8 %v3139
    %v3141 = vlaneseq
    %v3142 = vshrl.u32 %v3141, 7
    %v3143 = vsub.s32 %v3140, %v3142
    %v3144 = vrot.slane %v3122, %v3143
    %v3146 = vunpack.c.l.s4 1966171168
    %v3147 = vunpack.c.0.s8 %v3146
    %v3148 = vlaneseq
    %v3149 = vshrl.u32 %v3148, 7
    %v3150 = vsub.s32 %v3147, %v3149
    %v3151 = vrot.slane %v3123, %v3150
    %v3152 = vcombine.low %v3130, %v3137
    %v3153 = vcombine.low %v3144, %v3151
    %v3155 = vunpack.c.l.s4 1966171168
    %v3156 = vunpack.c.0.s8 %v3155
    %v3157 = vlaneseq
    %v3158 = vshrl.u32 %v3157, 7
    %v3159 = vsub.s32 %v3156, %v3158
    %v3160 = vrot.slane %v3152, %v3159
    %v3162 = vunpack.c.l.s4 1966171168
    %v3163 = vunpack.c.0.s8 %v3162
    %v3164 = vlaneseq
    %v3165 = vshrl.u32 %v3164, 7
    %v3166 = vsub.s32 %v3163, %v3165
    %v3167 = vrot.slane %v3153, %v3166
    %v3168 = vcombine.low %v3160, %v3167
    %v3170 = vadd.f32 %v2947, %v3168
    %v3171 = vsub.f32 0.0, %v3170
    %v3172 = vmul.f32 %v3171, 1.442695
    %v3173 = vpow.pop %v3172
    %v3174 = vadd.f32 %v3173, 1.0
    %v3175 = vrcp.pop %v3174
    %v3177 = vrot.slane %v3170, 2
    %v3179 = vsub.f32 0.0, %v3177
    %v3180 = vmul.f32 %v3179, 1.442695
    %v3181 = vpow.pop %v3180
    %v3182 = vadd.f32 %v3181, 1.0
    %v3183 = vrcp.pop %v3182
    %v3184 = vrot.slane %v3170, 4
    %v3186 = vtanh.pop %v3184
    %v3187 = vrot.slane %v3170, 6
    %v3189 = vsub.f32 0.0, %v3187
    %v3190 = vmul.f32 %v3189, 1.442695
    %v3191 = vpow.pop %v3190
    %v3192 = vadd.f32 %v3191, 1.0
    %v3193 = vrcp.pop %v3192
    %v3194 = vmul.f32 %v3183, %v2875
    %v3195 = vmul.f32 %v3175, %v3186
    %v3196 = vadd.f32 %v3194, %v3195
    %v3197 = vtanh.pop %v3196
    %v3198 = vmul.f32 %v3193, %v3197
    %v3200 = vlaneseq
    %v3201 = vshrl.u32 %v3200, 7
    %v3202 = vsub.s32 0, %v3201
    %v3203 = vrot.slane %v3198, %v3202
    %v3204 = vlaneseq
    %v3205 = vshrl.u32 %v3204, 7
    %v3206 = vsub.s32 1, %v3205
    %v3207 = vrot.slane %v3198, %v3206
    %v3210 = vpack.c.bf16 %v3203, %v3203
    %v3211 = vpack.c.bf16 %v3207, %v3207
    %3212 = vmatprep.subr.bf16.mxu0 0
    %3213 = vmatpush1.bf16.msra.mxu0 %v1581
    %3214 = vmatprep.subr.bf16.mxu0 0
    %3215 = vmatpush1.bf16.msra.mxu0 %v1580
    %3216 = vmatprep.subr.bf16.mxu0 0
    %3217 = vmatpush1.bf16.msra.mxu0 %v1579
    %3218 = vmatprep.subr.bf16.mxu0 0
    %3219 = vmatpush1.bf16.msra.mxu0 %v1578
    %3220 = vmatprep.subr.bf16.mxu0 0
    %3221 = vmatpush1.bf16.msra.mxu0 %v1577
    %3222 = vmatprep.subr.bf16.mxu0 0
    %3223 = vmatpush1.bf16.msra.mxu0 %v1576
    %3224 = vmatprep.subr.bf16.mxu0 0
    %3225 = vmatpush1.bf16.msra.mxu0 %v1575
    %3226 = vmatprep.subr.bf16.mxu0 0
    %3227 = vmatpush1.bf16.msra.mxu0 %v1574
    %3228 = vmatprep.subr.bf16.mxu0 0
    %3229 = vmatpush2.bf16.msra.mxu0 %v1589
    %3230 = vmatprep.subr.bf16.mxu0 0
    %3231 = vmatpush2.bf16.msra.mxu0 %v1588
    %3232 = vmatprep.subr.bf16.mxu0 0
    %3233 = vmatpush2.bf16.msra.mxu0 %v1587
    %3234 = vmatprep.subr.bf16.mxu0 0
    %3235 = vmatpush2.bf16.msra.mxu0 %v1586
    %3236 = vmatprep.subr.bf16.mxu0 0
    %3237 = vmatpush2.bf16.msra.mxu0 %v1585
    %3238 = vmatprep.subr.bf16.mxu0 0
    %3239 = vmatpush2.bf16.msra.mxu0 %v1584
    %3240 = vmatprep.subr.bf16.mxu0 0
    %3241 = vmatpush2.bf16.msra.mxu0 %v1583
    %3242 = vmatprep.subr.bf16.mxu0 0
    %3243 = vmatpush2.bf16.msra.mxu0 %v1582
    %3244 = vmatprep.mubr.bf16.mxu0 %v3211
    %3245 = vmatmul.mubr.bf16.gmra.mxu0 %v3210
    %v3246 = vpop.f32.mrf.mxu0
    %v3247 = vadd.f32 %v587, %v3246
    %v3248 = vpop.f32.mrf.mxu0
    %v3249 = vpop.f32.mrf.mxu0
    %v3250 = vpop.f32.mrf.mxu0
    %3251 = vdwg.mxu0
    %v3252 = vsel %vm1646, %v3247, -inf
    %3253 = vmax.xlane.f32.xlu0 %v3252
    %v3254 = vpop.xlane.xlu0 %3253
    %v3255 = vsub.f32 %v3247, %v3254
    %v3256 = vmul.f32 %v3255, 1.442695
    %v3257 = vpow.pop %v3256
    %v3258 = vsel %vm1646, %v3257, 0.0
    %3259 = vadd.xlane.f32.xlu0 %v3258
    %v3260 = vpop.xlane.xlu0 %3259
    %v3261 = vlog2.pop %v3260
    %v3262 = vmul.f32 %v3261, 0.6931472
    %v3263 = vsub.f32 %v3255, %v3262
    %3264 = vst [vmem:[#allocation14 + $0x5] sm:$0x1] %v3263
    %s3265 = scalar_lea.vmem [#allocation2], 6
    %v3266 = vld [vmem:[%s3265] ss:$8 sm:$0xf]
    %v3267 = vld [vmem:[%s3265] ss:$8 sm:$0xf0]
    %v3268 = vor.u32 %v3266, %v3267
    %3269 = vmatprep.subr.bf16.mxu0 %v1047
    %3270 = vmatpush1.bf16.msra.mxu0 %v1046
    %3271 = vmatprep.subr.bf16.mxu0 %v1039
    %3272 = vmatpush1.bf16.msra.mxu0 %v1038
    %3273 = vmatprep.subr.bf16.mxu0 %v1031
    %3274 = vmatpush1.bf16.msra.mxu0 %v1030
    %3275 = vmatprep.subr.bf16.mxu0 %v1023
    %3276 = vmatpush1.bf16.msra.mxu0 %v1022
    %3277 = vmatprep.subr.bf16.mxu0 %v1015
    %3278 = vmatpush1.bf16.msra.mxu0 %v1014
    %3279 = vmatprep.subr.bf16.mxu0 %v1007
    %3280 = vmatpush1.bf16.msra.mxu0 %v1006
    %3281 = vmatprep.subr.bf16.mxu0 %v999
    %3282 = vmatpush1.bf16.msra.mxu0 %v998
    %3283 = vmatprep.subr.bf16.mxu0 %v991
    %3284 = vmatpush1.bf16.msra.mxu0 %v990
    %3285 = vmatprep.subr.bf16.mxu0 %v1111
    %3286 = vmatpush2.bf16.msra.mxu0 %v1110
    %3287 = vmatprep.subr.bf16.mxu0 %v1103
    %3288 = vmatpush2.bf16.msra.mxu0 %v1102
    %3289 = vmatprep.subr.bf16.mxu0 %v1095
    %3290 = vmatpush2.bf16.msra.mxu0 %v1094
    %3291 = vmatprep.subr.bf16.mxu0 %v1087
    %3292 = vmatpush2.bf16.msra.mxu0 %v1086
    %3293 = vmatprep.subr.bf16.mxu0 %v1079
    %3294 = vmatpush2.bf16.msra.mxu0 %v1078
    %3295 = vmatprep.subr.bf16.mxu0 %v1071
    %3296 = vmatpush2.bf16.msra.mxu0 %v1070
    %3297 = vmatprep.subr.bf16.mxu0 %v1063
    %3298 = vmatpush2.bf16.msra.mxu0 %v1062
    %3299 = vmatprep.subr.bf16.mxu0 %v1055
    %3300 = vmatpush2.bf16.msra.mxu0 %v1054
    %3301 = vmatprep.mubr.bf16.mxu0 %v3211
    %3302 = vmatmul.mubr.bf16.gmra.mxu0 %v3210
    %v3303 = vpop.f32.mrf.mxu0
    %v3304 = vadd.f32 0.0, %v3303
    %v3305 = vpop.f32.mrf.mxu0
    %v3306 = vadd.f32 0.0, %v3305
    %v3307 = vpop.f32.mrf.mxu0
    %v3308 = vpop.f32.mrf.mxu0
    %3309 = vdwg.mxu0
    %3310 = vmatprep.subr.bf16.mxu0 %v1049
    %3311 = vmatpush1.bf16.msra.mxu0 %v1048
    %3312 = vmatprep.subr.bf16.mxu0 %v1041
    %3313 = vmatpush1.bf16.msra.mxu0 %v1040
    %3314 = vmatprep.subr.bf16.mxu0 %v1033
    %3315 = vmatpush1.bf16.msra.mxu0 %v1032
    %3316 = vmatprep.subr.bf16.mxu0 %v1025
    %3317 = vmatpush1.bf16.msra.mxu0 %v1024
    %3318 = vmatprep.subr.bf16.mxu0 %v1017
    %3319 = vmatpush1.bf16.msra.mxu0 %v1016
    %3320 = vmatprep.subr.bf16.mxu0 %v1009
    %3321 = vmatpush1.bf16.msra.mxu0 %v1008
    %3322 = vmatprep.subr.bf16.mxu0 %v1001
    %3323 = vmatpush1.bf16.msra.mxu0 %v1000
    %3324 = vmatprep.subr.bf16.mxu0 %v993
    %3325 = vmatpush1.bf16.msra.mxu0 %v992
    %3326 = vmatprep.subr.bf16.mxu0 %v1113
    %3327 = vmatpush2.bf16.msra.mxu0 %v1112
    %3328 = vmatprep.subr.bf16.mxu0 %v1105
    %3329 = vmatpush2.bf16.msra.mxu0 %v1104
    %3330 = vmatprep.subr.bf16.mxu0 %v1097
    %3331 = vmatpush2.bf16.msra.mxu0 %v1096
    %3332 = vmatprep.subr.bf16.mxu0 %v1089
    %3333 = vmatpush2.bf16.msra.mxu0 %v1088
    %3334 = vmatprep.subr.bf16.mxu0 %v1081
    %3335 = vmatpush2.bf16.msra.mxu0 %v1080
    %3336 = vmatprep.subr.bf16.mxu0 %v1073
    %3337 = vmatpush2.bf16.msra.mxu0 %v1072
    %3338 = vmatprep.subr.bf16.mxu0 %v1065
    %3339 = vmatpush2.bf16.msra.mxu0 %v1064
    %3340 = vmatprep.subr.bf16.mxu0 %v1057
    %3341 = vmatpush2.bf16.msra.mxu0 %v1056
    %3342 = vmatprep.mubr.bf16.mxu0 %v3211
    %3343 = vmatmul.mubr.bf16.gmra.mxu0 %v3210
    %v3344 = vpop.f32.mrf.mxu0
    %v3345 = vadd.f32 0.0, %v3344
    %v3346 = vpop.f32.mrf.mxu0
    %v3347 = vadd.f32 0.0, %v3346
    %v3348 = vpop.f32.mrf.mxu0
    %v3349 = vpop.f32.mrf.mxu0
    %3350 = vdwg.mxu0
    %3351 = vmatprep.subr.bf16.mxu0 %v1051
    %3352 = vmatpush1.bf16.msra.mxu0 %v1050
    %3353 = vmatprep.subr.bf16.mxu0 %v1043
    %3354 = vmatpush1.bf16.msra.mxu0 %v1042
    %3355 = vmatprep.subr.bf16.mxu0 %v1035
    %3356 = vmatpush1.bf16.msra.mxu0 %v1034
    %3357 = vmatprep.subr.bf16.mxu0 %v1027
    %3358 = vmatpush1.bf16.msra.mxu0 %v1026
    %3359 = vmatprep.subr.bf16.mxu0 %v1019
    %3360 = vmatpush1.bf16.msra.mxu0 %v1018
    %3361 = vmatprep.subr.bf16.mxu0 %v1011
    %3362 = vmatpush1.bf16.msra.mxu0 %v1010
    %3363 = vmatprep.subr.bf16.mxu0 %v1003
    %3364 = vmatpush1.bf16.msra.mxu0 %v1002
    %3365 = vmatprep.subr.bf16.mxu0 %v995
    %3366 = vmatpush1.bf16.msra.mxu0 %v994
    %3367 = vmatprep.subr.bf16.mxu0 %v1115
    %3368 = vmatpush2.bf16.msra.mxu0 %v1114
    %3369 = vmatprep.subr.bf16.mxu0 %v1107
    %3370 = vmatpush2.bf16.msra.mxu0 %v1106
    %3371 = vmatprep.subr.bf16.mxu0 %v1099
    %3372 = vmatpush2.bf16.msra.mxu0 %v1098
    %3373 = vmatprep.subr.bf16.mxu0 %v1091
    %3374 = vmatpush2.bf16.msra.mxu0 %v1090
    %3375 = vmatprep.subr.bf16.mxu0 %v1083
    %3376 = vmatpush2.bf16.msra.mxu0 %v1082
    %3377 = vmatprep.subr.bf16.mxu0 %v1075
    %3378 = vmatpush2.bf16.msra.mxu0 %v1074
    %3379 = vmatprep.subr.bf16.mxu0 %v1067
    %3380 = vmatpush2.bf16.msra.mxu0 %v1066
    %3381 = vmatprep.subr.bf16.mxu0 %v1059
    %3382 = vmatpush2.bf16.msra.mxu0 %v1058
    %3383 = vmatprep.mubr.bf16.mxu0 %v3211
    %3384 = vmatmul.mubr.bf16.gmra.mxu0 %v3210
    %v3385 = vpop.f32.mrf.mxu0
    %v3386 = vadd.f32 0.0, %v3385
    %v3387 = vpop.f32.mrf.mxu0
    %v3388 = vadd.f32 0.0, %v3387
    %v3389 = vpop.f32.mrf.mxu0
    %v3390 = vpop.f32.mrf.mxu0
    %3391 = vdwg.mxu0
    %3392 = vmatprep.subr.bf16.mxu0 %v1053
    %3393 = vmatpush1.bf16.msra.mxu0 %v1052
    %3394 = vmatprep.subr.bf16.mxu0 %v1045
    %3395 = vmatpush1.bf16.msra.mxu0 %v1044
    %3396 = vmatprep.subr.bf16.mxu0 %v1037
    %3397 = vmatpush1.bf16.msra.mxu0 %v1036
    %3398 = vmatprep.subr.bf16.mxu0 %v1029
    %3399 = vmatpush1.bf16.msra.mxu0 %v1028
    %3400 = vmatprep.subr.bf16.mxu0 %v1021
    %3401 = vmatpush1.bf16.msra.mxu0 %v1020
    %3402 = vmatprep.subr.bf16.mxu0 %v1013
    %3403 = vmatpush1.bf16.msra.mxu0 %v1012
    %3404 = vmatprep.subr.bf16.mxu0 %v1005
    %3405 = vmatpush1.bf16.msra.mxu0 %v1004
    %3406 = vmatprep.subr.bf16.mxu0 %v997
    %3407 = vmatpush1.bf16.msra.mxu0 %v996
    %3408 = vmatprep.subr.bf16.mxu0 %v1117
    %3409 = vmatpush2.bf16.msra.mxu0 %v1116
    %3410 = vmatprep.subr.bf16.mxu0 %v1109
    %3411 = vmatpush2.bf16.msra.mxu0 %v1108
    %3412 = vmatprep.subr.bf16.mxu0 %v1101
    %3413 = vmatpush2.bf16.msra.mxu0 %v1100
    %3414 = vmatprep.subr.bf16.mxu0 %v1093
    %3415 = vmatpush2.bf16.msra.mxu0 %v1092
    %3416 = vmatprep.subr.bf16.mxu0 %v1085
    %3417 = vmatpush2.bf16.msra.mxu0 %v1084
    %3418 = vmatprep.subr.bf16.mxu0 %v1077
    %3419 = vmatpush2.bf16.msra.mxu0 %v1076
    %3420 = vmatprep.subr.bf16.mxu0 %v1069
    %3421 = vmatpush2.bf16.msra.mxu0 %v1068
    %3422 = vmatprep.subr.bf16.mxu0 %v1061
    %3423 = vmatpush2.bf16.msra.mxu0 %v1060
    %3424 = vmatprep.mubr.bf16.mxu0 %v3211
    %3425 = vmatmul.mubr.bf16.gmra.mxu0 %v3210
    %v3426 = vpop.f32.mrf.mxu0
    %v3427 = vadd.f32 0.0, %v3426
    %v3428 = vpop.f32.mrf.mxu0
    %v3429 = vadd.f32 0.0, %v3428
    %v3430 = vpop.f32.mrf.mxu0
    %v3431 = vpop.f32.mrf.mxu0
    %3432 = vdwg.mxu0
    %v3441 = vcombine.low %v3304, %v3306
    %v3442 = vcombine.low %v3345, %v3347
    %v3443 = vcombine.low %v3386, %v3388
    %v3444 = vcombine.low %v3427, %v3429
    %v3446 = vunpack.c.l.s4 1966171168
    %v3447 = vunpack.c.0.s8 %v3446
    %v3448 = vlaneseq
    %v3449 = vshrl.u32 %v3448, 7
    %v3450 = vsub.s32 %v3447, %v3449
    %v3451 = vrot.slane %v3441, %v3450
    %v3453 = vunpack.c.l.s4 1966171168
    %v3454 = vunpack.c.0.s8 %v3453
    %v3455 = vlaneseq
    %v3456 = vshrl.u32 %v3455, 7
    %v3457 = vsub.s32 %v3454, %v3456
    %v3458 = vrot.slane %v3442, %v3457
    %v3460 = vunpack.c.l.s4 1966171168
    %v3461 = vunpack.c.0.s8 %v3460
    %v3462 = vlaneseq
    %v3463 = vshrl.u32 %v3462, 7
    %v3464 = vsub.s32 %v3461, %v3463
    %v3465 = vrot.slane %v3443, %v3464
    %v3467 = vunpack.c.l.s4 1966171168
    %v3468 = vunpack.c.0.s8 %v3467
    %v3469 = vlaneseq
    %v3470 = vshrl.u32 %v3469, 7
    %v3471 = vsub.s32 %v3468, %v3470
    %v3472 = vrot.slane %v3444, %v3471
    %v3473 = vcombine.low %v3451, %v3458
    %v3474 = vcombine.low %v3465, %v3472
    %v3476 = vunpack.c.l.s4 1966171168
    %v3477 = vunpack.c.0.s8 %v3476
    %v3478 = vlaneseq
    %v3479 = vshrl.u32 %v3478, 7
    %v3480 = vsub.s32 %v3477, %v3479
    %v3481 = vrot.slane %v3473, %v3480
    %v3483 = vunpack.c.l.s4 1966171168
    %v3484 = vunpack.c.0.s8 %v3483
    %v3485 = vlaneseq
    %v3486 = vshrl.u32 %v3485, 7
    %v3487 = vsub.s32 %v3484, %v3486
    %v3488 = vrot.slane %v3474, %v3487
    %v3489 = vcombine.low %v3481, %v3488
    %v3491 = vadd.f32 %v3268, %v3489
    %v3492 = vsub.f32 0.0, %v3491
    %v3493 = vmul.f32 %v3492, 1.442695
    %v3494 = vpow.pop %v3493
    %v3495 = vadd.f32 %v3494, 1.0
    %v3496 = vrcp.pop %v3495
    %v3498 = vrot.slane %v3491, 2
    %v3500 = vsub.f32 0.0, %v3498
    %v3501 = vmul.f32 %v3500, 1.442695
    %v3502 = vpow.pop %v3501
    %v3503 = vadd.f32 %v3502, 1.0
    %v3504 = vrcp.pop %v3503
    %v3505 = vrot.slane %v3491, 4
    %v3507 = vtanh.pop %v3505
    %v3508 = vrot.slane %v3491, 6
    %v3510 = vsub.f32 0.0, %v3508
    %v3511 = vmul.f32 %v3510, 1.442695
    %v3512 = vpow.pop %v3511
    %v3513 = vadd.f32 %v3512, 1.0
    %v3514 = vrcp.pop %v3513
    %v3515 = vmul.f32 %v3504, %v3196
    %v3516 = vmul.f32 %v3496, %v3507
    %v3517 = vadd.f32 %v3515, %v3516
    %v3518 = vtanh.pop %v3517
    %v3519 = vmul.f32 %v3514, %v3518
    %v3521 = vlaneseq
    %v3522 = vshrl.u32 %v3521, 7
    %v3523 = vsub.s32 0, %v3522
    %v3524 = vrot.slane %v3519, %v3523
    %v3525 = vlaneseq
    %v3526 = vshrl.u32 %v3525, 7
    %v3527 = vsub.s32 1, %v3526
    %v3528 = vrot.slane %v3519, %v3527
    %v3531 = vpack.c.bf16 %v3524, %v3524
    %v3532 = vpack.c.bf16 %v3528, %v3528
    %3533 = vmatprep.subr.bf16.mxu0 0
    %3534 = vmatpush1.bf16.msra.mxu0 %v1581
    %3535 = vmatprep.subr.bf16.mxu0 0
    %3536 = vmatpush1.bf16.msra.mxu0 %v1580
    %3537 = vmatprep.subr.bf16.mxu0 0
    %3538 = vmatpush1.bf16.msra.mxu0 %v1579
    %3539 = vmatprep.subr.bf16.mxu0 0
    %3540 = vmatpush1.bf16.msra.mxu0 %v1578
    %3541 = vmatprep.subr.bf16.mxu0 0
    %3542 = vmatpush1.bf16.msra.mxu0 %v1577
    %3543 = vmatprep.subr.bf16.mxu0 0
    %3544 = vmatpush1.bf16.msra.mxu0 %v1576
    %3545 = vmatprep.subr.bf16.mxu0 0
    %3546 = vmatpush1.bf16.msra.mxu0 %v1575
    %3547 = vmatprep.subr.bf16.mxu0 0
    %3548 = vmatpush1.bf16.msra.mxu0 %v1574
    %3549 = vmatprep.subr.bf16.mxu0 0
    %3550 = vmatpush2.bf16.msra.mxu0 %v1589
    %3551 = vmatprep.subr.bf16.mxu0 0
    %3552 = vmatpush2.bf16.msra.mxu0 %v1588
    %3553 = vmatprep.subr.bf16.mxu0 0
    %3554 = vmatpush2.bf16.msra.mxu0 %v1587
    %3555 = vmatprep.subr.bf16.mxu0 0
    %3556 = vmatpush2.bf16.msra.mxu0 %v1586
    %3557 = vmatprep.subr.bf16.mxu0 0
    %3558 = vmatpush2.bf16.msra.mxu0 %v1585
    %3559 = vmatprep.subr.bf16.mxu0 0
    %3560 = vmatpush2.bf16.msra.mxu0 %v1584
    %3561 = vmatprep.subr.bf16.mxu0 0
    %3562 = vmatpush2.bf16.msra.mxu0 %v1583
    %3563 = vmatprep.subr.bf16.mxu0 0
    %3564 = vmatpush2.bf16.msra.mxu0 %v1582
    %3565 = vmatprep.mubr.bf16.mxu0 %v3532
    %3566 = vmatmul.mubr.bf16.gmra.mxu0 %v3531
    %v3567 = vpop.f32.mrf.mxu0
    %v3568 = vadd.f32 %v587, %v3567
    %v3569 = vpop.f32.mrf.mxu0
    %v3570 = vpop.f32.mrf.mxu0
    %v3571 = vpop.f32.mrf.mxu0
    %3572 = vdwg.mxu0
    %v3573 = vsel %vm1646, %v3568, -inf
    %3574 = vmax.xlane.f32.xlu0 %v3573
    %v3575 = vpop.xlane.xlu0 %3574
    %v3576 = vsub.f32 %v3568, %v3575
    %v3577 = vmul.f32 %v3576, 1.442695
    %v3578 = vpow.pop %v3577
    %v3579 = vsel %vm1646, %v3578, 0.0
    %3580 = vadd.xlane.f32.xlu0 %v3579
    %v3581 = vpop.xlane.xlu0 %3580
    %v3582 = vlog2.pop %v3581
    %v3583 = vmul.f32 %v3582, 0.6931472
    %v3584 = vsub.f32 %v3576, %v3583
    %3585 = vst [vmem:[#allocation14 + $0x6] sm:$0x1] %v3584
    %s3586 = scalar_lea.vmem [#allocation2], 7
    %v3587 = vld [vmem:[%s3586] ss:$8 sm:$0xf]
    %v3588 = vld [vmem:[%s3586] ss:$8 sm:$0xf0]
    %v3589 = vor.u32 %v3587, %v3588
    %3590 = vmatprep.subr.bf16.mxu0 %v1047
    %3591 = vmatpush1.bf16.msra.mxu0 %v1046
    %3592 = vmatprep.subr.bf16.mxu0 %v1039
    %3593 = vmatpush1.bf16.msra.mxu0 %v1038
    %3594 = vmatprep.subr.bf16.mxu0 %v1031
    %3595 = vmatpush1.bf16.msra.mxu0 %v1030
    %3596 = vmatprep.subr.bf16.mxu0 %v1023
    %3597 = vmatpush1.bf16.msra.mxu0 %v1022
    %3598 = vmatprep.subr.bf16.mxu0 %v1015
    %3599 = vmatpush1.bf16.msra.mxu0 %v1014
    %3600 = vmatprep.subr.bf16.mxu0 %v1007
    %3601 = vmatpush1.bf16.msra.mxu0 %v1006
    %3602 = vmatprep.subr.bf16.mxu0 %v999
    %3603 = vmatpush1.bf16.msra.mxu0 %v998
    %3604 = vmatprep.subr.bf16.mxu0 %v991
    %3605 = vmatpush1.bf16.msra.mxu0 %v990
    %3606 = vmatprep.subr.bf16.mxu0 %v1111
    %3607 = vmatpush2.bf16.msra.mxu0 %v1110
    %3608 = vmatprep.subr.bf16.mxu0 %v1103
    %3609 = vmatpush2.bf16.msra.mxu0 %v1102
    %3610 = vmatprep.subr.bf16.mxu0 %v1095
    %3611 = vmatpush2.bf16.msra.mxu0 %v1094
    %3612 = vmatprep.subr.bf16.mxu0 %v1087
    %3613 = vmatpush2.bf16.msra.mxu0 %v1086
    %3614 = vmatprep.subr.bf16.mxu0 %v1079
    %3615 = vmatpush2.bf16.msra.mxu0 %v1078
    %3616 = vmatprep.subr.bf16.mxu0 %v1071
    %3617 = vmatpush2.bf16.msra.mxu0 %v1070
    %3618 = vmatprep.subr.bf16.mxu0 %v1063
    %3619 = vmatpush2.bf16.msra.mxu0 %v1062
    %3620 = vmatprep.subr.bf16.mxu0 %v1055
    %3621 = vmatpush2.bf16.msra.mxu0 %v1054
    %3622 = vmatprep.mubr.bf16.mxu0 %v3532
    %3623 = vmatmul.mubr.bf16.gmra.mxu0 %v3531
    %v3624 = vpop.f32.mrf.mxu0
    %v3625 = vadd.f32 0.0, %v3624
    %v3626 = vpop.f32.mrf.mxu0
    %v3627 = vadd.f32 0.0, %v3626
    %v3628 = vpop.f32.mrf.mxu0
    %v3629 = vpop.f32.mrf.mxu0
    %3630 = vdwg.mxu0
    %3631 = vmatprep.subr.bf16.mxu0 %v1049
    %3632 = vmatpush1.bf16.msra.mxu0 %v1048
    %3633 = vmatprep.subr.bf16.mxu0 %v1041
    %3634 = vmatpush1.bf16.msra.mxu0 %v1040
    %3635 = vmatprep.subr.bf16.mxu0 %v1033
    %3636 = vmatpush1.bf16.msra.mxu0 %v1032
    %3637 = vmatprep.subr.bf16.mxu0 %v1025
    %3638 = vmatpush1.bf16.msra.mxu0 %v1024
    %3639 = vmatprep.subr.bf16.mxu0 %v1017
    %3640 = vmatpush1.bf16.msra.mxu0 %v1016
    %3641 = vmatprep.subr.bf16.mxu0 %v1009
    %3642 = vmatpush1.bf16.msra.mxu0 %v1008
    %3643 = vmatprep.subr.bf16.mxu0 %v1001
    %3644 = vmatpush1.bf16.msra.mxu0 %v1000
    %3645 = vmatprep.subr.bf16.mxu0 %v993
    %3646 = vmatpush1.bf16.msra.mxu0 %v992
    %3647 = vmatprep.subr.bf16.mxu0 %v1113
    %3648 = vmatpush2.bf16.msra.mxu0 %v1112
    %3649 = vmatprep.subr.bf16.mxu0 %v1105
    %3650 = vmatpush2.bf16.msra.mxu0 %v1104
    %3651 = vmatprep.subr.bf16.mxu0 %v1097
    %3652 = vmatpush2.bf16.msra.mxu0 %v1096
    %3653 = vmatprep.subr.bf16.mxu0 %v1089
    %3654 = vmatpush2.bf16.msra.mxu0 %v1088
    %3655 = vmatprep.subr.bf16.mxu0 %v1081
    %3656 = vmatpush2.bf16.msra.mxu0 %v1080
    %3657 = vmatprep.subr.bf16.mxu0 %v1073
    %3658 = vmatpush2.bf16.msra.mxu0 %v1072
    %3659 = vmatprep.subr.bf16.mxu0 %v1065
    %3660 = vmatpush2.bf16.msra.mxu0 %v1064
    %3661 = vmatprep.subr.bf16.mxu0 %v1057
    %3662 = vmatpush2.bf16.msra.mxu0 %v1056
    %3663 = vmatprep.mubr.bf16.mxu0 %v3532
    %3664 = vmatmul.mubr.bf16.gmra.mxu0 %v3531
    %v3665 = vpop.f32.mrf.mxu0
    %v3666 = vadd.f32 0.0, %v3665
    %v3667 = vpop.f32.mrf.mxu0
    %v3668 = vadd.f32 0.0, %v3667
    %v3669 = vpop.f32.mrf.mxu0
    %v3670 = vpop.f32.mrf.mxu0
    %3671 = vdwg.mxu0
    %3672 = vmatprep.subr.bf16.mxu0 %v1051
    %3673 = vmatpush1.bf16.msra.mxu0 %v1050
    %3674 = vmatprep.subr.bf16.mxu0 %v1043
    %3675 = vmatpush1.bf16.msra.mxu0 %v1042
    %3676 = vmatprep.subr.bf16.mxu0 %v1035
    %3677 = vmatpush1.bf16.msra.mxu0 %v1034
    %3678 = vmatprep.subr.bf16.mxu0 %v1027
    %3679 = vmatpush1.bf16.msra.mxu0 %v1026
    %3680 = vmatprep.subr.bf16.mxu0 %v1019
    %3681 = vmatpush1.bf16.msra.mxu0 %v1018
    %3682 = vmatprep.subr.bf16.mxu0 %v1011
    %3683 = vmatpush1.bf16.msra.mxu0 %v1010
    %3684 = vmatprep.subr.bf16.mxu0 %v1003
    %3685 = vmatpush1.bf16.msra.mxu0 %v1002
    %3686 = vmatprep.subr.bf16.mxu0 %v995
    %3687 = vmatpush1.bf16.msra.mxu0 %v994
    %3688 = vmatprep.subr.bf16.mxu0 %v1115
    %3689 = vmatpush2.bf16.msra.mxu0 %v1114
    %3690 = vmatprep.subr.bf16.mxu0 %v1107
    %3691 = vmatpush2.bf16.msra.mxu0 %v1106
    %3692 = vmatprep.subr.bf16.mxu0 %v1099
    %3693 = vmatpush2.bf16.msra.mxu0 %v1098
    %3694 = vmatprep.subr.bf16.mxu0 %v1091
    %3695 = vmatpush2.bf16.msra.mxu0 %v1090
    %3696 = vmatprep.subr.bf16.mxu0 %v1083
    %3697 = vmatpush2.bf16.msra.mxu0 %v1082
    %3698 = vmatprep.subr.bf16.mxu0 %v1075
    %3699 = vmatpush2.bf16.msra.mxu0 %v1074
    %3700 = vmatprep.subr.bf16.mxu0 %v1067
    %3701 = vmatpush2.bf16.msra.mxu0 %v1066
    %3702 = vmatprep.subr.bf16.mxu0 %v1059
    %3703 = vmatpush2.bf16.msra.mxu0 %v1058
    %3704 = vmatprep.mubr.bf16.mxu0 %v3532
    %3705 = vmatmul.mubr.bf16.gmra.mxu0 %v3531
    %v3706 = vpop.f32.mrf.mxu0
    %v3707 = vadd.f32 0.0, %v3706
    %v3708 = vpop.f32.mrf.mxu0
    %v3709 = vadd.f32 0.0, %v3708
    %v3710 = vpop.f32.mrf.mxu0
    %v3711 = vpop.f32.mrf.mxu0
    %3712 = vdwg.mxu0
    %3713 = vmatprep.subr.bf16.mxu0 %v1053
    %3714 = vmatpush1.bf16.msra.mxu0 %v1052
    %3715 = vmatprep.subr.bf16.mxu0 %v1045
    %3716 = vmatpush1.bf16.msra.mxu0 %v1044
    %3717 = vmatprep.subr.bf16.mxu0 %v1037
    %3718 = vmatpush1.bf16.msra.mxu0 %v1036
    %3719 = vmatprep.subr.bf16.mxu0 %v1029
    %3720 = vmatpush1.bf16.msra.mxu0 %v1028
    %3721 = vmatprep.subr.bf16.mxu0 %v1021
    %3722 = vmatpush1.bf16.msra.mxu0 %v1020
    %3723 = vmatprep.subr.bf16.mxu0 %v1013
    %3724 = vmatpush1.bf16.msra.mxu0 %v1012
    %3725 = vmatprep.subr.bf16.mxu0 %v1005
    %3726 = vmatpush1.bf16.msra.mxu0 %v1004
    %3727 = vmatprep.subr.bf16.mxu0 %v997
    %3728 = vmatpush1.bf16.msra.mxu0 %v996
    %3729 = vmatprep.subr.bf16.mxu0 %v1117
    %3730 = vmatpush2.bf16.msra.mxu0 %v1116
    %3731 = vmatprep.subr.bf16.mxu0 %v1109
    %3732 = vmatpush2.bf16.msra.mxu0 %v1108
    %3733 = vmatprep.subr.bf16.mxu0 %v1101
    %3734 = vmatpush2.bf16.msra.mxu0 %v1100
    %3735 = vmatprep.subr.bf16.mxu0 %v1093
    %3736 = vmatpush2.bf16.msra.mxu0 %v1092
    %3737 = vmatprep.subr.bf16.mxu0 %v1085
    %3738 = vmatpush2.bf16.msra.mxu0 %v1084
    %3739 = vmatprep.subr.bf16.mxu0 %v1077
    %3740 = vmatpush2.bf16.msra.mxu0 %v1076
    %3741 = vmatprep.subr.bf16.mxu0 %v1069
    %3742 = vmatpush2.bf16.msra.mxu0 %v1068
    %3743 = vmatprep.subr.bf16.mxu0 %v1061
    %3744 = vmatpush2.bf16.msra.mxu0 %v1060
    %3745 = vmatprep.mubr.bf16.mxu0 %v3532
    %3746 = vmatmul.mubr.bf16.gmra.mxu0 %v3531
    %v3747 = vpop.f32.mrf.mxu0
    %v3748 = vadd.f32 0.0, %v3747
    %v3749 = vpop.f32.mrf.mxu0
    %v3750 = vadd.f32 0.0, %v3749
    %v3751 = vpop.f32.mrf.mxu0
    %v3752 = vpop.f32.mrf.mxu0
    %3753 = vdwg.mxu0
    %v3762 = vcombine.low %v3625, %v3627
    %v3763 = vcombine.low %v3666, %v3668
    %v3764 = vcombine.low %v3707, %v3709
    %v3765 = vcombine.low %v3748, %v3750
    %v3767 = vunpack.c.l.s4 1966171168
    %v3768 = vunpack.c.0.s8 %v3767
    %v3769 = vlaneseq
    %v3770 = vshrl.u32 %v3769, 7
    %v3771 = vsub.s32 %v3768, %v3770
    %v3772 = vrot.slane %v3762, %v3771
    %v3774 = vunpack.c.l.s4 1966171168
    %v3775 = vunpack.c.0.s8 %v3774
    %v3776 = vlaneseq
    %v3777 = vshrl.u32 %v3776, 7
    %v3778 = vsub.s32 %v3775, %v3777
    %v3779 = vrot.slane %v3763, %v3778
    %v3781 = vunpack.c.l.s4 1966171168
    %v3782 = vunpack.c.0.s8 %v3781
    %v3783 = vlaneseq
    %v3784 = vshrl.u32 %v3783, 7
    %v3785 = vsub.s32 %v3782, %v3784
    %v3786 = vrot.slane %v3764, %v3785
    %v3788 = vunpack.c.l.s4 1966171168
    %v3789 = vunpack.c.0.s8 %v3788
    %v3790 = vlaneseq
    %v3791 = vshrl.u32 %v3790, 7
    %v3792 = vsub.s32 %v3789, %v3791
    %v3793 = vrot.slane %v3765, %v3792
    %v3794 = vcombine.low %v3772, %v3779
    %v3795 = vcombine.low %v3786, %v3793
    %v3797 = vunpack.c.l.s4 1966171168
    %v3798 = vunpack.c.0.s8 %v3797
    %v3799 = vlaneseq
    %v3800 = vshrl.u32 %v3799, 7
    %v3801 = vsub.s32 %v3798, %v3800
    %v3802 = vrot.slane %v3794, %v3801
    %v3804 = vunpack.c.l.s4 1966171168
    %v3805 = vunpack.c.0.s8 %v3804
    %v3806 = vlaneseq
    %v3807 = vshrl.u32 %v3806, 7
    %v3808 = vsub.s32 %v3805, %v3807
    %v3809 = vrot.slane %v3795, %v3808
    %v3810 = vcombine.low %v3802, %v3809
    %v3812 = vadd.f32 %v3589, %v3810
    %v3813 = vsub.f32 0.0, %v3812
    %v3814 = vmul.f32 %v3813, 1.442695
    %v3815 = vpow.pop %v3814
    %v3816 = vadd.f32 %v3815, 1.0
    %v3817 = vrcp.pop %v3816
    %v3819 = vrot.slane %v3812, 2
    %v3821 = vsub.f32 0.0, %v3819
    %v3822 = vmul.f32 %v3821, 1.442695
    %v3823 = vpow.pop %v3822
    %v3824 = vadd.f32 %v3823, 1.0
    %v3825 = vrcp.pop %v3824
    %v3826 = vrot.slane %v3812, 4
    %v3828 = vtanh.pop %v3826
    %v3829 = vrot.slane %v3812, 6
    %v3831 = vsub.f32 0.0, %v3829
    %v3832 = vmul.f32 %v3831, 1.442695
    %v3833 = vpow.pop %v3832
    %v3834 = vadd.f32 %v3833, 1.0
    %v3835 = vrcp.pop %v3834
    %v3836 = vmul.f32 %v3825, %v3517
    %v3837 = vmul.f32 %v3817, %v3828
    %v3838 = vadd.f32 %v3836, %v3837
    %v3839 = vtanh.pop %v3838
    %v3840 = vmul.f32 %v3835, %v3839
    %v3842 = vlaneseq
    %v3843 = vshrl.u32 %v3842, 7
    %v3844 = vsub.s32 0, %v3843
    %v3845 = vrot.slane %v3840, %v3844
    %v3846 = vlaneseq
    %v3847 = vshrl.u32 %v3846, 7
    %v3848 = vsub.s32 1, %v3847
    %v3849 = vrot.slane %v3840, %v3848
    %v3852 = vpack.c.bf16 %v3845, %v3845
    %v3853 = vpack.c.bf16 %v3849, %v3849
    %3854 = vmatprep.subr.bf16.mxu0 0
    %3855 = vmatpush1.bf16.msra.mxu0 %v1581
    %3856 = vmatprep.subr.bf16.mxu0 0
    %3857 = vmatpush1.bf16.msra.mxu0 %v1580
    %3858 = vmatprep.subr.bf16.mxu0 0
    %3859 = vmatpush1.bf16.msra.mxu0 %v1579
    %3860 = vmatprep.subr.bf16.mxu0 0
    %3861 = vmatpush1.bf16.msra.mxu0 %v1578
    %3862 = vmatprep.subr.bf16.mxu0 0
    %3863 = vmatpush1.bf16.msra.mxu0 %v1577
    %3864 = vmatprep.subr.bf16.mxu0 0
    %3865 = vmatpush1.bf16.msra.mxu0 %v1576
    %3866 = vmatprep.subr.bf16.mxu0 0
    %3867 = vmatpush1.bf16.msra.mxu0 %v1575
    %3868 = vmatprep.subr.bf16.mxu0 0
    %3869 = vmatpush1.bf16.msra.mxu0 %v1574
    %3870 = vmatprep.subr.bf16.mxu0 0
    %3871 = vmatpush2.bf16.msra.mxu0 %v1589
    %3872 = vmatprep.subr.bf16.mxu0 0
    %3873 = vmatpush2.bf16.msra.mxu0 %v1588
    %3874 = vmatprep.subr.bf16.mxu0 0
    %3875 = vmatpush2.bf16.msra.mxu0 %v1587
    %3876 = vmatprep.subr.bf16.mxu0 0
    %3877 = vmatpush2.bf16.msra.mxu0 %v1586
    %3878 = vmatprep.subr.bf16.mxu0 0
    %3879 = vmatpush2.bf16.msra.mxu0 %v1585
    %3880 = vmatprep.subr.bf16.mxu0 0
    %3881 = vmatpush2.bf16.msra.mxu0 %v1584
    %3882 = vmatprep.subr.bf16.mxu0 0
    %3883 = vmatpush2.bf16.msra.mxu0 %v1583
    %3884 = vmatprep.subr.bf16.mxu0 0
    %3885 = vmatpush2.bf16.msra.mxu0 %v1582
    %3886 = vmatprep.mubr.bf16.mxu0 %v3853
    %3887 = vmatmul.mubr.bf16.gmra.mxu0 %v3852
    %v3888 = vpop.f32.mrf.mxu0
    %v3889 = vadd.f32 %v587, %v3888
    %v3890 = vpop.f32.mrf.mxu0
    %v3891 = vpop.f32.mrf.mxu0
    %v3892 = vpop.f32.mrf.mxu0
    %3893 = vdwg.mxu0
    %v3894 = vsel %vm1646, %v3889, -inf
    %3895 = vmax.xlane.f32.xlu0 %v3894
    %v3896 = vpop.xlane.xlu0 %3895
    %v3897 = vsub.f32 %v3889, %v3896
    %v3898 = vmul.f32 %v3897, 1.442695
    %v3899 = vpow.pop %v3898
    %v3900 = vsel %vm1646, %v3899, 0.0
    %3901 = vadd.xlane.f32.xlu0 %v3900
    %v3902 = vpop.xlane.xlu0 %3901
    %v3903 = vlog2.pop %v3902
    %v3904 = vmul.f32 %v3903, 0.6931472
    %v3905 = vsub.f32 %v3897, %v3904
    %3906 = vst [vmem:[#allocation14 + $0x7] sm:$0x1] %v3905
    %v3907 = vlaneseq
    %vm3908 = vcmp.ge.s32.totalorder %v3907, 0
    %vm3909 = vcmp.lt.s32.totalorder %v3907, 256
    %vm3910 = vmand %vm3908, %vm3909
    %3911 = vst.msk [vmem:[#allocation15] sm:$0x3] %vm3910, %v3840
    %3912 = vst.msk [vmem:[#allocation17] sm:$0x3] %vm3910, %v3838
    // Predicated region
    $region58: #{tpu_custom_call.1} parent=1 // pred_check
      _
    $region59: #{tpu_custom_call.1} parent=1 // pred_check_branch
      %3914 = sbr.rel (0) target = $region61
    $region60: #{tpu_custom_call.1} parent=1 // pred_region
      %s3916 = ssub.s32 128, 128
      %3917 = vsyncadd [#allocation5], %s3916
      %s3919 = sshll.u32 [#allocation14], 4
      %s3920 = int_to_ptr.vmem [resolvable:$true] %s3919
      %3922 = dma.vmem_to_hbm [thread:$0]  %s3920, 128, %s8, [#allocation5]
    $region61: #{tpu_custom_call.1} parent=1 // pred_fallthru
      _
    // Predicated region
    $region62: #{tpu_custom_call.1} parent=1 // pred_check
      _
    $region63: #{tpu_custom_call.1} parent=1 // pred_check_branch
      %3924 = sbr.rel (0) target = $region65
    $region64: #{tpu_custom_call.1} parent=1 // pred_region
      %s3926 = ssub.s32 32, 32
      %3927 = vsyncadd [#allocation16], %s3926
      %s3929 = sshll.u32 [#allocation15], 4
      %s3930 = int_to_ptr.vmem [resolvable:$true] %s3929
      %3932 = dma.vmem_to_hbm [thread:$0]  %s3930, 32, %s9, [#allocation16]
    $region65: #{tpu_custom_call.1} parent=1 // pred_fallthru
      _
    // Predicated region
    $region66: #{tpu_custom_call.1} parent=1 // pred_check
      _
    $region67: #{tpu_custom_call.1} parent=1 // pred_check_branch
      %3934 = sbr.rel (0) target = $region69
    $region68: #{tpu_custom_call.1} parent=1 // pred_region
      %s3936 = ssub.s32 32, 32
      %3937 = vsyncadd [#allocation16], %s3936
      %s3939 = sshll.u32 [#allocation17], 4
      %s3940 = int_to_ptr.vmem [resolvable:$true] %s3939
      %3942 = dma.vmem_to_hbm [thread:$0]  %s3940, 32, %s10, [#allocation16]
    $region69: #{tpu_custom_call.1} parent=1 // pred_fallthru
      _
    // Predicated region
    $region70: #{tpu_custom_call.1} parent=1 // pred_check
      _
    $region71: #{tpu_custom_call.1} parent=1 // pred_check_branch
      %3944 = sbr.rel (0) target = $region73
    $region72: #{tpu_custom_call.1} parent=1 // pred_region
      %3945 = dma.done [#allocation5], 128
    $region73: #{tpu_custom_call.1} parent=1 // pred_fallthru
      _
    // Predicated region
    $region74: #{tpu_custom_call.1} parent=1 // pred_check
      _
    $region75: #{tpu_custom_call.1} parent=1 // pred_check_branch
      %3947 = sbr.rel (0) target = $region77
    $region76: #{tpu_custom_call.1} parent=1 // pred_region
      %3948 = dma.done [#allocation16], 32
    $region77: #{tpu_custom_call.1} parent=1 // pred_fallthru
      _
    // Predicated region
    $region78: #{tpu_custom_call.1} parent=1 // pred_check
      _
    $region79: #{tpu_custom_call.1} parent=1 // pred_check_branch
      %3950 = sbr.rel (0) target = $region81
    $region80: #{tpu_custom_call.1} parent=1 // pred_region
      %3951 = dma.done [#allocation16], 32
    $region81: #{tpu_custom_call.1} parent=1 // pred_fallthru
      _
    %3952 = vsyncpa [#allocation4], 1
    %3953 = vsyncpa [#allocation7], 1
    %3954 = vsyncpa [#allocation10], 1
    %3955 = vsyncpa [#allocation13], 1
    %3956 = vsyncpa [#allocation5], 1
    %3957 = vsyncpa [#allocation16], 1

</llo_original>
